<compile_context>
chip_gen: v6e
topology: v6e:2x2x1
jax: 0.10.0
libtpu: 0.0.40
codegen_flags: <defaults>
</compile_context>

<pallas_src>
import functools

import jax
import jax.numpy as jnp
import numpy as np
from jax.experimental import pallas as pl
from jax.experimental.pallas import tpu as pltpu

NEG_BIG = -1.0e30  # "minus infinity" for padded vocab columns (avoids inf arithmetic)

_HAS_BUFFERED = hasattr(pl, "Buffered")


def _spec(shape, index_map, bufs=None):
    """BlockSpec with optional pipeline_mode, falling back if unsupported."""
    if bufs is not None and _HAS_BUFFERED:
        try:
            return pl.BlockSpec(shape, index_map, pipeline_mode=pl.Buffered(bufs))
        except TypeError:  # older JAX without the pipeline_mode kwarg
            pass
    return pl.BlockSpec(shape, index_map)


# ----------------------------------------------------------------------------
# Pallas kernel
#   grid = (num_vocab_tiles,)  -- V axis is "arbitrary" (online-lse carry)
# ----------------------------------------------------------------------------
def decoder_attention_kernel(
    # ---- inputs -------------------------------------------------------------
    emb_ref,      # (B, E)       embedded token (dropout = identity, eval)
    enc_ref,      # (B, S, H)    encoder states (batch-major), MXU dtype
    h0_ref,       # (L, B, H)    previous hidden state, f32
    w_gru_ref,    # (L, 2H, 4H)  fused per-layer GRU weight [[Wr_x Wz_x Win 0],
                  #                                          [Wr_h Wz_h 0  Whn]]
    b_gru_ref,    # (L, 1, 4H)   fused biases [br | bz | b_in | b_hn]
    wc_ref,       # (2H, H)      fused concat Linear weight (acts on [out, ctx])
    bc_ref,       # (1, H)
    wf_ref,       # (H, TV)      fc Linear, streamed V tile
    bf_ref,       # (1, TV)      fc bias tile (padded columns hold NEG_BIG)
    # ---- outputs ------------------------------------------------------------
    logp_ref,     # (B, Vp)      log-softmax scores (resident, finalized in-kernel)
    hout_ref,     # (L, B, H)    new hidden state
    attn_ref,     # (B, S)       attention weights
    # ---- scratch ------------------------------------------------------------
    hcat_sc,      # (B, H) f32   tanh(concat(...)) cached across V tiles
    m_sc,         # (B, 1) f32   running max   (online logsumexp)
    l_sc,         # (B, 1) f32   running sumexp
    *,
    num_layers,
):
    j = pl.program_id(0)
    n_vtiles = pl.num_programs(0)
    f32 = jnp.float32
    cd = wf_ref.dtype                       # MXU compute dtype (f32 or bf16)
    H = hout_ref.shape[2]

    # ---- phase 1 (first V tile only): GRU step + attention + concat Linear --
    @pl.when(j == 0)
    def _():
        x = emb_ref[...].astype(f32)                                 # (B, E)
        for l in range(num_layers):                                  # static unroll
            h_prev = h0_ref[l].astype(f32)                           # (B, H)
            xh = jnp.concatenate([x, h_prev], axis=1).astype(cd)     # (B, 2H)
            # one MXU push per layer: all four gate pre-activations at once
            g = jnp.dot(xh, w_gru_ref[l], preferred_element_type=f32) + b_gru_ref[l]
            r = jax.nn.sigmoid(g[:, 0:H])
            z = jax.nn.sigmoid(g[:, H:2 * H])
            n = jnp.tanh(g[:, 2 * H:3 * H] + r * g[:, 3 * H:4 * H])  # PyTorch GRU n-gate
            h_new = (1.0 - z) * n + z * h_prev                       # (B, H) f32
            hout_ref[l] = h_new
            x = h_new                                                # inter-layer dropout = id
        outputs = x                                                  # == outputs.squeeze(0)

        # dot-product attention: both contractions on the MXU
        enc = enc_ref[...]                                           # (B, S, H), cd
        q3 = outputs.astype(cd)[:, None, :]                          # (B, 1, H)
        s3 = jnp.einsum("bqh,bkh->bqk", q3, enc,
                        preferred_element_type=f32)                  # (B, 1, S)
        s_max = jnp.max(s3, axis=2, keepdims=True)
        e3 = jnp.exp(s3 - s_max)
        aw3 = e3 * pl.reciprocal(jnp.sum(e3, axis=2, keepdims=True), approx=False)
        attn_ref[...] = aw3[:, 0, :]                                 # (B, S)
        ctx3 = jnp.einsum("bqk,bkh->bqh", aw3.astype(cd), enc,
                          preferred_element_type=f32)                # (B, 1, H)
        context = ctx3[:, 0, :]                                      # (B, H)

        # fused concat Linear + tanh, cached across the vocab stream
        oc = jnp.concatenate([outputs, context], axis=1).astype(cd)  # (B, 2H)
        hcat_sc[...] = jnp.tanh(
            jnp.dot(oc, wc_ref[...], preferred_element_type=f32) + bc_ref[...])

        # init online-logsumexp accumulators
        m_sc[...] = jnp.full_like(m_sc, NEG_BIG)
        l_sc[...] = jnp.zeros_like(l_sc)

    # ---- phase 2 (every V tile): streamed fc matmul + online logsumexp ------
    tv = wf_ref.shape[1]
    logits = (jnp.dot(hcat_sc[...].astype(cd), wf_ref[...],
                      preferred_element_type=f32)
              + bf_ref[...])                                         # (B, TV) f32
    col = pl.multiple_of(j * tv, 128)
    logp_ref[:, pl.ds(col, tv)] = logits                             # raw logits for now

    m_prev = m_sc[...]
    m_new = jnp.maximum(m_prev, jnp.max(logits, axis=1, keepdims=True))
    l_sc[...] = (l_sc[...] * jnp.exp(m_prev - m_new)
                 + jnp.sum(jnp.exp(logits - m_new), axis=1, keepdims=True))
    m_sc[...] = m_new

    # ---- phase 3 (last V tile): finalize log_softmax in place ---------------
    @pl.when(j == n_vtiles - 1)
    def _():
        lse = m_sc[...] + jnp.log(l_sc[...])                         # (B, 1)
        logp_ref[...] = logp_ref[...] - lse


# ----------------------------------------------------------------------------
# One-time parameter packing (hoisted out of the per-step forward)
# ----------------------------------------------------------------------------
def prepare_decoder_params(p, *, v_tile=512, mxu_dtype=jnp.bfloat16):
    L, H3, E = p["wih"].shape
    H = H3 // 3
    assert E == H, "kernel assumes embedding_size == hidden_size (uniform layer stacking)"
    V = p["fc_w"].shape[0]

    v_tile = int(v_tile)
    assert v_tile > 0 and v_tile % 128 == 0, "v_tile must be a positive multiple of 128"
    v_tile = min(v_tile, 1024)               # v7x VMEM (64 MiB) budget cap
    Vp = ((V + v_tile - 1) // v_tile) * v_tile

    f32 = jnp.float32
    wih = jnp.asarray(p["wih"], f32)
    whh = jnp.asarray(p["whh"], f32)
    bih = jnp.asarray(p["bih"], f32)
    bhh = jnp.asarray(p["bhh"], f32)

    def gx(g):  # input-to-hidden gate g, transposed to (L, E, H)
        return jnp.transpose(wih[:, g * H:(g + 1) * H, :], (0, 2, 1))

    def gh(g):  # hidden-to-hidden gate g, transposed to (L, H, H)
        return jnp.transpose(whh[:, g * H:(g + 1) * H, :], (0, 2, 1))

    # Fused per-layer GRU weight: xh(B,2H) @ W(2H,4H) = [r_pre | z_pre | i_n | h_n]
    zx = jnp.zeros((L, E, H), f32)
    zh = jnp.zeros((L, H, H), f32)
    top = jnp.concatenate([gx(0), gx(1), gx(2), zx], axis=2)   # x rows
    bot = jnp.concatenate([gh(0), gh(1), zh, gh(2)], axis=2)   # h rows
    w_gru = jnp.concatenate([top, bot], axis=1)                # (L, 2H, 4H)
    b_gru = jnp.concatenate(
        [bih[:, 0:H] + bhh[:, 0:H],
         bih[:, H:2 * H] + bhh[:, H:2 * H],
         bih[:, 2 * H:3 * H],
         bhh[:, 2 * H:3 * H]], axis=1).reshape(L, 1, 4 * H)

    wf = jnp.pad(jnp.asarray(p["fc_w"], f32).T, ((0, 0), (0, Vp - V)))   # zero weight pad
    bf = jnp.pad(jnp.asarray(p["fc_b"], f32).reshape(1, V), ((0, 0), (0, Vp - V)),
                 constant_values=NEG_BIG)                                # padded exp() == 0

    # TODO(synk): add fp8 (v7x) / int8 (v5e) weight-only quantization of `wf`
    #             with per-tile scales folded into the f32 logits.
    return {
        "embedding": jnp.asarray(p["embedding"], f32),
        "w_gru": w_gru.astype(mxu_dtype),
        "b_gru": b_gru.astype(f32),
        "wc": jnp.asarray(p["concat_w"], f32).T.astype(mxu_dtype),   # (2H, H)
        "bc": jnp.asarray(p["concat_b"], f32).reshape(1, H),
        "wf": wf.astype(mxu_dtype),
        "bf": bf.astype(f32),
        "num_layers": L, "hidden_size": H, "vocab": V,
        "vocab_padded": Vp, "v_tile": v_tile, "mxu_dtype": mxu_dtype,
    }


def prepare_encoder_states(encoder_states, prep):
    """(S, B, H) -> (B, S, H) in the MXU dtype, ONCE (hoisted out of decode loop)."""
    return jnp.transpose(jnp.asarray(encoder_states), (1, 0, 2)).astype(prep["mxu_dtype"])


# ----------------------------------------------------------------------------
# Wrapper: one decode step
# ----------------------------------------------------------------------------
def decoder_attention_forward(x_tokens, enc_bsh, hidden, cell, prep):
    del cell  # unused for GRU / RNN cell types (matches the PyTorch signature)
    L, H = prep["num_layers"], prep["hidden_size"]
    V, Vp, tv = prep["vocab"], prep["vocab_padded"], prep["v_tile"]
    cd = prep["mxu_dtype"]

    emb = prep["embedding"][x_tokens].astype(jnp.float32)            # (B, E) gather = glue
    B = emb.shape[0]
    S = enc_bsh.shape[1]
    h0 = hidden.astype(jnp.float32)
    n_vtiles = Vp // tv
    wf_bufs = max(1, min(3, n_vtiles))       # deeper lookahead for the streamed fc tiles

    def invariant(shape):
        zeros = (0,) * len(shape)
        return _spec(shape, lambda j, _z=zeros: _z, bufs=1)  # single-buffer grid-invariants

    in_arrays = (emb, enc_bsh, h0,
                 prep["w_gru"], prep["b_gru"],
                 prep["wc"], prep["bc"],
                 prep["wf"], prep["bf"])
    in_specs = [invariant(emb.shape), invariant(enc_bsh.shape), invariant(h0.shape),
                invariant(prep["w_gru"].shape), invariant(prep["b_gru"].shape),
                invariant(prep["wc"].shape), invariant(prep["bc"].shape),
                _spec((H, tv), lambda j: (0, j), bufs=wf_bufs),   # streamed fc weight
                _spec((1, tv), lambda j: (0, j), bufs=wf_bufs)]   # streamed fc bias

    out_shape = (jax.ShapeDtypeStruct((B, Vp), jnp.float32),
                 jax.ShapeDtypeStruct((L, B, H), jnp.float32),
                 jax.ShapeDtypeStruct((B, S), jnp.float32))
    out_specs = (pl.BlockSpec((B, Vp), lambda j: (0, 0)),  # resident; finalized in-kernel
                 pl.BlockSpec((L, B, H), lambda j: (0, 0, 0)),
                 pl.BlockSpec((B, S), lambda j: (0, 0)))

    # ---- explicit VMEM budget (from actual byte sums, capped at v7x 64 MiB) ----
    def nbytes(a):
        return int(a.size) * int(a.dtype.itemsize)

    resident_bytes = sum(nbytes(a) for a in in_arrays[:7])
    stream_bytes = max(wf_bufs, 2) * (H * tv * jnp.dtype(cd).itemsize + tv * 4)
    out_bytes = 4 * (B * Vp + L * B * H + B * S)
    scratch_bytes = 4 * (B * H + 2 * B)
    vmem_needed = 2 * resident_bytes + stream_bytes + 2 * out_bytes + scratch_bytes
    vmem_limit = int(min(max(vmem_needed + (8 << 20), 16 << 20), 64 << 20))

    flops = int(2 * B * (L * (2 * H) * (4 * H) + 2 * S * H + (2 * H) * H + H * Vp))
    transcendentals = int(B * (3 * L * H + S + H + Vp))
    bytes_accessed = int(sum(nbytes(a) for a in in_arrays) + out_bytes)

    kern = functools.partial(decoder_attention_kernel, num_layers=L)
    logp_pad, hidden_out, attn_w = pl.pallas_call(
        kern,
        out_shape=out_shape,
        grid_spec=pltpu.PrefetchScalarGridSpec(
            num_scalar_prefetch=0,
            grid=(n_vtiles,),
            in_specs=in_specs,
            out_specs=out_specs,
            scratch_shapes=[pltpu.VMEM((B, H), jnp.float32),   # cached tanh(concat)
                            pltpu.VMEM((B, 1), jnp.float32),   # online-lse max
                            pltpu.VMEM((B, 1), jnp.float32)],  # online-lse sumexp
        ),
        compiler_params=pltpu.CompilerParams(
            dimension_semantics=("arbitrary",),   # V axis carries the lse accumulator
            vmem_limit_bytes=vmem_limit),
        cost_estimate=pl.CostEstimate(flops=flops, transcendentals=transcendentals,
                                      bytes_accessed=bytes_accessed),
    )(*in_arrays)
    # TODO(synk): on v7x, split the vocab stream across both TensorCores
    #             (grid (2, n_vtiles//2), "parallel"+"arbitrary") with a cross-core
    #             LSE combine; left as single-core here.
    return logp_pad[:, :V], hidden_out, attn_w


# ----------------------------------------------------------------------------
# Pure-JAX reference (mirrors the PyTorch forward exactly) for validation
# ----------------------------------------------------------------------------
def decoder_attention_reference(x_tokens, encoder_states, hidden, p):
    emb = p["embedding"][x_tokens]
    L, H = hidden.shape[0], hidden.shape[2]
    x = emb
    new_h = []
    for l in range(L):
        gi = x @ p["wih"][l].T + p["bih"][l]
        gh = hidden[l] @ p["whh"][l].T + p["bhh"][l]
        i_r, i_z, i_n = gi[:, :H], gi[:, H:2 * H], gi[:, 2 * H:]
        h_r, h_z, h_n = gh[:, :H], gh[:, H:2 * H], gh[:, 2 * H:]
        r = jax.nn.sigmoid(i_r + h_r)
        z = jax.nn.sigmoid(i_z + h_z)
        n = jnp.tanh(i_n + r * h_n)
        x = (1.0 - z) * n + z * hidden[l]
        new_h.append(x)
    outputs = x
    scores = jnp.sum(outputs[None, :, :] * encoder_states, axis=2)       # (S, B)
    aw = jax.nn.softmax(scores.T, axis=1)                                # (B, S)
    context = jnp.einsum("bs,sbh->bh", aw, encoder_states)               # (B, H)
    cat = jnp.concatenate([outputs, context], axis=1)
    hcat = jnp.tanh(cat @ p["concat_w"].T + p["concat_b"])
    logits = hcat @ p["fc_w"].T + p["fc_b"]
    return jax.nn.log_softmax(logits, axis=1), jnp.stack(new_h, axis=0), aw


# ----------------------------------------------------------------------------
if __name__ == "__main__":
    # High-precision f32 matmuls on BOTH sides so the MXU-based kernel and the
    # reference agree tightly; the bf16 MXU-operand path is sanity-checked after.
    jax.config.update("jax_default_matmul_precision", "highest")

    def make_inputs(key, B, S, H, L, V):
        ks = jax.random.split(key, 12)
        scale = 0.1
        params = {
            "embedding": scale * jax.random.normal(ks[0], (V, H), jnp.float32),
            "wih":       scale * jax.random.normal(ks[1], (L, 3 * H, H), jnp.float32),
            "whh":       scale * jax.random.normal(ks[2], (L, 3 * H, H), jnp.float32),
            "bih":       scale * jax.random.normal(ks[3], (L, 3 * H), jnp.float32),
            "bhh":       scale * jax.random.normal(ks[4], (L, 3 * H), jnp.float32),
            "concat_w":  scale * jax.random.normal(ks[5], (H, 2 * H), jnp.float32),
            "concat_b":  scale * jax.random.normal(ks[6], (H,), jnp.float32),
            "fc_w":      scale * jax.random.normal(ks[7], (V, H), jnp.float32),
            "fc_b":      scale * jax.random.normal(ks[8], (V,), jnp.float32),
        }
        x_tokens = jax.random.randint(ks[9], (B,), 0, V, jnp.int32)
        encoder_states = jax.random.normal(ks[10], (S, B, H), jnp.float32)
        hidden = jax.random.normal(ks[11], (L, B, H), jnp.float32)
        return params, x_tokens, encoder_states, hidden

    # (B, S, H, L, V, v_tile): V=66 ~ len(output_index) of the transliteration
    # task (single wide tile); second case forces the multi-tile online-LSE path.
    test_cases = [(2, 8, 32, 2, 66, 512),
                  (4, 10, 64, 3, 300, 128)]

    key = jax.random.PRNGKey(0)
    for (B, S, H, L, V, vt) in test_cases:
        key, sub = jax.random.split(key)
        params, x_tokens, enc_states, hidden = make_inputs(sub, B, S, H, L, V)
        prep = prepare_decoder_params(params, v_tile=vt, mxu_dtype=jnp.float32)
        enc_bsh = prepare_encoder_states(enc_states, prep)   # hoisted, once per sequence
        logp, h_out, attn = decoder_attention_forward(x_tokens, enc_bsh, hidden, None, prep)
        jax.block_until_ready((logp, h_out, attn))
        logp_r, h_r, attn_r = decoder_attention_reference(x_tokens, enc_states, hidden, params)
        np.testing.assert_allclose(np.asarray(logp), np.asarray(logp_r), rtol=1e-4, atol=1e-5)
        np.testing.assert_allclose(np.asarray(h_out), np.asarray(h_r), rtol=1e-4, atol=1e-5)
        np.testing.assert_allclose(np.asarray(attn), np.asarray(attn_r), rtol=1e-4, atol=1e-5)

    # bf16 MXU-operand path (production default): loose sanity check only.
    B, S, H, L, V, _ = test_cases[0]
    key, sub = jax.random.split(key)
    params, x_tokens, enc_states, hidden = make_inputs(sub, B, S, H, L, V)
    prep16 = prepare_decoder_params(params)                  # defaults: v_tile=512, bf16
    enc16 = prepare_encoder_states(enc_states, prep16)
    logp16, h16, attn16 = decoder_attention_forward(x_tokens, enc16, hidden, None, prep16)
    jax.block_until_ready((logp16, h16, attn16))
    logp_r, _, _ = decoder_attention_reference(x_tokens, enc_states, hidden, params)
    np.testing.assert_allclose(np.asarray(logp16), np.asarray(logp_r), rtol=0, atol=1e-1)

    print("KERNEL_OK")
</pallas_src>

<mosaic_0001>
module attributes {stable_mosaic.version = 11 : i64} {
  func.func @decoder_attention_kernel(%arg0: i32, %arg1: memref<2x32xf32, #tpu.memory_space<vmem>>, %arg2: memref<2x8x32xf32, #tpu.memory_space<vmem>>, %arg3: memref<2x2x32xf32, #tpu.memory_space<vmem>>, %arg4: memref<2x64x128xf32, #tpu.memory_space<vmem>>, %arg5: memref<2x1x128xf32, #tpu.memory_space<vmem>>, %arg6: memref<64x32xf32, #tpu.memory_space<vmem>>, %arg7: memref<1x32xf32, #tpu.memory_space<vmem>>, %arg8: memref<32x512xf32, #tpu.memory_space<vmem>>, %arg9: memref<1x512xf32, #tpu.memory_space<vmem>>, %arg10: memref<2x512xf32, #tpu.memory_space<vmem>>, %arg11: memref<2x2x32xf32, #tpu.memory_space<vmem>>, %arg12: memref<2x8xf32, #tpu.memory_space<vmem>>, %arg13: memref<2x32xf32, #tpu.memory_space<vmem>>, %arg14: memref<2x1xf32, #tpu.memory_space<vmem>>, %arg15: memref<2x1xf32, #tpu.memory_space<vmem>>) attributes {dimension_semantics = [#tpu.dimension_semantics<arbitrary>], iteration_bounds = array<i64: 1>, scalar_prefetch = 0 : i64, scratch_operands = 3 : i64, tpu.core_type = #tpu.core_type<tc>, window_params = [{pipeline_mode = #tpu.pipeline_mode<synchronous>, transform_indices = @transform_0, window_bounds = array<i64: 2, 32>}, {pipeline_mode = #tpu.pipeline_mode<synchronous>, transform_indices = @transform_1, window_bounds = array<i64: 2, 8, 32>}, {pipeline_mode = #tpu.pipeline_mode<synchronous>, transform_indices = @transform_2, window_bounds = array<i64: 2, 2, 32>}, {pipeline_mode = #tpu.pipeline_mode<synchronous>, transform_indices = @transform_3, window_bounds = array<i64: 2, 64, 128>}, {pipeline_mode = #tpu.pipeline_mode<synchronous>, transform_indices = @transform_4, window_bounds = array<i64: 2, 1, 128>}, {pipeline_mode = #tpu.pipeline_mode<synchronous>, transform_indices = @transform_5, window_bounds = array<i64: 64, 32>}, {pipeline_mode = #tpu.pipeline_mode<synchronous>, transform_indices = @transform_6, window_bounds = array<i64: 1, 32>}, {pipeline_mode = #tpu.pipeline_mode<synchronous>, transform_indices = @transform_7, window_bounds = array<i64: 32, 512>}, {pipeline_mode = #tpu.pipeline_mode<synchronous>, transform_indices = @transform_8, window_bounds = array<i64: 1, 512>}, {pipeline_mode = #tpu.pipeline_mode<synchronous>, transform_indices = @transform_9, window_bounds = array<i64: 2, 512>}, {pipeline_mode = #tpu.pipeline_mode<synchronous>, transform_indices = @transform_10, window_bounds = array<i64: 2, 2, 32>}, {pipeline_mode = #tpu.pipeline_mode<synchronous>, transform_indices = @transform_11, window_bounds = array<i64: 2, 8>}]} {
    %c0_i32 = arith.constant 0 : i32
    %0 = arith.cmpi eq, %arg0, %c0_i32 : i32
    %1 = arith.extui %0 : i1 to i32
    %c0_i32_0 = arith.constant 0 : i32
    %2 = arith.cmpi ne, %1, %c0_i32_0 : i32
    scf.if %2 {
      %c0_19 = arith.constant 0 : index
      %c0_20 = arith.constant 0 : index
      %32 = vector.load %arg1[%c0_19, %c0_20] : memref<2x32xf32, #tpu.memory_space<vmem>>, vector<2x32xf32>
      %c0_21 = arith.constant 0 : index
      %c0_22 = arith.constant 0 : index
      %c0_23 = arith.constant 0 : index
      %33 = vector.load %arg3[%c0_21, %c0_22, %c0_23] : memref<2x2x32xf32, #tpu.memory_space<vmem>>, vector<1x2x32xf32>
      %34 = vector.shape_cast %33 : vector<1x2x32xf32> to vector<2x32xf32>
      %35 = tpu.concatenate %32, %34 in 1 : vector<2x32xf32>, vector<2x32xf32> -> vector<2x64xf32>
      %c0_24 = arith.constant 0 : index
      %c0_25 = arith.constant 0 : index
      %c0_26 = arith.constant 0 : index
      %36 = vector.load %arg4[%c0_24, %c0_25, %c0_26] : memref<2x64x128xf32, #tpu.memory_space<vmem>>, vector<1x64x128xf32>
      %37 = vector.shape_cast %36 : vector<1x64x128xf32> to vector<64x128xf32>
      %cst_27 = arith.constant dense<0.000000e+00> : vector<2x128xf32>
      %38 = tpu.matmul %35, %37, %cst_27 {dimension_numbers = #tpu.dot_dimension_numbers<[1], [0], [0], [1], [0, 0, 1, 1], [], []>, precision = #tpu.contract_precision<fp32>} : vector<2x64xf32>, vector<64x128xf32>, vector<2x128xf32> -> vector<2x128xf32>
      %c0_28 = arith.constant 0 : index
      %c0_29 = arith.constant 0 : index
      %c0_30 = arith.constant 0 : index
      %39 = vector.load %arg5[%c0_28, %c0_29, %c0_30] : memref<2x1x128xf32, #tpu.memory_space<vmem>>, vector<1x1x128xf32>
      %40 = vector.shape_cast %39 : vector<1x1x128xf32> to vector<1x128xf32>
      %41 = vector.broadcast %40 : vector<1x128xf32> to vector<2x128xf32>
      %42 = arith.addf %38, %41 : vector<2x128xf32>
      %43 = vector.extract_strided_slice %42 {offsets = [0, 0], sizes = [2, 32], strides = [1, 1]} : vector<2x128xf32> to vector<2x32xf32>
      %44 = arith.negf %43 : vector<2x32xf32>
      %45 = math.exp %44 : vector<2x32xf32>
      %cst_31 = arith.constant 1.000000e+00 : f32
      %46 = vector.broadcast %cst_31 : f32 to vector<2x32xf32>
      %47 = arith.addf %46, %45 : vector<2x32xf32>
      %48 = arith.divf %46, %47 : vector<2x32xf32>
      %49 = vector.extract_strided_slice %42 {offsets = [0, 32], sizes = [2, 32], strides = [1, 1]} : vector<2x128xf32> to vector<2x32xf32>
      %50 = arith.negf %49 : vector<2x32xf32>
      %51 = math.exp %50 : vector<2x32xf32>
      %cst_32 = arith.constant 1.000000e+00 : f32
      %52 = vector.broadcast %cst_32 : f32 to vector<2x32xf32>
      %53 = arith.addf %52, %51 : vector<2x32xf32>
      %54 = arith.divf %52, %53 : vector<2x32xf32>
      %55 = vector.extract_strided_slice %42 {offsets = [0, 64], sizes = [2, 32], strides = [1, 1]} : vector<2x128xf32> to vector<2x32xf32>
      %56 = vector.extract_strided_slice %42 {offsets = [0, 96], sizes = [2, 32], strides = [1, 1]} : vector<2x128xf32> to vector<2x32xf32>
      %57 = arith.mulf %48, %56 : vector<2x32xf32>
      %58 = arith.addf %55, %57 : vector<2x32xf32>
      %59 = math.tanh %58 : vector<2x32xf32>
      %cst_33 = arith.constant 1.000000e+00 : f32
      %60 = vector.broadcast %cst_33 : f32 to vector<2x32xf32>
      %61 = arith.subf %60, %54 : vector<2x32xf32>
      %62 = arith.mulf %61, %59 : vector<2x32xf32>
      %63 = arith.mulf %54, %34 : vector<2x32xf32>
      %64 = arith.addf %62, %63 : vector<2x32xf32>
      %c0_34 = arith.constant 0 : index
      %c0_35 = arith.constant 0 : index
      %c0_36 = arith.constant 0 : index
      %65 = vector.load %arg11[%c0_34, %c0_35, %c0_36] : memref<2x2x32xf32, #tpu.memory_space<vmem>>, vector<1x2x32xf32>
      %66 = vector.shape_cast %65 : vector<1x2x32xf32> to vector<2x32xf32>
      %67 = vector.shape_cast %64 : vector<2x32xf32> to vector<1x2x32xf32>
      tpu.vector_store %arg11[%c0_34, %c0_35, %c0_36], %67 {strides = array<i32>} : memref<2x2x32xf32, #tpu.memory_space<vmem>>, vector<1x2x32xf32>,
      %c1 = arith.constant 1 : index
      %c0_37 = arith.constant 0 : index
      %c0_38 = arith.constant 0 : index
      %68 = vector.load %arg3[%c1, %c0_37, %c0_38] : memref<2x2x32xf32, #tpu.memory_space<vmem>>, vector<1x2x32xf32>
      %69 = vector.shape_cast %68 : vector<1x2x32xf32> to vector<2x32xf32>
      %70 = tpu.concatenate %64, %69 in 1 : vector<2x32xf32>, vector<2x32xf32> -> vector<2x64xf32>
      %c1_39 = arith.constant 1 : index
      %c0_40 = arith.constant 0 : index
      %c0_41 = arith.constant 0 : index
      %71 = vector.load %arg4[%c1_39, %c0_40, %c0_41] : memref<2x64x128xf32, #tpu.memory_space<vmem>>, vector<1x64x128xf32>
      %72 = vector.shape_cast %71 : vector<1x64x128xf32> to vector<64x128xf32>
      %cst_42 = arith.constant dense<0.000000e+00> : vector<2x128xf32>
      %73 = tpu.matmul %70, %72, %cst_42 {dimension_numbers = #tpu.dot_dimension_numbers<[1], [0], [0], [1], [0, 0, 1, 1], [], []>, precision = #tpu.contract_precision<fp32>} : vector<2x64xf32>, vector<64x128xf32>, vector<2x128xf32> -> vector<2x128xf32>
      %c1_43 = arith.constant 1 : index
      %c0_44 = arith.constant 0 : index
      %c0_45 = arith.constant 0 : index
      %74 = vector.load %arg5[%c1_43, %c0_44, %c0_45] : memref<2x1x128xf32, #tpu.memory_space<vmem>>, vector<1x1x128xf32>
      %75 = vector.shape_cast %74 : vector<1x1x128xf32> to vector<1x128xf32>
      %76 = vector.broadcast %75 : vector<1x128xf32> to vector<2x128xf32>
      %77 = arith.addf %73, %76 : vector<2x128xf32>
      %78 = vector.extract_strided_slice %77 {offsets = [0, 0], sizes = [2, 32], strides = [1, 1]} : vector<2x128xf32> to vector<2x32xf32>
      %79 = arith.negf %78 : vector<2x32xf32>
      %80 = math.exp %79 : vector<2x32xf32>
      %cst_46 = arith.constant 1.000000e+00 : f32
      %81 = vector.broadcast %cst_46 : f32 to vector<2x32xf32>
      %82 = arith.addf %81, %80 : vector<2x32xf32>
      %83 = arith.divf %81, %82 : vector<2x32xf32>
      %84 = vector.extract_strided_slice %77 {offsets = [0, 32], sizes = [2, 32], strides = [1, 1]} : vector<2x128xf32> to vector<2x32xf32>
      %85 = arith.negf %84 : vector<2x32xf32>
      %86 = math.exp %85 : vector<2x32xf32>
      %cst_47 = arith.constant 1.000000e+00 : f32
      %87 = vector.broadcast %cst_47 : f32 to vector<2x32xf32>
      %88 = arith.addf %87, %86 : vector<2x32xf32>
      %89 = arith.divf %87, %88 : vector<2x32xf32>
      %90 = vector.extract_strided_slice %77 {offsets = [0, 64], sizes = [2, 32], strides = [1, 1]} : vector<2x128xf32> to vector<2x32xf32>
      %91 = vector.extract_strided_slice %77 {offsets = [0, 96], sizes = [2, 32], strides = [1, 1]} : vector<2x128xf32> to vector<2x32xf32>
      %92 = arith.mulf %83, %91 : vector<2x32xf32>
      %93 = arith.addf %90, %92 : vector<2x32xf32>
      %94 = math.tanh %93 : vector<2x32xf32>
      %cst_48 = arith.constant 1.000000e+00 : f32
      %95 = vector.broadcast %cst_48 : f32 to vector<2x32xf32>
      %96 = arith.subf %95, %89 : vector<2x32xf32>
      %97 = arith.mulf %96, %94 : vector<2x32xf32>
      %98 = arith.mulf %89, %69 : vector<2x32xf32>
      %99 = arith.addf %97, %98 : vector<2x32xf32>
      %c1_49 = arith.constant 1 : index
      %c0_50 = arith.constant 0 : index
      %c0_51 = arith.constant 0 : index
      %100 = vector.load %arg11[%c1_49, %c0_50, %c0_51] : memref<2x2x32xf32, #tpu.memory_space<vmem>>, vector<1x2x32xf32>
      %101 = vector.shape_cast %100 : vector<1x2x32xf32> to vector<2x32xf32>
      %102 = vector.shape_cast %99 : vector<2x32xf32> to vector<1x2x32xf32>
      tpu.vector_store %arg11[%c1_49, %c0_50, %c0_51], %102 {strides = array<i32>} : memref<2x2x32xf32, #tpu.memory_space<vmem>>, vector<1x2x32xf32>,
      %c0_52 = arith.constant 0 : index
      %c0_53 = arith.constant 0 : index
      %c0_54 = arith.constant 0 : index
      %103 = vector.load %arg2[%c0_52, %c0_53, %c0_54] : memref<2x8x32xf32, #tpu.memory_space<vmem>>, vector<2x8x32xf32>
      %104 = vector.shape_cast %99 : vector<2x32xf32> to vector<2x1x32xf32>
      "tpu.trace_start"() <{level = 10 : i32, message = "bqh,bkh->bqk"}> : () -> ()
      %cst_55 = arith.constant dense<0.000000e+00> : vector<2x1x8xf32>
      %105 = tpu.matmul %104, %103, %cst_55 {dimension_numbers = #tpu.dot_dimension_numbers<[2], [2], [1], [1], [0, 0, 0, 1, 1, 1], [0], [0]>, precision = #tpu.contract_precision<fp32>} : vector<2x1x32xf32>, vector<2x8x32xf32>, vector<2x1x8xf32> -> vector<2x1x8xf32>
      "tpu.trace_stop"() : () -> ()
      %cst_56 = arith.constant dense<0xFF800000> : vector<2x1xf32>
      %106 = vector.multi_reduction <maximumf>, %105, %cst_56 [2] : vector<2x1x8xf32> to vector<2x1xf32>
      %107 = vector.shape_cast %106 : vector<2x1xf32> to vector<2x1x1xf32>
      %108 = vector.broadcast %107 : vector<2x1x1xf32> to vector<2x1x8xf32>
      %109 = arith.subf %105, %108 : vector<2x1x8xf32>
      %110 = math.exp %109 : vector<2x1x8xf32>
      %cst_57 = arith.constant dense<0.000000e+00> : vector<2x1xf32>
      %111 = vector.multi_reduction <add>, %110, %cst_57 [2] : vector<2x1x8xf32> to vector<2x1xf32>
      %112 = vector.shape_cast %111 : vector<2x1xf32> to vector<2x1x1xf32>
      %113 = tpu.reciprocal %112 : vector<2x1x1xf32> -> vector<2x1x1xf32>
      %114 = vector.broadcast %113 : vector<2x1x1xf32> to vector<2x1x8xf32>
      %115 = arith.mulf %110, %114 : vector<2x1x8xf32>
      %116 = vector.shape_cast %115 : vector<2x1x8xf32> to vector<2x8xf32>
      %c0_58 = arith.constant 0 : index
      %c0_59 = arith.constant 0 : index
      %117 = vector.load %arg12[%c0_58, %c0_59] : memref<2x8xf32, #tpu.memory_space<vmem>>, vector<2x8xf32>
      tpu.vector_store %arg12[%c0_58, %c0_59], %116 {strides = array<i32>} : memref<2x8xf32, #tpu.memory_space<vmem>>, vector<2x8xf32>,
      "tpu.trace_start"() <{level = 10 : i32, message = "bqk,bkh->bqh"}> : () -> ()
      %cst_60 = arith.constant dense<0.000000e+00> : vector<2x1x32xf32>
      %118 = tpu.matmul %115, %103, %cst_60 {dimension_numbers = #tpu.dot_dimension_numbers<[2], [1], [1], [2], [0, 0, 0, 1, 1, 2], [0], [0]>, precision = #tpu.contract_precision<fp32>} : vector<2x1x8xf32>, vector<2x8x32xf32>, vector<2x1x32xf32> -> vector<2x1x32xf32>
      "tpu.trace_stop"() : () -> ()
      %119 = vector.shape_cast %118 : vector<2x1x32xf32> to vector<2x32xf32>
      %120 = tpu.concatenate %99, %119 in 1 : vector<2x32xf32>, vector<2x32xf32> -> vector<2x64xf32>
      %c0_61 = arith.constant 0 : index
      %c0_62 = arith.constant 0 : index
      %121 = vector.load %arg6[%c0_61, %c0_62] : memref<64x32xf32, #tpu.memory_space<vmem>>, vector<64x32xf32>
      %cst_63 = arith.constant dense<0.000000e+00> : vector<2x32xf32>
      %122 = tpu.matmul %120, %121, %cst_63 {dimension_numbers = #tpu.dot_dimension_numbers<[1], [0], [0], [1], [0, 0, 1, 1], [], []>, precision = #tpu.contract_precision<fp32>} : vector<2x64xf32>, vector<64x32xf32>, vector<2x32xf32> -> vector<2x32xf32>
      %c0_64 = arith.constant 0 : index
      %c0_65 = arith.constant 0 : index
      %123 = vector.load %arg7[%c0_64, %c0_65] : memref<1x32xf32, #tpu.memory_space<vmem>>, vector<1x32xf32>
      %124 = vector.broadcast %123 : vector<1x32xf32> to vector<2x32xf32>
      %125 = arith.addf %122, %124 : vector<2x32xf32>
      %126 = math.tanh %125 : vector<2x32xf32>
      %c0_66 = arith.constant 0 : index
      %c0_67 = arith.constant 0 : index
      %127 = vector.load %arg13[%c0_66, %c0_67] : memref<2x32xf32, #tpu.memory_space<vmem>>, vector<2x32xf32>
      tpu.vector_store %arg13[%c0_66, %c0_67], %126 {strides = array<i32>} : memref<2x32xf32, #tpu.memory_space<vmem>>, vector<2x32xf32>,
      %cst_68 = arith.constant -1.000000e+30 : f32
      %128 = vector.broadcast %cst_68 : f32 to vector<2x1xf32>
      %c0_69 = arith.constant 0 : index
      %c0_70 = arith.constant 0 : index
      %129 = vector.load %arg14[%c0_69, %c0_70] : memref<2x1xf32, #tpu.memory_space<vmem>>, vector<2x1xf32>
      tpu.vector_store %arg14[%c0_69, %c0_70], %128 {strides = array<i32>} : memref<2x1xf32, #tpu.memory_space<vmem>>, vector<2x1xf32>,
      %cst_71 = arith.constant 0.000000e+00 : f32
      %130 = vector.broadcast %cst_71 : f32 to vector<2x1xf32>
      %c0_72 = arith.constant 0 : index
      %c0_73 = arith.constant 0 : index
      %131 = vector.load %arg15[%c0_72, %c0_73] : memref<2x1xf32, #tpu.memory_space<vmem>>, vector<2x1xf32>
      tpu.vector_store %arg15[%c0_72, %c0_73], %130 {strides = array<i32>} : memref<2x1xf32, #tpu.memory_space<vmem>>, vector<2x1xf32>,
    } else {
    }
    %c0 = arith.constant 0 : index
    %c0_1 = arith.constant 0 : index
    %3 = vector.load %arg13[%c0, %c0_1] : memref<2x32xf32, #tpu.memory_space<vmem>>, vector<2x32xf32>
    %c0_2 = arith.constant 0 : index
    %c0_3 = arith.constant 0 : index
    %4 = vector.load %arg8[%c0_2, %c0_3] : memref<32x512xf32, #tpu.memory_space<vmem>>, vector<32x512xf32>
    %cst = arith.constant dense<0.000000e+00> : vector<2x512xf32>
    %5 = tpu.matmul %3, %4, %cst {dimension_numbers = #tpu.dot_dimension_numbers<[1], [0], [0], [1], [0, 0, 1, 1], [], []>, precision = #tpu.contract_precision<fp32>} : vector<2x32xf32>, vector<32x512xf32>, vector<2x512xf32> -> vector<2x512xf32>
    %c0_4 = arith.constant 0 : index
    %c0_5 = arith.constant 0 : index
    %6 = vector.load %arg9[%c0_4, %c0_5] : memref<1x512xf32, #tpu.memory_space<vmem>>, vector<1x512xf32>
    %7 = vector.broadcast %6 : vector<1x512xf32> to vector<2x512xf32>
    %8 = arith.addf %5, %7 : vector<2x512xf32>
    %c512_i32 = arith.constant 512 : i32
    %9 = arith.muli %arg0, %c512_i32 : i32
    %10 = tpu.assume_multiple %9, 128 : i32
    %c0_6 = arith.constant 0 : index
    %11 = arith.index_cast %10 : i32 to index
    %12 = vector.load %arg10[%c0_6, %11] : memref<2x512xf32, #tpu.memory_space<vmem>>, vector<2x512xf32>
    tpu.vector_store %arg10[%c0_6, %11], %8 {strides = array<i32>} : memref<2x512xf32, #tpu.memory_space<vmem>>, vector<2x512xf32>,
    %c0_7 = arith.constant 0 : index
    %c0_8 = arith.constant 0 : index
    %13 = vector.load %arg14[%c0_7, %c0_8] : memref<2x1xf32, #tpu.memory_space<vmem>>, vector<2x1xf32>
    %cst_9 = arith.constant dense<0xFF800000> : vector<2xf32>
    %14 = vector.multi_reduction <maximumf>, %8, %cst_9 [1] : vector<2x512xf32> to vector<2xf32>
    %15 = vector.shape_cast %14 : vector<2xf32> to vector<2x1xf32>
    %16 = arith.maximumf %13, %15 : vector<2x1xf32>
    %c0_10 = arith.constant 0 : index
    %c0_11 = arith.constant 0 : index
    %17 = vector.load %arg15[%c0_10, %c0_11] : memref<2x1xf32, #tpu.memory_space<vmem>>, vector<2x1xf32>
    %18 = arith.subf %13, %16 : vector<2x1xf32>
    %19 = math.exp %18 : vector<2x1xf32>
    %20 = arith.mulf %17, %19 : vector<2x1xf32>
    %21 = vector.broadcast %16 : vector<2x1xf32> to vector<2x512xf32>
    %22 = arith.subf %8, %21 : vector<2x512xf32>
    %23 = math.exp %22 : vector<2x512xf32>
    %cst_12 = arith.constant dense<0.000000e+00> : vector<2xf32>
    %24 = vector.multi_reduction <add>, %23, %cst_12 [1] : vector<2x512xf32> to vector<2xf32>
    %25 = vector.shape_cast %24 : vector<2xf32> to vector<2x1xf32>
    %26 = arith.addf %20, %25 : vector<2x1xf32>
    %c0_13 = arith.constant 0 : index
    %c0_14 = arith.constant 0 : index
    %27 = vector.load %arg15[%c0_13, %c0_14] : memref<2x1xf32, #tpu.memory_space<vmem>>, vector<2x1xf32>
    tpu.vector_store %arg15[%c0_13, %c0_14], %26 {strides = array<i32>} : memref<2x1xf32, #tpu.memory_space<vmem>>, vector<2x1xf32>,
    %c0_15 = arith.constant 0 : index
    %c0_16 = arith.constant 0 : index
    %28 = vector.load %arg14[%c0_15, %c0_16] : memref<2x1xf32, #tpu.memory_space<vmem>>, vector<2x1xf32>
    tpu.vector_store %arg14[%c0_15, %c0_16], %16 {strides = array<i32>} : memref<2x1xf32, #tpu.memory_space<vmem>>, vector<2x1xf32>,
    %c0_i32_17 = arith.constant 0 : i32
    %29 = arith.cmpi eq, %arg0, %c0_i32_17 : i32
    %30 = arith.extui %29 : i1 to i32
    %c0_i32_18 = arith.constant 0 : i32
    %31 = arith.cmpi ne, %30, %c0_i32_18 : i32
    scf.if %31 {
      %c0_19 = arith.constant 0 : index
      %c0_20 = arith.constant 0 : index
      %32 = vector.load %arg14[%c0_19, %c0_20] : memref<2x1xf32, #tpu.memory_space<vmem>>, vector<2x1xf32>
      %c0_21 = arith.constant 0 : index
      %c0_22 = arith.constant 0 : index
      %33 = vector.load %arg15[%c0_21, %c0_22] : memref<2x1xf32, #tpu.memory_space<vmem>>, vector<2x1xf32>
      %34 = math.log %33 : vector<2x1xf32>
      %35 = arith.addf %32, %34 : vector<2x1xf32>
      %c0_23 = arith.constant 0 : index
      %c0_24 = arith.constant 0 : index
      %36 = vector.load %arg10[%c0_23, %c0_24] : memref<2x512xf32, #tpu.memory_space<vmem>>, vector<2x512xf32>
      %37 = vector.broadcast %35 : vector<2x1xf32> to vector<2x512xf32>
      %38 = arith.subf %36, %37 : vector<2x512xf32>
      %c0_25 = arith.constant 0 : index
      %c0_26 = arith.constant 0 : index
      %39 = vector.load %arg10[%c0_25, %c0_26] : memref<2x512xf32, #tpu.memory_space<vmem>>, vector<2x512xf32>
      tpu.vector_store %arg10[%c0_25, %c0_26], %38 {strides = array<i32>} : memref<2x512xf32, #tpu.memory_space<vmem>>, vector<2x512xf32>,
    } else {
    }
    return
  }
  func.func @transform_0(%arg0: i32) -> (i32, i32) {
    %c0_i32 = arith.constant 0 : i32
    %c0_i32_0 = arith.constant 0 : i32
    %c0_i32_1 = arith.constant 0 : i32
    return %c0_i32, %c0_i32_0 : i32, i32
  }
  func.func @transform_1(%arg0: i32) -> (i32, i32, i32) {
    %c0_i32 = arith.constant 0 : i32
    %c0_i32_0 = arith.constant 0 : i32
    %c0_i32_1 = arith.constant 0 : i32
    %c0_i32_2 = arith.constant 0 : i32
    return %c0_i32, %c0_i32_0, %c0_i32_1 : i32, i32, i32
  }
  func.func @transform_2(%arg0: i32) -> (i32, i32, i32) {
    %c0_i32 = arith.constant 0 : i32
    %c0_i32_0 = arith.constant 0 : i32
    %c0_i32_1 = arith.constant 0 : i32
    %c0_i32_2 = arith.constant 0 : i32
    return %c0_i32, %c0_i32_0, %c0_i32_1 : i32, i32, i32
  }
  func.func @transform_3(%arg0: i32) -> (i32, i32, i32) {
    %c0_i32 = arith.constant 0 : i32
    %c0_i32_0 = arith.constant 0 : i32
    %c0_i32_1 = arith.constant 0 : i32
    %c0_i32_2 = arith.constant 0 : i32
    return %c0_i32, %c0_i32_0, %c0_i32_1 : i32, i32, i32
  }
  func.func @transform_4(%arg0: i32) -> (i32, i32, i32) {
    %c0_i32 = arith.constant 0 : i32
    %c0_i32_0 = arith.constant 0 : i32
    %c0_i32_1 = arith.constant 0 : i32
    %c0_i32_2 = arith.constant 0 : i32
    return %c0_i32, %c0_i32_0, %c0_i32_1 : i32, i32, i32
  }
  func.func @transform_5(%arg0: i32) -> (i32, i32) {
    %c0_i32 = arith.constant 0 : i32
    %c0_i32_0 = arith.constant 0 : i32
    %c0_i32_1 = arith.constant 0 : i32
    return %c0_i32, %c0_i32_0 : i32, i32
  }
  func.func @transform_6(%arg0: i32) -> (i32, i32) {
    %c0_i32 = arith.constant 0 : i32
    %c0_i32_0 = arith.constant 0 : i32
    %c0_i32_1 = arith.constant 0 : i32
    return %c0_i32, %c0_i32_0 : i32, i32
  }
  func.func @transform_7(%arg0: i32) -> (i32, i32) {
    %c0_i32 = arith.constant 0 : i32
    %c0_i32_0 = arith.constant 0 : i32
    return %c0_i32, %arg0 : i32, i32
  }
  func.func @transform_8(%arg0: i32) -> (i32, i32) {
    %c0_i32 = arith.constant 0 : i32
    %c0_i32_0 = arith.constant 0 : i32
    return %c0_i32, %arg0 : i32, i32
  }
  func.func @transform_9(%arg0: i32) -> (i32, i32) {
    %c0_i32 = arith.constant 0 : i32
    %c0_i32_0 = arith.constant 0 : i32
    %c0_i32_1 = arith.constant 0 : i32
    return %c0_i32, %c0_i32_0 : i32, i32
  }
  func.func @transform_10(%arg0: i32) -> (i32, i32, i32) {
    %c0_i32 = arith.constant 0 : i32
    %c0_i32_0 = arith.constant 0 : i32
    %c0_i32_1 = arith.constant 0 : i32
    %c0_i32_2 = arith.constant 0 : i32
    return %c0_i32, %c0_i32_0, %c0_i32_1 : i32, i32, i32
  }
  func.func @transform_11(%arg0: i32) -> (i32, i32) {
    %c0_i32 = arith.constant 0 : i32
    %c0_i32_0 = arith.constant 0 : i32
    %c0_i32_1 = arith.constant 0 : i32
    return %c0_i32, %c0_i32_0 : i32, i32
  }
}

</mosaic_0001>

<llo_original>
// kernel: tpu_custom_call.1
$region0: #{tpu_custom_call.1}
  #allocation0 [shape = 'u32[]', space=smem, size = 0x4, offset = 0x4, fixed_abs, tag = 'smem constant byte address 0x4 - core index']
  #allocation1 [shape = 'u32[144,128]{1,0:T(1,128)}', space=vmem, size = 0x12000, scoped, tag = 'internal scratch']
  #allocation2 [shape = 'f32[2,32]{1,0:T(2,128)}', space=vmem, size = 0x400, scoped, tag = 'scratch operand']
  #allocation3 [shape = 'f32[2,1]{1,0:T(2,128)}', space=vmem, size = 0x400, scoped, tag = 'scratch operand']
  #allocation4 [shape = 'f32[2,1]{1,0:T(2,128)}', space=vmem, size = 0x400, scoped, tag = 'scratch operand']
  %s0 = inlined_call_operand.vmem [shape: f32[2,32], index: 0, kind: input, shape index: {}]
  %s1 = inlined_call_operand.vmem [shape: f32[2,8,32], index: 1, kind: input, shape index: {}]
  %s2 = inlined_call_operand.vmem [shape: f32[2,2,32], index: 2, kind: input, shape index: {}]
  %s3 = inlined_call_operand.hbm [shape: f32[2,64,128], index: 3, kind: input, shape index: {}]
  %s4 = inlined_call_operand.vmem [shape: f32[2,1,128], index: 4, kind: input, shape index: {}]
  %s5 = inlined_call_operand.vmem [shape: f32[64,32], index: 5, kind: input, shape index: {}]
  %s6 = inlined_call_operand.vmem [shape: f32[1,32], index: 6, kind: input, shape index: {}]
  %s7 = inlined_call_operand.hbm [shape: f32[32,512], index: 7, kind: input, shape index: {}]
  %s8 = inlined_call_operand.vmem [shape: f32[1,512], index: 8, kind: input, shape index: {}]
  %s9 = inlined_call_operand.hbm [shape: f32[2,512], index: 9, kind: output, shape index: {0}]
  %s10 = inlined_call_operand.hbm [shape: f32[2,2,32], index: 10, kind: output, shape index: {1}]
  %s11 = inlined_call_operand.hbm [shape: f32[2,8], index: 11, kind: output, shape index: {2}]
  %12 = xla_tuple %s9, %s10, %s11
  %s13 = sld [smem:[#allocation0]]
  $region78: #{tpu_custom_call.1} parent=0
    _
  %s15 = ssub.s32 1, %s13
  %s16 = scalar_select 0, %s15, %s13
  $region1: #{tpu_custom_call.1} parent=0
    #allocation5 [shape = 'u8[65536]{0}', space=vmem, size = 0x10000, scoped, tag = 'input window, operand 3, single buffered']
    #allocation6 [shape = 's32[1]{0}', space=sflag, size = 0x4, scoped, tag = 'scoped memory for tpu_custom_call.1']
    #allocation7 [shape = 's32[1]{0}', space=sflag, size = 0x4, scoped, tag = 'scoped memory for tpu_custom_call.1']
    #allocation8 [shape = 'u8[65536]{0}', space=vmem, size = 0x10000, scoped, tag = 'input window, operand 7, single buffered']
    #allocation9 [shape = 's32[1]{0}', space=sflag, size = 0x4, scoped, tag = 'scoped memory for tpu_custom_call.1']
    #allocation10 [shape = 'u8[4096]{0}', space=vmem, size = 0x1000, scoped, tag = 'output window, operand 0, single buffered']
    #allocation11 [shape = 'u8[2048]{0}', space=vmem, size = 0x800, scoped, tag = 'output window, operand 1, single buffered']
    #allocation12 [shape = 's32[1]{0}', space=sflag, size = 0x4, scoped, tag = 'scoped memory for tpu_custom_call.1']
    #allocation13 [shape = 'u8[1024]{0}', space=vmem, size = 0x400, scoped, tag = 'output window, operand 2, single buffered']
    %17 = vsyncpa [#allocation6], 0
    %18 = vsyncpa [#allocation9], 0
    %19 = vsyncpa [#allocation7], 0
    %20 = vsyncpa [#allocation12], 0
    // Predicated region
    $region2: #{tpu_custom_call.1} parent=1 // pred_check
      _
    $region3: #{tpu_custom_call.1} parent=1 // pred_check_branch
      %22 = sbr.rel (0) target = $region5
    $region4: #{tpu_custom_call.1} parent=1 // pred_region
      _
    $region5: #{tpu_custom_call.1} parent=1 // pred_fallthru
      _
    // Predicated region
    $region6: #{tpu_custom_call.1} parent=1 // pred_check
      _
    $region7: #{tpu_custom_call.1} parent=1 // pred_check_branch
      %24 = sbr.rel (0) target = $region9
    $region8: #{tpu_custom_call.1} parent=1 // pred_region
      _
    $region9: #{tpu_custom_call.1} parent=1 // pred_fallthru
      _
    // Predicated region
    $region10: #{tpu_custom_call.1} parent=1 // pred_check
      _
    $region11: #{tpu_custom_call.1} parent=1 // pred_check_branch
      %26 = sbr.rel (0) target = $region13
    $region12: #{tpu_custom_call.1} parent=1 // pred_region
      _
    $region13: #{tpu_custom_call.1} parent=1 // pred_fallthru
      _
    // Predicated region
    $region14: #{tpu_custom_call.1} parent=1 // pred_check
      _
    $region15: #{tpu_custom_call.1} parent=1 // pred_check_branch
      %28 = sbr.rel (0) target = $region17
    $region16: #{tpu_custom_call.1} parent=1 // pred_region
      %s30 = ssub.s32 2048, 2048
      %31 = vsyncadd [#allocation6], %s30
      %s32 = sshll.u32 [#allocation5], 4
      %s33 = int_to_ptr.vmem [resolvable:$true] %s32
      %38 = dma.hbm_to_vmem [thread:$0]  %s3, 2048, %s33, [#allocation6], 128, 128, 8
    $region17: #{tpu_custom_call.1} parent=1 // pred_fallthru
      _
    // Predicated region
    $region18: #{tpu_custom_call.1} parent=1 // pred_check
      _
    $region19: #{tpu_custom_call.1} parent=1 // pred_check_branch
      %40 = sbr.rel (0) target = $region21
    $region20: #{tpu_custom_call.1} parent=1 // pred_region
      _
    $region21: #{tpu_custom_call.1} parent=1 // pred_fallthru
      _
    // Predicated region
    $region22: #{tpu_custom_call.1} parent=1 // pred_check
      _
    $region23: #{tpu_custom_call.1} parent=1 // pred_check_branch
      %42 = sbr.rel (0) target = $region25
    $region24: #{tpu_custom_call.1} parent=1 // pred_region
      _
    $region25: #{tpu_custom_call.1} parent=1 // pred_fallthru
      _
    // Predicated region
    $region26: #{tpu_custom_call.1} parent=1 // pred_check
      _
    $region27: #{tpu_custom_call.1} parent=1 // pred_check_branch
      %44 = sbr.rel (0) target = $region29
    $region28: #{tpu_custom_call.1} parent=1 // pred_region
      _
    $region29: #{tpu_custom_call.1} parent=1 // pred_fallthru
      _
    // Predicated region
    $region30: #{tpu_custom_call.1} parent=1 // pred_check
      _
    $region31: #{tpu_custom_call.1} parent=1 // pred_check_branch
      %46 = sbr.rel (0) target = $region33
    $region32: #{tpu_custom_call.1} parent=1 // pred_region
      %s48 = ssub.s32 2048, 2048
      %49 = vsyncadd [#allocation9], %s48
      %s50 = sshll.u32 [#allocation8], 4
      %s51 = int_to_ptr.vmem [resolvable:$true] %s50
      %56 = dma.hbm_to_vmem [thread:$0]  %s7, 2048, %s51, [#allocation9], 512, 512, 32
    $region33: #{tpu_custom_call.1} parent=1 // pred_fallthru
      _
    // Predicated region
    $region34: #{tpu_custom_call.1} parent=1 // pred_check
      _
    $region35: #{tpu_custom_call.1} parent=1 // pred_check_branch
      %58 = sbr.rel (0) target = $region37
    $region36: #{tpu_custom_call.1} parent=1 // pred_region
      _
    $region37: #{tpu_custom_call.1} parent=1 // pred_fallthru
      _
    // Predicated region
    $region38: #{tpu_custom_call.1} parent=1 // pred_check
      _
    $region39: #{tpu_custom_call.1} parent=1 // pred_check_branch
      %60 = sbr.rel (0) target = $region41
    $region40: #{tpu_custom_call.1} parent=1 // pred_region
      %61 = dma.done [#allocation6], 2048
    $region41: #{tpu_custom_call.1} parent=1 // pred_fallthru
      _
    // Predicated region
    $region42: #{tpu_custom_call.1} parent=1 // pred_check
      _
    $region43: #{tpu_custom_call.1} parent=1 // pred_check_branch
      %63 = sbr.rel (0) target = $region45
    $region44: #{tpu_custom_call.1} parent=1 // pred_region
      %64 = dma.done [#allocation9], 2048
    $region45: #{tpu_custom_call.1} parent=1 // pred_fallthru
      _
    %p65 = scmp.eq.s32.totalorder 0, 0
    // Predicated region
    $region46: #{tpu_custom_call.1} parent=1 // pred_check
      %p66 = pneg %p65
    $region47: #{tpu_custom_call.1} parent=1 // pred_check_branch
      %68 = sbr.rel (%p66) target = $region49
    $region48: #{tpu_custom_call.1} parent=1 // pred_region
      %v69 = vld [vmem:[%s0] sm:$0x3]
      %v70 = vld [vmem:[%s2] sm:$0x3]
      %72 = vrot.lane.b32.xlu0 %v70, 32
      %v73 = vpop.permute.xlu0 %72
      %vm75 = vcmask 261120
      %v76 = vsel %vm75, %v69, %v73
      %v77 = vld [vmem:[#allocation5] sm:$0xff]
      %v78 = vld [vmem:[#allocation5 + $0x8] sm:$0xff]
      %v79 = vld [vmem:[#allocation5 + $0x10] sm:$0xff]
      %v80 = vld [vmem:[#allocation5 + $0x18] sm:$0xff]
      %v81 = vld [vmem:[#allocation5 + $0x20] sm:$0xff]
      %v82 = vld [vmem:[#allocation5 + $0x28] sm:$0xff]
      %v83 = vld [vmem:[#allocation5 + $0x30] sm:$0xff]
      %v84 = vld [vmem:[#allocation5 + $0x38] sm:$0xff]
      %v85 = vld [vmem:[%s4] sm:$0x1]
      %v87 = vlaneseq
      %v88 = vshrl.u32 %v87, 7
      %v89 = vsub.s32 0, %v88
      %v90 = vrot.slane %v85, %v89
      %vm92 = vcmask 523264
      %v94 = vsel %vm92, %v76, 0
      %96 = vmatprep.subr.mxu0 0.0
      %97 = vmatpush1.msra.mxu0 0.0
      %98 = vmatprep.subr.mxu0 0.0
      %99 = vmatpush1.msra.mxu0 0.0
      %100 = vmatprep.subr.mxu0 0.0
      %101 = vmatpush1.msra.mxu0 0.0
      %102 = vmatprep.subr.mxu0 0.0
      %103 = vmatpush1.msra.mxu0 0.0
      %104 = vmatprep.subr.mxu0 0.0
      %105 = vmatpush1.msra.mxu0 0.0
      %106 = vmatprep.subr.mxu0 0.0
      %107 = vmatpush1.msra.mxu0 0.0
      %108 = vmatprep.subr.mxu0 0.0
      %109 = vmatpush1.msra.mxu0 0.0
      %110 = vmatprep.subr.mxu0 0.0
      %111 = vmatpush1.msra.mxu0 0.0
      %112 = vmatprep.subr.mxu0 0.0
      %v113 = vand.u32 %v84, 4294901760
      %114 = vmatpush1.msra.mxu0 %v113
      %115 = vmatprep.subr.mxu0 0.0
      %v116 = vand.u32 %v83, 4294901760
      %117 = vmatpush1.msra.mxu0 %v116
      %118 = vmatprep.subr.mxu0 0.0
      %v119 = vand.u32 %v82, 4294901760
      %120 = vmatpush1.msra.mxu0 %v119
      %121 = vmatprep.subr.mxu0 0.0
      %v122 = vand.u32 %v81, 4294901760
      %123 = vmatpush1.msra.mxu0 %v122
      %124 = vmatprep.subr.mxu0 0.0
      %v125 = vand.u32 %v80, 4294901760
      %126 = vmatpush1.msra.mxu0 %v125
      %127 = vmatprep.subr.mxu0 0.0
      %v128 = vand.u32 %v79, 4294901760
      %129 = vmatpush1.msra.mxu0 %v128
      %130 = vmatprep.subr.mxu0 0.0
      %v131 = vand.u32 %v78, 4294901760
      %132 = vmatpush1.msra.mxu0 %v131
      %133 = vmatprep.subr.mxu0 0.0
      %v134 = vand.u32 %v77, 4294901760
      %135 = vmatpush1.msra.mxu0 %v134
      %136 = vmatprep.subr.mxu0 0.0
      %137 = vmatpush2.msra.mxu0 0.0
      %138 = vmatprep.subr.mxu0 0.0
      %139 = vmatpush2.msra.mxu0 0.0
      %140 = vmatprep.subr.mxu0 0.0
      %141 = vmatpush2.msra.mxu0 0.0
      %142 = vmatprep.subr.mxu0 0.0
      %143 = vmatpush2.msra.mxu0 0.0
      %144 = vmatprep.subr.mxu0 0.0
      %145 = vmatpush2.msra.mxu0 0.0
      %146 = vmatprep.subr.mxu0 0.0
      %147 = vmatpush2.msra.mxu0 0.0
      %148 = vmatprep.subr.mxu0 0.0
      %149 = vmatpush2.msra.mxu0 0.0
      %150 = vmatprep.subr.mxu0 0.0
      %151 = vmatpush2.msra.mxu0 0.0
      %152 = vmatprep.subr.mxu0 0.0
      %153 = vmatpush2.msra.mxu0 0.0
      %154 = vmatprep.subr.mxu0 0.0
      %155 = vmatpush2.msra.mxu0 0.0
      %156 = vmatprep.subr.mxu0 0.0
      %157 = vmatpush2.msra.mxu0 0.0
      %158 = vmatprep.subr.mxu0 0.0
      %159 = vmatpush2.msra.mxu0 0.0
      %160 = vmatprep.subr.mxu0 0.0
      %161 = vmatpush2.msra.mxu0 0.0
      %162 = vmatprep.subr.mxu0 0.0
      %163 = vmatpush2.msra.mxu0 0.0
      %164 = vmatprep.subr.mxu0 0.0
      %165 = vmatpush2.msra.mxu0 0.0
      %166 = vmatprep.subr.mxu0 0.0
      %167 = vmatpush2.msra.mxu0 0.0
      %168 = vmatprep.mubr.f32.mxu0 0.0
      %v169 = vand.u32 %v94, 4294901760
      %v170 = vsub.f32 %v94, %v169
      %v171 = vand.u32 %v170, 4294901760
      %v172 = vsub.f32 %v170, %v171
      %v173 = vand.u32 %v172, 4294901760
      %174 = vmatmul.mubr.f32.gmra.mxu0 %v173
      %v175 = vpop.f32.mrf.mxu0
      %v176 = vadd.f32 %v90, %v175
      %v177 = vpop.f32.mrf.mxu0
      %178 = vdwg.mxu0
      %179 = vmatprep.subr.mxu0 0.0
      %180 = vmatpush1.msra.mxu0 0.0
      %181 = vmatprep.subr.mxu0 0.0
      %182 = vmatpush1.msra.mxu0 0.0
      %183 = vmatprep.subr.mxu0 0.0
      %184 = vmatpush1.msra.mxu0 0.0
      %185 = vmatprep.subr.mxu0 0.0
      %186 = vmatpush1.msra.mxu0 0.0
      %187 = vmatprep.subr.mxu0 0.0
      %188 = vmatpush1.msra.mxu0 0.0
      %189 = vmatprep.subr.mxu0 0.0
      %190 = vmatpush1.msra.mxu0 0.0
      %191 = vmatprep.subr.mxu0 0.0
      %192 = vmatpush1.msra.mxu0 0.0
      %193 = vmatprep.subr.mxu0 0.0
      %194 = vmatpush1.msra.mxu0 0.0
      %195 = vmatprep.subr.mxu0 0.0
      %v196 = vand.u32 %v84, 4294901760
      %v197 = vsub.f32 %v84, %v196
      %v198 = vand.u32 %v197, 4294901760
      %v199 = vsub.f32 %v197, %v198
      %v200 = vand.u32 %v199, 4294901760
      %201 = vmatpush1.msra.mxu0 %v200
      %202 = vmatprep.subr.mxu0 0.0
      %v203 = vand.u32 %v83, 4294901760
      %v204 = vsub.f32 %v83, %v203
      %v205 = vand.u32 %v204, 4294901760
      %v206 = vsub.f32 %v204, %v205
      %v207 = vand.u32 %v206, 4294901760
      %208 = vmatpush1.msra.mxu0 %v207
      %209 = vmatprep.subr.mxu0 0.0
      %v210 = vand.u32 %v82, 4294901760
      %v211 = vsub.f32 %v82, %v210
      %v212 = vand.u32 %v211, 4294901760
      %v213 = vsub.f32 %v211, %v212
      %v214 = vand.u32 %v213, 4294901760
      %215 = vmatpush1.msra.mxu0 %v214
      %216 = vmatprep.subr.mxu0 0.0
      %v217 = vand.u32 %v81, 4294901760
      %v218 = vsub.f32 %v81, %v217
      %v219 = vand.u32 %v218, 4294901760
      %v220 = vsub.f32 %v218, %v219
      %v221 = vand.u32 %v220, 4294901760
      %222 = vmatpush1.msra.mxu0 %v221
      %223 = vmatprep.subr.mxu0 0.0
      %v224 = vand.u32 %v80, 4294901760
      %v225 = vsub.f32 %v80, %v224
      %v226 = vand.u32 %v225, 4294901760
      %v227 = vsub.f32 %v225, %v226
      %v228 = vand.u32 %v227, 4294901760
      %229 = vmatpush1.msra.mxu0 %v228
      %230 = vmatprep.subr.mxu0 0.0
      %v231 = vand.u32 %v79, 4294901760
      %v232 = vsub.f32 %v79, %v231
      %v233 = vand.u32 %v232, 4294901760
      %v234 = vsub.f32 %v232, %v233
      %v235 = vand.u32 %v234, 4294901760
      %236 = vmatpush1.msra.mxu0 %v235
      %237 = vmatprep.subr.mxu0 0.0
      %v238 = vand.u32 %v78, 4294901760
      %v239 = vsub.f32 %v78, %v238
      %v240 = vand.u32 %v239, 4294901760
      %v241 = vsub.f32 %v239, %v240
      %v242 = vand.u32 %v241, 4294901760
      %243 = vmatpush1.msra.mxu0 %v242
      %244 = vmatprep.subr.mxu0 0.0
      %v245 = vand.u32 %v77, 4294901760
      %v246 = vsub.f32 %v77, %v245
      %v247 = vand.u32 %v246, 4294901760
      %v248 = vsub.f32 %v246, %v247
      %v249 = vand.u32 %v248, 4294901760
      %250 = vmatpush1.msra.mxu0 %v249
      %251 = vmatprep.subr.mxu0 0.0
      %252 = vmatpush2.msra.mxu0 0.0
      %253 = vmatprep.subr.mxu0 0.0
      %254 = vmatpush2.msra.mxu0 0.0
      %255 = vmatprep.subr.mxu0 0.0
      %256 = vmatpush2.msra.mxu0 0.0
      %257 = vmatprep.subr.mxu0 0.0
      %258 = vmatpush2.msra.mxu0 0.0
      %259 = vmatprep.subr.mxu0 0.0
      %260 = vmatpush2.msra.mxu0 0.0
      %261 = vmatprep.subr.mxu0 0.0
      %262 = vmatpush2.msra.mxu0 0.0
      %263 = vmatprep.subr.mxu0 0.0
      %264 = vmatpush2.msra.mxu0 0.0
      %265 = vmatprep.subr.mxu0 0.0
      %266 = vmatpush2.msra.mxu0 0.0
      %267 = vmatprep.subr.mxu0 0.0
      %268 = vmatpush2.msra.mxu0 0.0
      %269 = vmatprep.subr.mxu0 0.0
      %270 = vmatpush2.msra.mxu0 0.0
      %271 = vmatprep.subr.mxu0 0.0
      %272 = vmatpush2.msra.mxu0 0.0
      %273 = vmatprep.subr.mxu0 0.0
      %274 = vmatpush2.msra.mxu0 0.0
      %275 = vmatprep.subr.mxu0 0.0
      %276 = vmatpush2.msra.mxu0 0.0
      %277 = vmatprep.subr.mxu0 0.0
      %278 = vmatpush2.msra.mxu0 0.0
      %279 = vmatprep.subr.mxu0 0.0
      %280 = vmatpush2.msra.mxu0 0.0
      %281 = vmatprep.subr.mxu0 0.0
      %282 = vmatpush2.msra.mxu0 0.0
      %283 = vmatprep.mubr.f32.mxu0 0.0
      %v284 = vand.u32 %v94, 4294901760
      %285 = vmatmul.mubr.f32.gmra.mxu0 %v284
      %v286 = vpop.f32.mrf.mxu0
      %v287 = vadd.f32 %v176, %v286
      %v288 = vpop.f32.mrf.mxu0
      %289 = vdwg.mxu0
      %290 = vmatprep.subr.mxu0 0.0
      %291 = vmatpush1.msra.mxu0 0.0
      %292 = vmatprep.subr.mxu0 0.0
      %293 = vmatpush1.msra.mxu0 0.0
      %294 = vmatprep.subr.mxu0 0.0
      %295 = vmatpush1.msra.mxu0 0.0
      %296 = vmatprep.subr.mxu0 0.0
      %297 = vmatpush1.msra.mxu0 0.0
      %298 = vmatprep.subr.mxu0 0.0
      %299 = vmatpush1.msra.mxu0 0.0
      %300 = vmatprep.subr.mxu0 0.0
      %301 = vmatpush1.msra.mxu0 0.0
      %302 = vmatprep.subr.mxu0 0.0
      %303 = vmatpush1.msra.mxu0 0.0
      %304 = vmatprep.subr.mxu0 0.0
      %305 = vmatpush1.msra.mxu0 0.0
      %306 = vmatprep.subr.mxu0 0.0
      %v307 = vand.u32 %v84, 4294901760
      %v308 = vsub.f32 %v84, %v307
      %309 = vmatpush1.msra.mxu0 %v308
      %310 = vmatprep.subr.mxu0 0.0
      %v311 = vand.u32 %v83, 4294901760
      %v312 = vsub.f32 %v83, %v311
      %313 = vmatpush1.msra.mxu0 %v312
      %314 = vmatprep.subr.mxu0 0.0
      %v315 = vand.u32 %v82, 4294901760
      %v316 = vsub.f32 %v82, %v315
      %317 = vmatpush1.msra.mxu0 %v316
      %318 = vmatprep.subr.mxu0 0.0
      %v319 = vand.u32 %v81, 4294901760
      %v320 = vsub.f32 %v81, %v319
      %321 = vmatpush1.msra.mxu0 %v320
      %322 = vmatprep.subr.mxu0 0.0
      %v323 = vand.u32 %v80, 4294901760
      %v324 = vsub.f32 %v80, %v323
      %325 = vmatpush1.msra.mxu0 %v324
      %326 = vmatprep.subr.mxu0 0.0
      %v327 = vand.u32 %v79, 4294901760
      %v328 = vsub.f32 %v79, %v327
      %329 = vmatpush1.msra.mxu0 %v328
      %330 = vmatprep.subr.mxu0 0.0
      %v331 = vand.u32 %v78, 4294901760
      %v332 = vsub.f32 %v78, %v331
      %333 = vmatpush1.msra.mxu0 %v332
      %334 = vmatprep.subr.mxu0 0.0
      %v335 = vand.u32 %v77, 4294901760
      %v336 = vsub.f32 %v77, %v335
      %337 = vmatpush1.msra.mxu0 %v336
      %338 = vmatprep.subr.mxu0 0.0
      %339 = vmatpush2.msra.mxu0 0.0
      %340 = vmatprep.subr.mxu0 0.0
      %341 = vmatpush2.msra.mxu0 0.0
      %342 = vmatprep.subr.mxu0 0.0
      %343 = vmatpush2.msra.mxu0 0.0
      %344 = vmatprep.subr.mxu0 0.0
      %345 = vmatpush2.msra.mxu0 0.0
      %346 = vmatprep.subr.mxu0 0.0
      %347 = vmatpush2.msra.mxu0 0.0
      %348 = vmatprep.subr.mxu0 0.0
      %349 = vmatpush2.msra.mxu0 0.0
      %350 = vmatprep.subr.mxu0 0.0
      %351 = vmatpush2.msra.mxu0 0.0
      %352 = vmatprep.subr.mxu0 0.0
      %353 = vmatpush2.msra.mxu0 0.0
      %354 = vmatprep.subr.mxu0 0.0
      %355 = vmatpush2.msra.mxu0 0.0
      %356 = vmatprep.subr.mxu0 0.0
      %357 = vmatpush2.msra.mxu0 0.0
      %358 = vmatprep.subr.mxu0 0.0
      %359 = vmatpush2.msra.mxu0 0.0
      %360 = vmatprep.subr.mxu0 0.0
      %361 = vmatpush2.msra.mxu0 0.0
      %362 = vmatprep.subr.mxu0 0.0
      %363 = vmatpush2.msra.mxu0 0.0
      %364 = vmatprep.subr.mxu0 0.0
      %365 = vmatpush2.msra.mxu0 0.0
      %366 = vmatprep.subr.mxu0 0.0
      %367 = vmatpush2.msra.mxu0 0.0
      %368 = vmatprep.subr.mxu0 0.0
      %369 = vmatpush2.msra.mxu0 0.0
      %370 = vmatprep.mubr.f32.mxu0 0.0
      %v371 = vand.u32 %v94, 4294901760
      %v372 = vsub.f32 %v94, %v371
      %373 = vmatmul.mubr.f32.gmra.mxu0 %v372
      %v374 = vpop.f32.mrf.mxu0
      %v375 = vadd.f32 %v287, %v374
      %v376 = vpop.f32.mrf.mxu0
      %377 = vdwg.mxu0
      %378 = vmatprep.subr.mxu0 0.0
      %379 = vmatpush1.msra.mxu0 0.0
      %380 = vmatprep.subr.mxu0 0.0
      %381 = vmatpush1.msra.mxu0 0.0
      %382 = vmatprep.subr.mxu0 0.0
      %383 = vmatpush1.msra.mxu0 0.0
      %384 = vmatprep.subr.mxu0 0.0
      %385 = vmatpush1.msra.mxu0 0.0
      %386 = vmatprep.subr.mxu0 0.0
      %387 = vmatpush1.msra.mxu0 0.0
      %388 = vmatprep.subr.mxu0 0.0
      %389 = vmatpush1.msra.mxu0 0.0
      %390 = vmatprep.subr.mxu0 0.0
      %391 = vmatpush1.msra.mxu0 0.0
      %392 = vmatprep.subr.mxu0 0.0
      %393 = vmatpush1.msra.mxu0 0.0
      %394 = vmatprep.subr.mxu0 0.0
      %v395 = vand.u32 %v84, 4294901760
      %396 = vmatpush1.msra.mxu0 %v395
      %397 = vmatprep.subr.mxu0 0.0
      %v398 = vand.u32 %v83, 4294901760
      %399 = vmatpush1.msra.mxu0 %v398
      %400 = vmatprep.subr.mxu0 0.0
      %v401 = vand.u32 %v82, 4294901760
      %402 = vmatpush1.msra.mxu0 %v401
      %403 = vmatprep.subr.mxu0 0.0
      %v404 = vand.u32 %v81, 4294901760
      %405 = vmatpush1.msra.mxu0 %v404
      %406 = vmatprep.subr.mxu0 0.0
      %v407 = vand.u32 %v80, 4294901760
      %408 = vmatpush1.msra.mxu0 %v407
      %409 = vmatprep.subr.mxu0 0.0
      %v410 = vand.u32 %v79, 4294901760
      %411 = vmatpush1.msra.mxu0 %v410
      %412 = vmatprep.subr.mxu0 0.0
      %v413 = vand.u32 %v78, 4294901760
      %414 = vmatpush1.msra.mxu0 %v413
      %415 = vmatprep.subr.mxu0 0.0
      %v416 = vand.u32 %v77, 4294901760
      %417 = vmatpush1.msra.mxu0 %v416
      %418 = vmatprep.subr.mxu0 0.0
      %419 = vmatpush2.msra.mxu0 0.0
      %420 = vmatprep.subr.mxu0 0.0
      %421 = vmatpush2.msra.mxu0 0.0
      %422 = vmatprep.subr.mxu0 0.0
      %423 = vmatpush2.msra.mxu0 0.0
      %424 = vmatprep.subr.mxu0 0.0
      %425 = vmatpush2.msra.mxu0 0.0
      %426 = vmatprep.subr.mxu0 0.0
      %427 = vmatpush2.msra.mxu0 0.0
      %428 = vmatprep.subr.mxu0 0.0
      %429 = vmatpush2.msra.mxu0 0.0
      %430 = vmatprep.subr.mxu0 0.0
      %431 = vmatpush2.msra.mxu0 0.0
      %432 = vmatprep.subr.mxu0 0.0
      %433 = vmatpush2.msra.mxu0 0.0
      %434 = vmatprep.subr.mxu0 0.0
      %435 = vmatpush2.msra.mxu0 0.0
      %436 = vmatprep.subr.mxu0 0.0
      %437 = vmatpush2.msra.mxu0 0.0
      %438 = vmatprep.subr.mxu0 0.0
      %439 = vmatpush2.msra.mxu0 0.0
      %440 = vmatprep.subr.mxu0 0.0
      %441 = vmatpush2.msra.mxu0 0.0
      %442 = vmatprep.subr.mxu0 0.0
      %443 = vmatpush2.msra.mxu0 0.0
      %444 = vmatprep.subr.mxu0 0.0
      %445 = vmatpush2.msra.mxu0 0.0
      %446 = vmatprep.subr.mxu0 0.0
      %447 = vmatpush2.msra.mxu0 0.0
      %448 = vmatprep.subr.mxu0 0.0
      %449 = vmatpush2.msra.mxu0 0.0
      %450 = vmatprep.mubr.f32.mxu0 0.0
      %v451 = vand.u32 %v94, 4294901760
      %v452 = vsub.f32 %v94, %v451
      %v453 = vand.u32 %v452, 4294901760
      %454 = vmatmul.mubr.f32.gmra.mxu0 %v453
      %v455 = vpop.f32.mrf.mxu0
      %v456 = vadd.f32 %v375, %v455
      %v457 = vpop.f32.mrf.mxu0
      %458 = vdwg.mxu0
      %459 = vmatprep.subr.mxu0 0.0
      %460 = vmatpush1.msra.mxu0 0.0
      %461 = vmatprep.subr.mxu0 0.0
      %462 = vmatpush1.msra.mxu0 0.0
      %463 = vmatprep.subr.mxu0 0.0
      %464 = vmatpush1.msra.mxu0 0.0
      %465 = vmatprep.subr.mxu0 0.0
      %466 = vmatpush1.msra.mxu0 0.0
      %467 = vmatprep.subr.mxu0 0.0
      %468 = vmatpush1.msra.mxu0 0.0
      %469 = vmatprep.subr.mxu0 0.0
      %470 = vmatpush1.msra.mxu0 0.0
      %471 = vmatprep.subr.mxu0 0.0
      %472 = vmatpush1.msra.mxu0 0.0
      %473 = vmatprep.subr.mxu0 0.0
      %474 = vmatpush1.msra.mxu0 0.0
      %475 = vmatprep.subr.mxu0 0.0
      %v476 = vand.u32 %v84, 4294901760
      %v477 = vsub.f32 %v84, %v476
      %v478 = vand.u32 %v477, 4294901760
      %479 = vmatpush1.msra.mxu0 %v478
      %480 = vmatprep.subr.mxu0 0.0
      %v481 = vand.u32 %v83, 4294901760
      %v482 = vsub.f32 %v83, %v481
      %v483 = vand.u32 %v482, 4294901760
      %484 = vmatpush1.msra.mxu0 %v483
      %485 = vmatprep.subr.mxu0 0.0
      %v486 = vand.u32 %v82, 4294901760
      %v487 = vsub.f32 %v82, %v486
      %v488 = vand.u32 %v487, 4294901760
      %489 = vmatpush1.msra.mxu0 %v488
      %490 = vmatprep.subr.mxu0 0.0
      %v491 = vand.u32 %v81, 4294901760
      %v492 = vsub.f32 %v81, %v491
      %v493 = vand.u32 %v492, 4294901760
      %494 = vmatpush1.msra.mxu0 %v493
      %495 = vmatprep.subr.mxu0 0.0
      %v496 = vand.u32 %v80, 4294901760
      %v497 = vsub.f32 %v80, %v496
      %v498 = vand.u32 %v497, 4294901760
      %499 = vmatpush1.msra.mxu0 %v498
      %500 = vmatprep.subr.mxu0 0.0
      %v501 = vand.u32 %v79, 4294901760
      %v502 = vsub.f32 %v79, %v501
      %v503 = vand.u32 %v502, 4294901760
      %504 = vmatpush1.msra.mxu0 %v503
      %505 = vmatprep.subr.mxu0 0.0
      %v506 = vand.u32 %v78, 4294901760
      %v507 = vsub.f32 %v78, %v506
      %v508 = vand.u32 %v507, 4294901760
      %509 = vmatpush1.msra.mxu0 %v508
      %510 = vmatprep.subr.mxu0 0.0
      %v511 = vand.u32 %v77, 4294901760
      %v512 = vsub.f32 %v77, %v511
      %v513 = vand.u32 %v512, 4294901760
      %514 = vmatpush1.msra.mxu0 %v513
      %515 = vmatprep.subr.mxu0 0.0
      %516 = vmatpush2.msra.mxu0 0.0
      %517 = vmatprep.subr.mxu0 0.0
      %518 = vmatpush2.msra.mxu0 0.0
      %519 = vmatprep.subr.mxu0 0.0
      %520 = vmatpush2.msra.mxu0 0.0
      %521 = vmatprep.subr.mxu0 0.0
      %522 = vmatpush2.msra.mxu0 0.0
      %523 = vmatprep.subr.mxu0 0.0
      %524 = vmatpush2.msra.mxu0 0.0
      %525 = vmatprep.subr.mxu0 0.0
      %526 = vmatpush2.msra.mxu0 0.0
      %527 = vmatprep.subr.mxu0 0.0
      %528 = vmatpush2.msra.mxu0 0.0
      %529 = vmatprep.subr.mxu0 0.0
      %530 = vmatpush2.msra.mxu0 0.0
      %531 = vmatprep.subr.mxu0 0.0
      %532 = vmatpush2.msra.mxu0 0.0
      %533 = vmatprep.subr.mxu0 0.0
      %534 = vmatpush2.msra.mxu0 0.0
      %535 = vmatprep.subr.mxu0 0.0
      %536 = vmatpush2.msra.mxu0 0.0
      %537 = vmatprep.subr.mxu0 0.0
      %538 = vmatpush2.msra.mxu0 0.0
      %539 = vmatprep.subr.mxu0 0.0
      %540 = vmatpush2.msra.mxu0 0.0
      %541 = vmatprep.subr.mxu0 0.0
      %542 = vmatpush2.msra.mxu0 0.0
      %543 = vmatprep.subr.mxu0 0.0
      %544 = vmatpush2.msra.mxu0 0.0
      %545 = vmatprep.subr.mxu0 0.0
      %546 = vmatpush2.msra.mxu0 0.0
      %547 = vmatprep.mubr.f32.mxu0 0.0
      %v548 = vand.u32 %v94, 4294901760
      %549 = vmatmul.mubr.f32.gmra.mxu0 %v548
      %v550 = vpop.f32.mrf.mxu0
      %v551 = vadd.f32 %v456, %v550
      %v552 = vpop.f32.mrf.mxu0
      %553 = vdwg.mxu0
      %554 = vmatprep.subr.mxu0 0.0
      %555 = vmatpush1.msra.mxu0 0.0
      %556 = vmatprep.subr.mxu0 0.0
      %557 = vmatpush1.msra.mxu0 0.0
      %558 = vmatprep.subr.mxu0 0.0
      %559 = vmatpush1.msra.mxu0 0.0
      %560 = vmatprep.subr.mxu0 0.0
      %561 = vmatpush1.msra.mxu0 0.0
      %562 = vmatprep.subr.mxu0 0.0
      %563 = vmatpush1.msra.mxu0 0.0
      %564 = vmatprep.subr.mxu0 0.0
      %565 = vmatpush1.msra.mxu0 0.0
      %566 = vmatprep.subr.mxu0 0.0
      %567 = vmatpush1.msra.mxu0 0.0
      %568 = vmatprep.subr.mxu0 0.0
      %569 = vmatpush1.msra.mxu0 0.0
      %570 = vmatprep.subr.mxu0 0.0
      %v571 = vand.u32 %v84, 4294901760
      %572 = vmatpush1.msra.mxu0 %v571
      %573 = vmatprep.subr.mxu0 0.0
      %v574 = vand.u32 %v83, 4294901760
      %575 = vmatpush1.msra.mxu0 %v574
      %576 = vmatprep.subr.mxu0 0.0
      %v577 = vand.u32 %v82, 4294901760
      %578 = vmatpush1.msra.mxu0 %v577
      %579 = vmatprep.subr.mxu0 0.0
      %v580 = vand.u32 %v81, 4294901760
      %581 = vmatpush1.msra.mxu0 %v580
      %582 = vmatprep.subr.mxu0 0.0
      %v583 = vand.u32 %v80, 4294901760
      %584 = vmatpush1.msra.mxu0 %v583
      %585 = vmatprep.subr.mxu0 0.0
      %v586 = vand.u32 %v79, 4294901760
      %587 = vmatpush1.msra.mxu0 %v586
      %588 = vmatprep.subr.mxu0 0.0
      %v589 = vand.u32 %v78, 4294901760
      %590 = vmatpush1.msra.mxu0 %v589
      %591 = vmatprep.subr.mxu0 0.0
      %v592 = vand.u32 %v77, 4294901760
      %593 = vmatpush1.msra.mxu0 %v592
      %594 = vmatprep.subr.mxu0 0.0
      %595 = vmatpush2.msra.mxu0 0.0
      %596 = vmatprep.subr.mxu0 0.0
      %597 = vmatpush2.msra.mxu0 0.0
      %598 = vmatprep.subr.mxu0 0.0
      %599 = vmatpush2.msra.mxu0 0.0
      %600 = vmatprep.subr.mxu0 0.0
      %601 = vmatpush2.msra.mxu0 0.0
      %602 = vmatprep.subr.mxu0 0.0
      %603 = vmatpush2.msra.mxu0 0.0
      %604 = vmatprep.subr.mxu0 0.0
      %605 = vmatpush2.msra.mxu0 0.0
      %606 = vmatprep.subr.mxu0 0.0
      %607 = vmatpush2.msra.mxu0 0.0
      %608 = vmatprep.subr.mxu0 0.0
      %609 = vmatpush2.msra.mxu0 0.0
      %610 = vmatprep.subr.mxu0 0.0
      %611 = vmatpush2.msra.mxu0 0.0
      %612 = vmatprep.subr.mxu0 0.0
      %613 = vmatpush2.msra.mxu0 0.0
      %614 = vmatprep.subr.mxu0 0.0
      %615 = vmatpush2.msra.mxu0 0.0
      %616 = vmatprep.subr.mxu0 0.0
      %617 = vmatpush2.msra.mxu0 0.0
      %618 = vmatprep.subr.mxu0 0.0
      %619 = vmatpush2.msra.mxu0 0.0
      %620 = vmatprep.subr.mxu0 0.0
      %621 = vmatpush2.msra.mxu0 0.0
      %622 = vmatprep.subr.mxu0 0.0
      %623 = vmatpush2.msra.mxu0 0.0
      %624 = vmatprep.subr.mxu0 0.0
      %625 = vmatpush2.msra.mxu0 0.0
      %626 = vmatprep.mubr.f32.mxu0 0.0
      %v627 = vand.u32 %v94, 4294901760
      %628 = vmatmul.mubr.f32.gmra.mxu0 %v627
      %v629 = vpop.f32.mrf.mxu0
      %v630 = vadd.f32 %v551, %v629
      %v631 = vpop.f32.mrf.mxu0
      %632 = vdwg.mxu0
      %v633 = vxor.u32 %v630, 2147483648
      %v634 = vmul.f32 %v633, 1.442695
      %v635 = vpow.pop %v634
      %v636 = vadd.f32 %v635, 1.0
      %v637 = vrcp.pop %v636
      %v638 = vmul.f32 1.0, %v637
      %640 = vrot.lane.b32.xlu0 %v630, 32
      %v641 = vpop.permute.xlu0 %640
      %v643 = vmul.f32 %v638, %v641
      %645 = vrot.lane.b32.xlu0 %v643, 64
      %v646 = vpop.permute.xlu0 %645
      %v648 = vadd.f32 %v630, %v646
      %v649 = vtanh.pop %v648
      %v650 = vsub.f32 1.0, %v638
      %652 = vrot.lane.b32.xlu0 %v649, 96
      %v653 = vpop.permute.xlu0 %652
      %v655 = vmul.f32 %v650, %v653
      %v656 = vmul.f32 %v638, %v73
      %v657 = vadd.f32 %v655, %v656
      %659 = vrot.lane.b32.xlu0 %v657, 96
      %v660 = vpop.permute.xlu0 %659
      %vm662 = vcmask 254976
      %663 = vst.msk [vmem:[#allocation11] sm:$0x3] %vm662, %v660
      %s664 = scalar_lea.vmem %s2, 2
      %v665 = vld [vmem:[%s664] sm:$0x3]
      %667 = vrot.lane.b32.xlu0 %v665, 32
      %v668 = vpop.permute.xlu0 %667
      %v670 = vsel %vm75, %v660, %v668
      %s671 = scalar_lea.vmem [#allocation5], 64
      %v672 = vld [vmem:[%s671] sm:$0xff]
      %v673 = vld [vmem:[%s671 + $0x8] sm:$0xff]
      %v674 = vld [vmem:[%s671 + $0x10] sm:$0xff]
      %v675 = vld [vmem:[%s671 + $0x18] sm:$0xff]
      %v676 = vld [vmem:[%s671 + $0x20] sm:$0xff]
      %v677 = vld [vmem:[%s671 + $0x28] sm:$0xff]
      %v678 = vld [vmem:[%s671 + $0x30] sm:$0xff]
      %v679 = vld [vmem:[%s671 + $0x38] sm:$0xff]
      %s680 = scalar_lea.vmem %s4, 1
      %v681 = vld [vmem:[%s680] sm:$0x1]
      %v683 = vlaneseq
      %v684 = vshrl.u32 %v683, 7
      %v685 = vsub.s32 0, %v684
      %v686 = vrot.slane %v681, %v685
      %v689 = vsel %vm92, %v670, 0
      %691 = vmatprep.subr.mxu0 0.0
      %692 = vmatpush1.msra.mxu0 0.0
      %693 = vmatprep.subr.mxu0 0.0
      %694 = vmatpush1.msra.mxu0 0.0
      %695 = vmatprep.subr.mxu0 0.0
      %696 = vmatpush1.msra.mxu0 0.0
      %697 = vmatprep.subr.mxu0 0.0
      %698 = vmatpush1.msra.mxu0 0.0
      %699 = vmatprep.subr.mxu0 0.0
      %700 = vmatpush1.msra.mxu0 0.0
      %701 = vmatprep.subr.mxu0 0.0
      %702 = vmatpush1.msra.mxu0 0.0
      %703 = vmatprep.subr.mxu0 0.0
      %704 = vmatpush1.msra.mxu0 0.0
      %705 = vmatprep.subr.mxu0 0.0
      %706 = vmatpush1.msra.mxu0 0.0
      %707 = vmatprep.subr.mxu0 0.0
      %v708 = vand.u32 %v679, 4294901760
      %709 = vmatpush1.msra.mxu0 %v708
      %710 = vmatprep.subr.mxu0 0.0
      %v711 = vand.u32 %v678, 4294901760
      %712 = vmatpush1.msra.mxu0 %v711
      %713 = vmatprep.subr.mxu0 0.0
      %v714 = vand.u32 %v677, 4294901760
      %715 = vmatpush1.msra.mxu0 %v714
      %716 = vmatprep.subr.mxu0 0.0
      %v717 = vand.u32 %v676, 4294901760
      %718 = vmatpush1.msra.mxu0 %v717
      %719 = vmatprep.subr.mxu0 0.0
      %v720 = vand.u32 %v675, 4294901760
      %721 = vmatpush1.msra.mxu0 %v720
      %722 = vmatprep.subr.mxu0 0.0
      %v723 = vand.u32 %v674, 4294901760
      %724 = vmatpush1.msra.mxu0 %v723
      %725 = vmatprep.subr.mxu0 0.0
      %v726 = vand.u32 %v673, 4294901760
      %727 = vmatpush1.msra.mxu0 %v726
      %728 = vmatprep.subr.mxu0 0.0
      %v729 = vand.u32 %v672, 4294901760
      %730 = vmatpush1.msra.mxu0 %v729
      %731 = vmatprep.subr.mxu0 0.0
      %732 = vmatpush2.msra.mxu0 0.0
      %733 = vmatprep.subr.mxu0 0.0
      %734 = vmatpush2.msra.mxu0 0.0
      %735 = vmatprep.subr.mxu0 0.0
      %736 = vmatpush2.msra.mxu0 0.0
      %737 = vmatprep.subr.mxu0 0.0
      %738 = vmatpush2.msra.mxu0 0.0
      %739 = vmatprep.subr.mxu0 0.0
      %740 = vmatpush2.msra.mxu0 0.0
      %741 = vmatprep.subr.mxu0 0.0
      %742 = vmatpush2.msra.mxu0 0.0
      %743 = vmatprep.subr.mxu0 0.0
      %744 = vmatpush2.msra.mxu0 0.0
      %745 = vmatprep.subr.mxu0 0.0
      %746 = vmatpush2.msra.mxu0 0.0
      %747 = vmatprep.subr.mxu0 0.0
      %748 = vmatpush2.msra.mxu0 0.0
      %749 = vmatprep.subr.mxu0 0.0
      %750 = vmatpush2.msra.mxu0 0.0
      %751 = vmatprep.subr.mxu0 0.0
      %752 = vmatpush2.msra.mxu0 0.0
      %753 = vmatprep.subr.mxu0 0.0
      %754 = vmatpush2.msra.mxu0 0.0
      %755 = vmatprep.subr.mxu0 0.0
      %756 = vmatpush2.msra.mxu0 0.0
      %757 = vmatprep.subr.mxu0 0.0
      %758 = vmatpush2.msra.mxu0 0.0
      %759 = vmatprep.subr.mxu0 0.0
      %760 = vmatpush2.msra.mxu0 0.0
      %761 = vmatprep.subr.mxu0 0.0
      %762 = vmatpush2.msra.mxu0 0.0
      %763 = vmatprep.mubr.f32.mxu0 0.0
      %v764 = vand.u32 %v689, 4294901760
      %v765 = vsub.f32 %v689, %v764
      %v766 = vand.u32 %v765, 4294901760
      %v767 = vsub.f32 %v765, %v766
      %v768 = vand.u32 %v767, 4294901760
      %769 = vmatmul.mubr.f32.gmra.mxu0 %v768
      %v770 = vpop.f32.mrf.mxu0
      %v771 = vadd.f32 %v686, %v770
      %v772 = vpop.f32.mrf.mxu0
      %773 = vdwg.mxu0
      %774 = vmatprep.subr.mxu0 0.0
      %775 = vmatpush1.msra.mxu0 0.0
      %776 = vmatprep.subr.mxu0 0.0
      %777 = vmatpush1.msra.mxu0 0.0
      %778 = vmatprep.subr.mxu0 0.0
      %779 = vmatpush1.msra.mxu0 0.0
      %780 = vmatprep.subr.mxu0 0.0
      %781 = vmatpush1.msra.mxu0 0.0
      %782 = vmatprep.subr.mxu0 0.0
      %783 = vmatpush1.msra.mxu0 0.0
      %784 = vmatprep.subr.mxu0 0.0
      %785 = vmatpush1.msra.mxu0 0.0
      %786 = vmatprep.subr.mxu0 0.0
      %787 = vmatpush1.msra.mxu0 0.0
      %788 = vmatprep.subr.mxu0 0.0
      %789 = vmatpush1.msra.mxu0 0.0
      %790 = vmatprep.subr.mxu0 0.0
      %v791 = vand.u32 %v679, 4294901760
      %v792 = vsub.f32 %v679, %v791
      %v793 = vand.u32 %v792, 4294901760
      %v794 = vsub.f32 %v792, %v793
      %v795 = vand.u32 %v794, 4294901760
      %796 = vmatpush1.msra.mxu0 %v795
      %797 = vmatprep.subr.mxu0 0.0
      %v798 = vand.u32 %v678, 4294901760
      %v799 = vsub.f32 %v678, %v798
      %v800 = vand.u32 %v799, 4294901760
      %v801 = vsub.f32 %v799, %v800
      %v802 = vand.u32 %v801, 4294901760
      %803 = vmatpush1.msra.mxu0 %v802
      %804 = vmatprep.subr.mxu0 0.0
      %v805 = vand.u32 %v677, 4294901760
      %v806 = vsub.f32 %v677, %v805
      %v807 = vand.u32 %v806, 4294901760
      %v808 = vsub.f32 %v806, %v807
      %v809 = vand.u32 %v808, 4294901760
      %810 = vmatpush1.msra.mxu0 %v809
      %811 = vmatprep.subr.mxu0 0.0
      %v812 = vand.u32 %v676, 4294901760
      %v813 = vsub.f32 %v676, %v812
      %v814 = vand.u32 %v813, 4294901760
      %v815 = vsub.f32 %v813, %v814
      %v816 = vand.u32 %v815, 4294901760
      %817 = vmatpush1.msra.mxu0 %v816
      %818 = vmatprep.subr.mxu0 0.0
      %v819 = vand.u32 %v675, 4294901760
      %v820 = vsub.f32 %v675, %v819
      %v821 = vand.u32 %v820, 4294901760
      %v822 = vsub.f32 %v820, %v821
      %v823 = vand.u32 %v822, 4294901760
      %824 = vmatpush1.msra.mxu0 %v823
      %825 = vmatprep.subr.mxu0 0.0
      %v826 = vand.u32 %v674, 4294901760
      %v827 = vsub.f32 %v674, %v826
      %v828 = vand.u32 %v827, 4294901760
      %v829 = vsub.f32 %v827, %v828
      %v830 = vand.u32 %v829, 4294901760
      %831 = vmatpush1.msra.mxu0 %v830
      %832 = vmatprep.subr.mxu0 0.0
      %v833 = vand.u32 %v673, 4294901760
      %v834 = vsub.f32 %v673, %v833
      %v835 = vand.u32 %v834, 4294901760
      %v836 = vsub.f32 %v834, %v835
      %v837 = vand.u32 %v836, 4294901760
      %838 = vmatpush1.msra.mxu0 %v837
      %839 = vmatprep.subr.mxu0 0.0
      %v840 = vand.u32 %v672, 4294901760
      %v841 = vsub.f32 %v672, %v840
      %v842 = vand.u32 %v841, 4294901760
      %v843 = vsub.f32 %v841, %v842
      %v844 = vand.u32 %v843, 4294901760
      %845 = vmatpush1.msra.mxu0 %v844
      %846 = vmatprep.subr.mxu0 0.0
      %847 = vmatpush2.msra.mxu0 0.0
      %848 = vmatprep.subr.mxu0 0.0
      %849 = vmatpush2.msra.mxu0 0.0
      %850 = vmatprep.subr.mxu0 0.0
      %851 = vmatpush2.msra.mxu0 0.0
      %852 = vmatprep.subr.mxu0 0.0
      %853 = vmatpush2.msra.mxu0 0.0
      %854 = vmatprep.subr.mxu0 0.0
      %855 = vmatpush2.msra.mxu0 0.0
      %856 = vmatprep.subr.mxu0 0.0
      %857 = vmatpush2.msra.mxu0 0.0
      %858 = vmatprep.subr.mxu0 0.0
      %859 = vmatpush2.msra.mxu0 0.0
      %860 = vmatprep.subr.mxu0 0.0
      %861 = vmatpush2.msra.mxu0 0.0
      %862 = vmatprep.subr.mxu0 0.0
      %863 = vmatpush2.msra.mxu0 0.0
      %864 = vmatprep.subr.mxu0 0.0
      %865 = vmatpush2.msra.mxu0 0.0
      %866 = vmatprep.subr.mxu0 0.0
      %867 = vmatpush2.msra.mxu0 0.0
      %868 = vmatprep.subr.mxu0 0.0
      %869 = vmatpush2.msra.mxu0 0.0
      %870 = vmatprep.subr.mxu0 0.0
      %871 = vmatpush2.msra.mxu0 0.0
      %872 = vmatprep.subr.mxu0 0.0
      %873 = vmatpush2.msra.mxu0 0.0
      %874 = vmatprep.subr.mxu0 0.0
      %875 = vmatpush2.msra.mxu0 0.0
      %876 = vmatprep.subr.mxu0 0.0
      %877 = vmatpush2.msra.mxu0 0.0
      %878 = vmatprep.mubr.f32.mxu0 0.0
      %v879 = vand.u32 %v689, 4294901760
      %880 = vmatmul.mubr.f32.gmra.mxu0 %v879
      %v881 = vpop.f32.mrf.mxu0
      %v882 = vadd.f32 %v771, %v881
      %v883 = vpop.f32.mrf.mxu0
      %884 = vdwg.mxu0
      %885 = vmatprep.subr.mxu0 0.0
      %886 = vmatpush1.msra.mxu0 0.0
      %887 = vmatprep.subr.mxu0 0.0
      %888 = vmatpush1.msra.mxu0 0.0
      %889 = vmatprep.subr.mxu0 0.0
      %890 = vmatpush1.msra.mxu0 0.0
      %891 = vmatprep.subr.mxu0 0.0
      %892 = vmatpush1.msra.mxu0 0.0
      %893 = vmatprep.subr.mxu0 0.0
      %894 = vmatpush1.msra.mxu0 0.0
      %895 = vmatprep.subr.mxu0 0.0
      %896 = vmatpush1.msra.mxu0 0.0
      %897 = vmatprep.subr.mxu0 0.0
      %898 = vmatpush1.msra.mxu0 0.0
      %899 = vmatprep.subr.mxu0 0.0
      %900 = vmatpush1.msra.mxu0 0.0
      %901 = vmatprep.subr.mxu0 0.0
      %v902 = vand.u32 %v679, 4294901760
      %v903 = vsub.f32 %v679, %v902
      %904 = vmatpush1.msra.mxu0 %v903
      %905 = vmatprep.subr.mxu0 0.0
      %v906 = vand.u32 %v678, 4294901760
      %v907 = vsub.f32 %v678, %v906
      %908 = vmatpush1.msra.mxu0 %v907
      %909 = vmatprep.subr.mxu0 0.0
      %v910 = vand.u32 %v677, 4294901760
      %v911 = vsub.f32 %v677, %v910
      %912 = vmatpush1.msra.mxu0 %v911
      %913 = vmatprep.subr.mxu0 0.0
      %v914 = vand.u32 %v676, 4294901760
      %v915 = vsub.f32 %v676, %v914
      %916 = vmatpush1.msra.mxu0 %v915
      %917 = vmatprep.subr.mxu0 0.0
      %v918 = vand.u32 %v675, 4294901760
      %v919 = vsub.f32 %v675, %v918
      %920 = vmatpush1.msra.mxu0 %v919
      %921 = vmatprep.subr.mxu0 0.0
      %v922 = vand.u32 %v674, 4294901760
      %v923 = vsub.f32 %v674, %v922
      %924 = vmatpush1.msra.mxu0 %v923
      %925 = vmatprep.subr.mxu0 0.0
      %v926 = vand.u32 %v673, 4294901760
      %v927 = vsub.f32 %v673, %v926
      %928 = vmatpush1.msra.mxu0 %v927
      %929 = vmatprep.subr.mxu0 0.0
      %v930 = vand.u32 %v672, 4294901760
      %v931 = vsub.f32 %v672, %v930
      %932 = vmatpush1.msra.mxu0 %v931
      %933 = vmatprep.subr.mxu0 0.0
      %934 = vmatpush2.msra.mxu0 0.0
      %935 = vmatprep.subr.mxu0 0.0
      %936 = vmatpush2.msra.mxu0 0.0
      %937 = vmatprep.subr.mxu0 0.0
      %938 = vmatpush2.msra.mxu0 0.0
      %939 = vmatprep.subr.mxu0 0.0
      %940 = vmatpush2.msra.mxu0 0.0
      %941 = vmatprep.subr.mxu0 0.0
      %942 = vmatpush2.msra.mxu0 0.0
      %943 = vmatprep.subr.mxu0 0.0
      %944 = vmatpush2.msra.mxu0 0.0
      %945 = vmatprep.subr.mxu0 0.0
      %946 = vmatpush2.msra.mxu0 0.0
      %947 = vmatprep.subr.mxu0 0.0
      %948 = vmatpush2.msra.mxu0 0.0
      %949 = vmatprep.subr.mxu0 0.0
      %950 = vmatpush2.msra.mxu0 0.0
      %951 = vmatprep.subr.mxu0 0.0
      %952 = vmatpush2.msra.mxu0 0.0
      %953 = vmatprep.subr.mxu0 0.0
      %954 = vmatpush2.msra.mxu0 0.0
      %955 = vmatprep.subr.mxu0 0.0
      %956 = vmatpush2.msra.mxu0 0.0
      %957 = vmatprep.subr.mxu0 0.0
      %958 = vmatpush2.msra.mxu0 0.0
      %959 = vmatprep.subr.mxu0 0.0
      %960 = vmatpush2.msra.mxu0 0.0
      %961 = vmatprep.subr.mxu0 0.0
      %962 = vmatpush2.msra.mxu0 0.0
      %963 = vmatprep.subr.mxu0 0.0
      %964 = vmatpush2.msra.mxu0 0.0
      %965 = vmatprep.mubr.f32.mxu0 0.0
      %v966 = vand.u32 %v689, 4294901760
      %v967 = vsub.f32 %v689, %v966
      %968 = vmatmul.mubr.f32.gmra.mxu0 %v967
      %v969 = vpop.f32.mrf.mxu0
      %v970 = vadd.f32 %v882, %v969
      %v971 = vpop.f32.mrf.mxu0
      %972 = vdwg.mxu0
      %973 = vmatprep.subr.mxu0 0.0
      %974 = vmatpush1.msra.mxu0 0.0
      %975 = vmatprep.subr.mxu0 0.0
      %976 = vmatpush1.msra.mxu0 0.0
      %977 = vmatprep.subr.mxu0 0.0
      %978 = vmatpush1.msra.mxu0 0.0
      %979 = vmatprep.subr.mxu0 0.0
      %980 = vmatpush1.msra.mxu0 0.0
      %981 = vmatprep.subr.mxu0 0.0
      %982 = vmatpush1.msra.mxu0 0.0
      %983 = vmatprep.subr.mxu0 0.0
      %984 = vmatpush1.msra.mxu0 0.0
      %985 = vmatprep.subr.mxu0 0.0
      %986 = vmatpush1.msra.mxu0 0.0
      %987 = vmatprep.subr.mxu0 0.0
      %988 = vmatpush1.msra.mxu0 0.0
      %989 = vmatprep.subr.mxu0 0.0
      %v990 = vand.u32 %v679, 4294901760
      %991 = vmatpush1.msra.mxu0 %v990
      %992 = vmatprep.subr.mxu0 0.0
      %v993 = vand.u32 %v678, 4294901760
      %994 = vmatpush1.msra.mxu0 %v993
      %995 = vmatprep.subr.mxu0 0.0
      %v996 = vand.u32 %v677, 4294901760
      %997 = vmatpush1.msra.mxu0 %v996
      %998 = vmatprep.subr.mxu0 0.0
      %v999 = vand.u32 %v676, 4294901760
      %1000 = vmatpush1.msra.mxu0 %v999
      %1001 = vmatprep.subr.mxu0 0.0
      %v1002 = vand.u32 %v675, 4294901760
      %1003 = vmatpush1.msra.mxu0 %v1002
      %1004 = vmatprep.subr.mxu0 0.0
      %v1005 = vand.u32 %v674, 4294901760
      %1006 = vmatpush1.msra.mxu0 %v1005
      %1007 = vmatprep.subr.mxu0 0.0
      %v1008 = vand.u32 %v673, 4294901760
      %1009 = vmatpush1.msra.mxu0 %v1008
      %1010 = vmatprep.subr.mxu0 0.0
      %v1011 = vand.u32 %v672, 4294901760
      %1012 = vmatpush1.msra.mxu0 %v1011
      %1013 = vmatprep.subr.mxu0 0.0
      %1014 = vmatpush2.msra.mxu0 0.0
      %1015 = vmatprep.subr.mxu0 0.0
      %1016 = vmatpush2.msra.mxu0 0.0
      %1017 = vmatprep.subr.mxu0 0.0
      %1018 = vmatpush2.msra.mxu0 0.0
      %1019 = vmatprep.subr.mxu0 0.0
      %1020 = vmatpush2.msra.mxu0 0.0
      %1021 = vmatprep.subr.mxu0 0.0
      %1022 = vmatpush2.msra.mxu0 0.0
      %1023 = vmatprep.subr.mxu0 0.0
      %1024 = vmatpush2.msra.mxu0 0.0
      %1025 = vmatprep.subr.mxu0 0.0
      %1026 = vmatpush2.msra.mxu0 0.0
      %1027 = vmatprep.subr.mxu0 0.0
      %1028 = vmatpush2.msra.mxu0 0.0
      %1029 = vmatprep.subr.mxu0 0.0
      %1030 = vmatpush2.msra.mxu0 0.0
      %1031 = vmatprep.subr.mxu0 0.0
      %1032 = vmatpush2.msra.mxu0 0.0
      %1033 = vmatprep.subr.mxu0 0.0
      %1034 = vmatpush2.msra.mxu0 0.0
      %1035 = vmatprep.subr.mxu0 0.0
      %1036 = vmatpush2.msra.mxu0 0.0
      %1037 = vmatprep.subr.mxu0 0.0
      %1038 = vmatpush2.msra.mxu0 0.0
      %1039 = vmatprep.subr.mxu0 0.0
      %1040 = vmatpush2.msra.mxu0 0.0
      %1041 = vmatprep.subr.mxu0 0.0
      %1042 = vmatpush2.msra.mxu0 0.0
      %1043 = vmatprep.subr.mxu0 0.0
      %1044 = vmatpush2.msra.mxu0 0.0
      %1045 = vmatprep.mubr.f32.mxu0 0.0
      %v1046 = vand.u32 %v689, 4294901760
      %v1047 = vsub.f32 %v689, %v1046
      %v1048 = vand.u32 %v1047, 4294901760
      %1049 = vmatmul.mubr.f32.gmra.mxu0 %v1048
      %v1050 = vpop.f32.mrf.mxu0
      %v1051 = vadd.f32 %v970, %v1050
      %v1052 = vpop.f32.mrf.mxu0
      %1053 = vdwg.mxu0
      %1054 = vmatprep.subr.mxu0 0.0
      %1055 = vmatpush1.msra.mxu0 0.0
      %1056 = vmatprep.subr.mxu0 0.0
      %1057 = vmatpush1.msra.mxu0 0.0
      %1058 = vmatprep.subr.mxu0 0.0
      %1059 = vmatpush1.msra.mxu0 0.0
      %1060 = vmatprep.subr.mxu0 0.0
      %1061 = vmatpush1.msra.mxu0 0.0
      %1062 = vmatprep.subr.mxu0 0.0
      %1063 = vmatpush1.msra.mxu0 0.0
      %1064 = vmatprep.subr.mxu0 0.0
      %1065 = vmatpush1.msra.mxu0 0.0
      %1066 = vmatprep.subr.mxu0 0.0
      %1067 = vmatpush1.msra.mxu0 0.0
      %1068 = vmatprep.subr.mxu0 0.0
      %1069 = vmatpush1.msra.mxu0 0.0
      %1070 = vmatprep.subr.mxu0 0.0
      %v1071 = vand.u32 %v679, 4294901760
      %v1072 = vsub.f32 %v679, %v1071
      %v1073 = vand.u32 %v1072, 4294901760
      %1074 = vmatpush1.msra.mxu0 %v1073
      %1075 = vmatprep.subr.mxu0 0.0
      %v1076 = vand.u32 %v678, 4294901760
      %v1077 = vsub.f32 %v678, %v1076
      %v1078 = vand.u32 %v1077, 4294901760
      %1079 = vmatpush1.msra.mxu0 %v1078
      %1080 = vmatprep.subr.mxu0 0.0
      %v1081 = vand.u32 %v677, 4294901760
      %v1082 = vsub.f32 %v677, %v1081
      %v1083 = vand.u32 %v1082, 4294901760
      %1084 = vmatpush1.msra.mxu0 %v1083
      %1085 = vmatprep.subr.mxu0 0.0
      %v1086 = vand.u32 %v676, 4294901760
      %v1087 = vsub.f32 %v676, %v1086
      %v1088 = vand.u32 %v1087, 4294901760
      %1089 = vmatpush1.msra.mxu0 %v1088
      %1090 = vmatprep.subr.mxu0 0.0
      %v1091 = vand.u32 %v675, 4294901760
      %v1092 = vsub.f32 %v675, %v1091
      %v1093 = vand.u32 %v1092, 4294901760
      %1094 = vmatpush1.msra.mxu0 %v1093
      %1095 = vmatprep.subr.mxu0 0.0
      %v1096 = vand.u32 %v674, 4294901760
      %v1097 = vsub.f32 %v674, %v1096
      %v1098 = vand.u32 %v1097, 4294901760
      %1099 = vmatpush1.msra.mxu0 %v1098
      %1100 = vmatprep.subr.mxu0 0.0
      %v1101 = vand.u32 %v673, 4294901760
      %v1102 = vsub.f32 %v673, %v1101
      %v1103 = vand.u32 %v1102, 4294901760
      %1104 = vmatpush1.msra.mxu0 %v1103
      %1105 = vmatprep.subr.mxu0 0.0
      %v1106 = vand.u32 %v672, 4294901760
      %v1107 = vsub.f32 %v672, %v1106
      %v1108 = vand.u32 %v1107, 4294901760
      %1109 = vmatpush1.msra.mxu0 %v1108
      %1110 = vmatprep.subr.mxu0 0.0
      %1111 = vmatpush2.msra.mxu0 0.0
      %1112 = vmatprep.subr.mxu0 0.0
      %1113 = vmatpush2.msra.mxu0 0.0
      %1114 = vmatprep.subr.mxu0 0.0
      %1115 = vmatpush2.msra.mxu0 0.0
      %1116 = vmatprep.subr.mxu0 0.0
      %1117 = vmatpush2.msra.mxu0 0.0
      %1118 = vmatprep.subr.mxu0 0.0
      %1119 = vmatpush2.msra.mxu0 0.0
      %1120 = vmatprep.subr.mxu0 0.0
      %1121 = vmatpush2.msra.mxu0 0.0
      %1122 = vmatprep.subr.mxu0 0.0
      %1123 = vmatpush2.msra.mxu0 0.0
      %1124 = vmatprep.subr.mxu0 0.0
      %1125 = vmatpush2.msra.mxu0 0.0
      %1126 = vmatprep.subr.mxu0 0.0
      %1127 = vmatpush2.msra.mxu0 0.0
      %1128 = vmatprep.subr.mxu0 0.0
      %1129 = vmatpush2.msra.mxu0 0.0
      %1130 = vmatprep.subr.mxu0 0.0
      %1131 = vmatpush2.msra.mxu0 0.0
      %1132 = vmatprep.subr.mxu0 0.0
      %1133 = vmatpush2.msra.mxu0 0.0
      %1134 = vmatprep.subr.mxu0 0.0
      %1135 = vmatpush2.msra.mxu0 0.0
      %1136 = vmatprep.subr.mxu0 0.0
      %1137 = vmatpush2.msra.mxu0 0.0
      %1138 = vmatprep.subr.mxu0 0.0
      %1139 = vmatpush2.msra.mxu0 0.0
      %1140 = vmatprep.subr.mxu0 0.0
      %1141 = vmatpush2.msra.mxu0 0.0
      %1142 = vmatprep.mubr.f32.mxu0 0.0
      %v1143 = vand.u32 %v689, 4294901760
      %1144 = vmatmul.mubr.f32.gmra.mxu0 %v1143
      %v1145 = vpop.f32.mrf.mxu0
      %v1146 = vadd.f32 %v1051, %v1145
      %v1147 = vpop.f32.mrf.mxu0
      %1148 = vdwg.mxu0
      %1149 = vmatprep.subr.mxu0 0.0
      %1150 = vmatpush1.msra.mxu0 0.0
      %1151 = vmatprep.subr.mxu0 0.0
      %1152 = vmatpush1.msra.mxu0 0.0
      %1153 = vmatprep.subr.mxu0 0.0
      %1154 = vmatpush1.msra.mxu0 0.0
      %1155 = vmatprep.subr.mxu0 0.0
      %1156 = vmatpush1.msra.mxu0 0.0
      %1157 = vmatprep.subr.mxu0 0.0
      %1158 = vmatpush1.msra.mxu0 0.0
      %1159 = vmatprep.subr.mxu0 0.0
      %1160 = vmatpush1.msra.mxu0 0.0
      %1161 = vmatprep.subr.mxu0 0.0
      %1162 = vmatpush1.msra.mxu0 0.0
      %1163 = vmatprep.subr.mxu0 0.0
      %1164 = vmatpush1.msra.mxu0 0.0
      %1165 = vmatprep.subr.mxu0 0.0
      %v1166 = vand.u32 %v679, 4294901760
      %1167 = vmatpush1.msra.mxu0 %v1166
      %1168 = vmatprep.subr.mxu0 0.0
      %v1169 = vand.u32 %v678, 4294901760
      %1170 = vmatpush1.msra.mxu0 %v1169
      %1171 = vmatprep.subr.mxu0 0.0
      %v1172 = vand.u32 %v677, 4294901760
      %1173 = vmatpush1.msra.mxu0 %v1172
      %1174 = vmatprep.subr.mxu0 0.0
      %v1175 = vand.u32 %v676, 4294901760
      %1176 = vmatpush1.msra.mxu0 %v1175
      %1177 = vmatprep.subr.mxu0 0.0
      %v1178 = vand.u32 %v675, 4294901760
      %1179 = vmatpush1.msra.mxu0 %v1178
      %1180 = vmatprep.subr.mxu0 0.0
      %v1181 = vand.u32 %v674, 4294901760
      %1182 = vmatpush1.msra.mxu0 %v1181
      %1183 = vmatprep.subr.mxu0 0.0
      %v1184 = vand.u32 %v673, 4294901760
      %1185 = vmatpush1.msra.mxu0 %v1184
      %1186 = vmatprep.subr.mxu0 0.0
      %v1187 = vand.u32 %v672, 4294901760
      %1188 = vmatpush1.msra.mxu0 %v1187
      %1189 = vmatprep.subr.mxu0 0.0
      %1190 = vmatpush2.msra.mxu0 0.0
      %1191 = vmatprep.subr.mxu0 0.0
      %1192 = vmatpush2.msra.mxu0 0.0
      %1193 = vmatprep.subr.mxu0 0.0
      %1194 = vmatpush2.msra.mxu0 0.0
      %1195 = vmatprep.subr.mxu0 0.0
      %1196 = vmatpush2.msra.mxu0 0.0
      %1197 = vmatprep.subr.mxu0 0.0
      %1198 = vmatpush2.msra.mxu0 0.0
      %1199 = vmatprep.subr.mxu0 0.0
      %1200 = vmatpush2.msra.mxu0 0.0
      %1201 = vmatprep.subr.mxu0 0.0
      %1202 = vmatpush2.msra.mxu0 0.0
      %1203 = vmatprep.subr.mxu0 0.0
      %1204 = vmatpush2.msra.mxu0 0.0
      %1205 = vmatprep.subr.mxu0 0.0
      %1206 = vmatpush2.msra.mxu0 0.0
      %1207 = vmatprep.subr.mxu0 0.0
      %1208 = vmatpush2.msra.mxu0 0.0
      %1209 = vmatprep.subr.mxu0 0.0
      %1210 = vmatpush2.msra.mxu0 0.0
      %1211 = vmatprep.subr.mxu0 0.0
      %1212 = vmatpush2.msra.mxu0 0.0
      %1213 = vmatprep.subr.mxu0 0.0
      %1214 = vmatpush2.msra.mxu0 0.0
      %1215 = vmatprep.subr.mxu0 0.0
      %1216 = vmatpush2.msra.mxu0 0.0
      %1217 = vmatprep.subr.mxu0 0.0
      %1218 = vmatpush2.msra.mxu0 0.0
      %1219 = vmatprep.subr.mxu0 0.0
      %1220 = vmatpush2.msra.mxu0 0.0
      %1221 = vmatprep.mubr.f32.mxu0 0.0
      %v1222 = vand.u32 %v689, 4294901760
      %1223 = vmatmul.mubr.f32.gmra.mxu0 %v1222
      %v1224 = vpop.f32.mrf.mxu0
      %v1225 = vadd.f32 %v1146, %v1224
      %v1226 = vpop.f32.mrf.mxu0
      %1227 = vdwg.mxu0
      %v1228 = vxor.u32 %v1225, 2147483648
      %v1229 = vmul.f32 %v1228, 1.442695
      %v1230 = vpow.pop %v1229
      %v1231 = vadd.f32 %v1230, 1.0
      %v1232 = vrcp.pop %v1231
      %v1233 = vmul.f32 1.0, %v1232
      %1235 = vrot.lane.b32.xlu0 %v1225, 32
      %v1236 = vpop.permute.xlu0 %1235
      %v1238 = vmul.f32 %v1233, %v1236
      %1240 = vrot.lane.b32.xlu0 %v1238, 64
      %v1241 = vpop.permute.xlu0 %1240
      %v1243 = vadd.f32 %v1225, %v1241
      %v1244 = vtanh.pop %v1243
      %v1245 = vsub.f32 1.0, %v1233
      %1247 = vrot.lane.b32.xlu0 %v1244, 96
      %v1248 = vpop.permute.xlu0 %1247
      %v1250 = vmul.f32 %v1245, %v1248
      %v1251 = vmul.f32 %v1233, %v668
      %v1252 = vadd.f32 %v1250, %v1251
      %1254 = vrot.lane.b32.xlu0 %v1252, 96
      %v1255 = vpop.permute.xlu0 %1254
      %s1257 = scalar_lea.vmem [#allocation11], 2
      %1258 = vst.msk [vmem:[%s1257] sm:$0x3] %vm662, %v1255
      %v1259 = vld [vmem:[%s1] sm:$0xff]
      %v1260 = vld [vmem:[%s1 + $0x8] sm:$0xff]
      %v1262 = vunpack.c.l.s4 1966171168
      %v1263 = vunpack.c.0.s8 %v1262
      %v1264 = vlaneseq
      %v1265 = vshrl.u32 %v1264, 7
      %v1266 = vsub.s32 %v1263, %v1265
      %v1267 = vrot.slane %v1252, %v1266
      %v1268 = vcombine.high %v1267, %v1267
      %v1270 = vunpack.c.l.s4 1966171168
      %v1271 = vunpack.c.0.s8 %v1270
      %v1272 = vlaneseq
      %v1273 = vshrl.u32 %v1272, 7
      %v1274 = vsub.s32 %v1271, %v1273
      %v1275 = vrot.slane %v1267, %v1274
      %v1277 = vunpack.c.l.s4 1966171168
      %v1278 = vunpack.c.0.s8 %v1277
      %v1279 = vlaneseq
      %v1280 = vshrl.u32 %v1279, 7
      %v1281 = vsub.s32 %v1278, %v1280
      %v1282 = vrot.slane %v1268, %v1281
      %v1283 = vlaneseq
      %v1284 = vshrl.u32 %v1283, 7
      %v1285 = vsub.s32 0, %v1284
      %v1286 = vrot.slane %v1275, %v1285
      %1287 = vrot.lane.b32.xlu0 %v1286, 96
      %v1288 = vpop.permute.xlu0 %1287
      %v1289 = vsel %vm75, %v1288, 0
      %v1292 = vsel %vm75, %v1259, 0
      %1294 = vmatprep.subr.mxu0 0.0
      %1295 = vmatpush1.xpose.msra.mxu0 0.0
      %1296 = vmatprep.subr.mxu0 0.0
      %1297 = vmatpush1.xpose.msra.mxu0 0.0
      %1298 = vmatprep.subr.mxu0 0.0
      %1299 = vmatpush1.xpose.msra.mxu0 0.0
      %1300 = vmatprep.subr.mxu0 0.0
      %1301 = vmatpush1.xpose.msra.mxu0 0.0
      %1302 = vmatprep.subr.mxu0 0.0
      %1303 = vmatpush1.xpose.msra.mxu0 0.0
      %1304 = vmatprep.subr.mxu0 0.0
      %1305 = vmatpush1.xpose.msra.mxu0 0.0
      %1306 = vmatprep.subr.mxu0 0.0
      %1307 = vmatpush1.xpose.msra.mxu0 0.0
      %1308 = vmatprep.subr.mxu0 0.0
      %1309 = vmatpush1.xpose.msra.mxu0 0.0
      %1310 = vmatprep.subr.mxu0 0.0
      %1311 = vmatpush1.xpose.msra.mxu0 0.0
      %1312 = vmatprep.subr.mxu0 0.0
      %1313 = vmatpush1.xpose.msra.mxu0 0.0
      %1314 = vmatprep.subr.mxu0 0.0
      %1315 = vmatpush1.xpose.msra.mxu0 0.0
      %1316 = vmatprep.subr.mxu0 0.0
      %1317 = vmatpush1.xpose.msra.mxu0 0.0
      %1318 = vmatprep.subr.mxu0 0.0
      %1319 = vmatpush1.xpose.msra.mxu0 0.0
      %1320 = vmatprep.subr.mxu0 0.0
      %1321 = vmatpush1.xpose.msra.mxu0 0.0
      %1322 = vmatprep.subr.mxu0 0.0
      %1323 = vmatpush1.xpose.msra.mxu0 0.0
      %1324 = vmatprep.subr.mxu0 0.0
      %v1325 = vand.u32 %v1292, 4294901760
      %1326 = vmatpush1.xpose.msra.mxu0 %v1325
      %1327 = vmatprep.subr.mxu0 0.0
      %1328 = vmatpush2.xpose.msra.mxu0 0.0
      %1329 = vmatprep.subr.mxu0 0.0
      %1330 = vmatpush2.xpose.msra.mxu0 0.0
      %1331 = vmatprep.subr.mxu0 0.0
      %1332 = vmatpush2.xpose.msra.mxu0 0.0
      %1333 = vmatprep.subr.mxu0 0.0
      %1334 = vmatpush2.xpose.msra.mxu0 0.0
      %1335 = vmatprep.subr.mxu0 0.0
      %1336 = vmatpush2.xpose.msra.mxu0 0.0
      %1337 = vmatprep.subr.mxu0 0.0
      %1338 = vmatpush2.xpose.msra.mxu0 0.0
      %1339 = vmatprep.subr.mxu0 0.0
      %1340 = vmatpush2.xpose.msra.mxu0 0.0
      %1341 = vmatprep.subr.mxu0 0.0
      %1342 = vmatpush2.xpose.msra.mxu0 0.0
      %1343 = vmatprep.subr.mxu0 0.0
      %1344 = vmatpush2.xpose.msra.mxu0 0.0
      %1345 = vmatprep.subr.mxu0 0.0
      %1346 = vmatpush2.xpose.msra.mxu0 0.0
      %1347 = vmatprep.subr.mxu0 0.0
      %1348 = vmatpush2.xpose.msra.mxu0 0.0
      %1349 = vmatprep.subr.mxu0 0.0
      %1350 = vmatpush2.xpose.msra.mxu0 0.0
      %1351 = vmatprep.subr.mxu0 0.0
      %1352 = vmatpush2.xpose.msra.mxu0 0.0
      %1353 = vmatprep.subr.mxu0 0.0
      %1354 = vmatpush2.xpose.msra.mxu0 0.0
      %1355 = vmatprep.subr.mxu0 0.0
      %1356 = vmatpush2.xpose.msra.mxu0 0.0
      %1357 = vmatprep.subr.mxu0 0.0
      %1358 = vmatpush2.xpose.msra.mxu0 0.0
      %1359 = vmatprep.mubr.f32.mxu0 0.0
      %v1360 = vand.u32 %v1289, 4294901760
      %v1361 = vsub.f32 %v1289, %v1360
      %v1362 = vand.u32 %v1361, 4294901760
      %v1363 = vsub.f32 %v1361, %v1362
      %v1364 = vand.u32 %v1363, 4294901760
      %1365 = vmatmul.mubr.f32.gmra.mxu0 %v1364
      %v1366 = vpop.f32.mrf.mxu0
      %v1367 = vadd.f32 0.0, %v1366
      %v1368 = vpop.f32.mrf.mxu0
      %1369 = vdwg.mxu0
      %1370 = vmatprep.subr.mxu0 0.0
      %1371 = vmatpush1.xpose.msra.mxu0 0.0
      %1372 = vmatprep.subr.mxu0 0.0
      %1373 = vmatpush1.xpose.msra.mxu0 0.0
      %1374 = vmatprep.subr.mxu0 0.0
      %1375 = vmatpush1.xpose.msra.mxu0 0.0
      %1376 = vmatprep.subr.mxu0 0.0
      %1377 = vmatpush1.xpose.msra.mxu0 0.0
      %1378 = vmatprep.subr.mxu0 0.0
      %1379 = vmatpush1.xpose.msra.mxu0 0.0
      %1380 = vmatprep.subr.mxu0 0.0
      %1381 = vmatpush1.xpose.msra.mxu0 0.0
      %1382 = vmatprep.subr.mxu0 0.0
      %1383 = vmatpush1.xpose.msra.mxu0 0.0
      %1384 = vmatprep.subr.mxu0 0.0
      %1385 = vmatpush1.xpose.msra.mxu0 0.0
      %1386 = vmatprep.subr.mxu0 0.0
      %1387 = vmatpush1.xpose.msra.mxu0 0.0
      %1388 = vmatprep.subr.mxu0 0.0
      %1389 = vmatpush1.xpose.msra.mxu0 0.0
      %1390 = vmatprep.subr.mxu0 0.0
      %1391 = vmatpush1.xpose.msra.mxu0 0.0
      %1392 = vmatprep.subr.mxu0 0.0
      %1393 = vmatpush1.xpose.msra.mxu0 0.0
      %1394 = vmatprep.subr.mxu0 0.0
      %1395 = vmatpush1.xpose.msra.mxu0 0.0
      %1396 = vmatprep.subr.mxu0 0.0
      %1397 = vmatpush1.xpose.msra.mxu0 0.0
      %1398 = vmatprep.subr.mxu0 0.0
      %1399 = vmatpush1.xpose.msra.mxu0 0.0
      %1400 = vmatprep.subr.mxu0 0.0
      %v1401 = vand.u32 %v1292, 4294901760
      %v1402 = vsub.f32 %v1292, %v1401
      %v1403 = vand.u32 %v1402, 4294901760
      %v1404 = vsub.f32 %v1402, %v1403
      %v1405 = vand.u32 %v1404, 4294901760
      %1406 = vmatpush1.xpose.msra.mxu0 %v1405
      %1407 = vmatprep.subr.mxu0 0.0
      %1408 = vmatpush2.xpose.msra.mxu0 0.0
      %1409 = vmatprep.subr.mxu0 0.0
      %1410 = vmatpush2.xpose.msra.mxu0 0.0
      %1411 = vmatprep.subr.mxu0 0.0
      %1412 = vmatpush2.xpose.msra.mxu0 0.0
      %1413 = vmatprep.subr.mxu0 0.0
      %1414 = vmatpush2.xpose.msra.mxu0 0.0
      %1415 = vmatprep.subr.mxu0 0.0
      %1416 = vmatpush2.xpose.msra.mxu0 0.0
      %1417 = vmatprep.subr.mxu0 0.0
      %1418 = vmatpush2.xpose.msra.mxu0 0.0
      %1419 = vmatprep.subr.mxu0 0.0
      %1420 = vmatpush2.xpose.msra.mxu0 0.0
      %1421 = vmatprep.subr.mxu0 0.0
      %1422 = vmatpush2.xpose.msra.mxu0 0.0
      %1423 = vmatprep.subr.mxu0 0.0
      %1424 = vmatpush2.xpose.msra.mxu0 0.0
      %1425 = vmatprep.subr.mxu0 0.0
      %1426 = vmatpush2.xpose.msra.mxu0 0.0
      %1427 = vmatprep.subr.mxu0 0.0
      %1428 = vmatpush2.xpose.msra.mxu0 0.0
      %1429 = vmatprep.subr.mxu0 0.0
      %1430 = vmatpush2.xpose.msra.mxu0 0.0
      %1431 = vmatprep.subr.mxu0 0.0
      %1432 = vmatpush2.xpose.msra.mxu0 0.0
      %1433 = vmatprep.subr.mxu0 0.0
      %1434 = vmatpush2.xpose.msra.mxu0 0.0
      %1435 = vmatprep.subr.mxu0 0.0
      %1436 = vmatpush2.xpose.msra.mxu0 0.0
      %1437 = vmatprep.subr.mxu0 0.0
      %1438 = vmatpush2.xpose.msra.mxu0 0.0
      %1439 = vmatprep.mubr.f32.mxu0 0.0
      %v1440 = vand.u32 %v1289, 4294901760
      %1441 = vmatmul.mubr.f32.gmra.mxu0 %v1440
      %v1442 = vpop.f32.mrf.mxu0
      %v1443 = vadd.f32 %v1367, %v1442
      %v1444 = vpop.f32.mrf.mxu0
      %1445 = vdwg.mxu0
      %1446 = vmatprep.subr.mxu0 0.0
      %1447 = vmatpush1.xpose.msra.mxu0 0.0
      %1448 = vmatprep.subr.mxu0 0.0
      %1449 = vmatpush1.xpose.msra.mxu0 0.0
      %1450 = vmatprep.subr.mxu0 0.0
      %1451 = vmatpush1.xpose.msra.mxu0 0.0
      %1452 = vmatprep.subr.mxu0 0.0
      %1453 = vmatpush1.xpose.msra.mxu0 0.0
      %1454 = vmatprep.subr.mxu0 0.0
      %1455 = vmatpush1.xpose.msra.mxu0 0.0
      %1456 = vmatprep.subr.mxu0 0.0
      %1457 = vmatpush1.xpose.msra.mxu0 0.0
      %1458 = vmatprep.subr.mxu0 0.0
      %1459 = vmatpush1.xpose.msra.mxu0 0.0
      %1460 = vmatprep.subr.mxu0 0.0
      %1461 = vmatpush1.xpose.msra.mxu0 0.0
      %1462 = vmatprep.subr.mxu0 0.0
      %1463 = vmatpush1.xpose.msra.mxu0 0.0
      %1464 = vmatprep.subr.mxu0 0.0
      %1465 = vmatpush1.xpose.msra.mxu0 0.0
      %1466 = vmatprep.subr.mxu0 0.0
      %1467 = vmatpush1.xpose.msra.mxu0 0.0
      %1468 = vmatprep.subr.mxu0 0.0
      %1469 = vmatpush1.xpose.msra.mxu0 0.0
      %1470 = vmatprep.subr.mxu0 0.0
      %1471 = vmatpush1.xpose.msra.mxu0 0.0
      %1472 = vmatprep.subr.mxu0 0.0
      %1473 = vmatpush1.xpose.msra.mxu0 0.0
      %1474 = vmatprep.subr.mxu0 0.0
      %1475 = vmatpush1.xpose.msra.mxu0 0.0
      %1476 = vmatprep.subr.mxu0 0.0
      %v1477 = vand.u32 %v1292, 4294901760
      %v1478 = vsub.f32 %v1292, %v1477
      %1479 = vmatpush1.xpose.msra.mxu0 %v1478
      %1480 = vmatprep.subr.mxu0 0.0
      %1481 = vmatpush2.xpose.msra.mxu0 0.0
      %1482 = vmatprep.subr.mxu0 0.0
      %1483 = vmatpush2.xpose.msra.mxu0 0.0
      %1484 = vmatprep.subr.mxu0 0.0
      %1485 = vmatpush2.xpose.msra.mxu0 0.0
      %1486 = vmatprep.subr.mxu0 0.0
      %1487 = vmatpush2.xpose.msra.mxu0 0.0
      %1488 = vmatprep.subr.mxu0 0.0
      %1489 = vmatpush2.xpose.msra.mxu0 0.0
      %1490 = vmatprep.subr.mxu0 0.0
      %1491 = vmatpush2.xpose.msra.mxu0 0.0
      %1492 = vmatprep.subr.mxu0 0.0
      %1493 = vmatpush2.xpose.msra.mxu0 0.0
      %1494 = vmatprep.subr.mxu0 0.0
      %1495 = vmatpush2.xpose.msra.mxu0 0.0
      %1496 = vmatprep.subr.mxu0 0.0
      %1497 = vmatpush2.xpose.msra.mxu0 0.0
      %1498 = vmatprep.subr.mxu0 0.0
      %1499 = vmatpush2.xpose.msra.mxu0 0.0
      %1500 = vmatprep.subr.mxu0 0.0
      %1501 = vmatpush2.xpose.msra.mxu0 0.0
      %1502 = vmatprep.subr.mxu0 0.0
      %1503 = vmatpush2.xpose.msra.mxu0 0.0
      %1504 = vmatprep.subr.mxu0 0.0
      %1505 = vmatpush2.xpose.msra.mxu0 0.0
      %1506 = vmatprep.subr.mxu0 0.0
      %1507 = vmatpush2.xpose.msra.mxu0 0.0
      %1508 = vmatprep.subr.mxu0 0.0
      %1509 = vmatpush2.xpose.msra.mxu0 0.0
      %1510 = vmatprep.subr.mxu0 0.0
      %1511 = vmatpush2.xpose.msra.mxu0 0.0
      %1512 = vmatprep.mubr.f32.mxu0 0.0
      %v1513 = vand.u32 %v1289, 4294901760
      %v1514 = vsub.f32 %v1289, %v1513
      %1515 = vmatmul.mubr.f32.gmra.mxu0 %v1514
      %v1516 = vpop.f32.mrf.mxu0
      %v1517 = vadd.f32 %v1443, %v1516
      %v1518 = vpop.f32.mrf.mxu0
      %1519 = vdwg.mxu0
      %1520 = vmatprep.subr.mxu0 0.0
      %1521 = vmatpush1.xpose.msra.mxu0 0.0
      %1522 = vmatprep.subr.mxu0 0.0
      %1523 = vmatpush1.xpose.msra.mxu0 0.0
      %1524 = vmatprep.subr.mxu0 0.0
      %1525 = vmatpush1.xpose.msra.mxu0 0.0
      %1526 = vmatprep.subr.mxu0 0.0
      %1527 = vmatpush1.xpose.msra.mxu0 0.0
      %1528 = vmatprep.subr.mxu0 0.0
      %1529 = vmatpush1.xpose.msra.mxu0 0.0
      %1530 = vmatprep.subr.mxu0 0.0
      %1531 = vmatpush1.xpose.msra.mxu0 0.0
      %1532 = vmatprep.subr.mxu0 0.0
      %1533 = vmatpush1.xpose.msra.mxu0 0.0
      %1534 = vmatprep.subr.mxu0 0.0
      %1535 = vmatpush1.xpose.msra.mxu0 0.0
      %1536 = vmatprep.subr.mxu0 0.0
      %1537 = vmatpush1.xpose.msra.mxu0 0.0
      %1538 = vmatprep.subr.mxu0 0.0
      %1539 = vmatpush1.xpose.msra.mxu0 0.0
      %1540 = vmatprep.subr.mxu0 0.0
      %1541 = vmatpush1.xpose.msra.mxu0 0.0
      %1542 = vmatprep.subr.mxu0 0.0
      %1543 = vmatpush1.xpose.msra.mxu0 0.0
      %1544 = vmatprep.subr.mxu0 0.0
      %1545 = vmatpush1.xpose.msra.mxu0 0.0
      %1546 = vmatprep.subr.mxu0 0.0
      %1547 = vmatpush1.xpose.msra.mxu0 0.0
      %1548 = vmatprep.subr.mxu0 0.0
      %1549 = vmatpush1.xpose.msra.mxu0 0.0
      %1550 = vmatprep.subr.mxu0 0.0
      %v1551 = vand.u32 %v1292, 4294901760
      %1552 = vmatpush1.xpose.msra.mxu0 %v1551
      %1553 = vmatprep.subr.mxu0 0.0
      %1554 = vmatpush2.xpose.msra.mxu0 0.0
      %1555 = vmatprep.subr.mxu0 0.0
      %1556 = vmatpush2.xpose.msra.mxu0 0.0
      %1557 = vmatprep.subr.mxu0 0.0
      %1558 = vmatpush2.xpose.msra.mxu0 0.0
      %1559 = vmatprep.subr.mxu0 0.0
      %1560 = vmatpush2.xpose.msra.mxu0 0.0
      %1561 = vmatprep.subr.mxu0 0.0
      %1562 = vmatpush2.xpose.msra.mxu0 0.0
      %1563 = vmatprep.subr.mxu0 0.0
      %1564 = vmatpush2.xpose.msra.mxu0 0.0
      %1565 = vmatprep.subr.mxu0 0.0
      %1566 = vmatpush2.xpose.msra.mxu0 0.0
      %1567 = vmatprep.subr.mxu0 0.0
      %1568 = vmatpush2.xpose.msra.mxu0 0.0
      %1569 = vmatprep.subr.mxu0 0.0
      %1570 = vmatpush2.xpose.msra.mxu0 0.0
      %1571 = vmatprep.subr.mxu0 0.0
      %1572 = vmatpush2.xpose.msra.mxu0 0.0
      %1573 = vmatprep.subr.mxu0 0.0
      %1574 = vmatpush2.xpose.msra.mxu0 0.0
      %1575 = vmatprep.subr.mxu0 0.0
      %1576 = vmatpush2.xpose.msra.mxu0 0.0
      %1577 = vmatprep.subr.mxu0 0.0
      %1578 = vmatpush2.xpose.msra.mxu0 0.0
      %1579 = vmatprep.subr.mxu0 0.0
      %1580 = vmatpush2.xpose.msra.mxu0 0.0
      %1581 = vmatprep.subr.mxu0 0.0
      %1582 = vmatpush2.xpose.msra.mxu0 0.0
      %1583 = vmatprep.subr.mxu0 0.0
      %1584 = vmatpush2.xpose.msra.mxu0 0.0
      %1585 = vmatprep.mubr.f32.mxu0 0.0
      %v1586 = vand.u32 %v1289, 4294901760
      %v1587 = vsub.f32 %v1289, %v1586
      %v1588 = vand.u32 %v1587, 4294901760
      %1589 = vmatmul.mubr.f32.gmra.mxu0 %v1588
      %v1590 = vpop.f32.mrf.mxu0
      %v1591 = vadd.f32 %v1517, %v1590
      %v1592 = vpop.f32.mrf.mxu0
      %1593 = vdwg.mxu0
      %1594 = vmatprep.subr.mxu0 0.0
      %1595 = vmatpush1.xpose.msra.mxu0 0.0
      %1596 = vmatprep.subr.mxu0 0.0
      %1597 = vmatpush1.xpose.msra.mxu0 0.0
      %1598 = vmatprep.subr.mxu0 0.0
      %1599 = vmatpush1.xpose.msra.mxu0 0.0
      %1600 = vmatprep.subr.mxu0 0.0
      %1601 = vmatpush1.xpose.msra.mxu0 0.0
      %1602 = vmatprep.subr.mxu0 0.0
      %1603 = vmatpush1.xpose.msra.mxu0 0.0
      %1604 = vmatprep.subr.mxu0 0.0
      %1605 = vmatpush1.xpose.msra.mxu0 0.0
      %1606 = vmatprep.subr.mxu0 0.0
      %1607 = vmatpush1.xpose.msra.mxu0 0.0
      %1608 = vmatprep.subr.mxu0 0.0
      %1609 = vmatpush1.xpose.msra.mxu0 0.0
      %1610 = vmatprep.subr.mxu0 0.0
      %1611 = vmatpush1.xpose.msra.mxu0 0.0
      %1612 = vmatprep.subr.mxu0 0.0
      %1613 = vmatpush1.xpose.msra.mxu0 0.0
      %1614 = vmatprep.subr.mxu0 0.0
      %1615 = vmatpush1.xpose.msra.mxu0 0.0
      %1616 = vmatprep.subr.mxu0 0.0
      %1617 = vmatpush1.xpose.msra.mxu0 0.0
      %1618 = vmatprep.subr.mxu0 0.0
      %1619 = vmatpush1.xpose.msra.mxu0 0.0
      %1620 = vmatprep.subr.mxu0 0.0
      %1621 = vmatpush1.xpose.msra.mxu0 0.0
      %1622 = vmatprep.subr.mxu0 0.0
      %1623 = vmatpush1.xpose.msra.mxu0 0.0
      %1624 = vmatprep.subr.mxu0 0.0
      %v1625 = vand.u32 %v1292, 4294901760
      %v1626 = vsub.f32 %v1292, %v1625
      %v1627 = vand.u32 %v1626, 4294901760
      %1628 = vmatpush1.xpose.msra.mxu0 %v1627
      %1629 = vmatprep.subr.mxu0 0.0
      %1630 = vmatpush2.xpose.msra.mxu0 0.0
      %1631 = vmatprep.subr.mxu0 0.0
      %1632 = vmatpush2.xpose.msra.mxu0 0.0
      %1633 = vmatprep.subr.mxu0 0.0
      %1634 = vmatpush2.xpose.msra.mxu0 0.0
      %1635 = vmatprep.subr.mxu0 0.0
      %1636 = vmatpush2.xpose.msra.mxu0 0.0
      %1637 = vmatprep.subr.mxu0 0.0
      %1638 = vmatpush2.xpose.msra.mxu0 0.0
      %1639 = vmatprep.subr.mxu0 0.0
      %1640 = vmatpush2.xpose.msra.mxu0 0.0
      %1641 = vmatprep.subr.mxu0 0.0
      %1642 = vmatpush2.xpose.msra.mxu0 0.0
      %1643 = vmatprep.subr.mxu0 0.0
      %1644 = vmatpush2.xpose.msra.mxu0 0.0
      %1645 = vmatprep.subr.mxu0 0.0
      %1646 = vmatpush2.xpose.msra.mxu0 0.0
      %1647 = vmatprep.subr.mxu0 0.0
      %1648 = vmatpush2.xpose.msra.mxu0 0.0
      %1649 = vmatprep.subr.mxu0 0.0
      %1650 = vmatpush2.xpose.msra.mxu0 0.0
      %1651 = vmatprep.subr.mxu0 0.0
      %1652 = vmatpush2.xpose.msra.mxu0 0.0
      %1653 = vmatprep.subr.mxu0 0.0
      %1654 = vmatpush2.xpose.msra.mxu0 0.0
      %1655 = vmatprep.subr.mxu0 0.0
      %1656 = vmatpush2.xpose.msra.mxu0 0.0
      %1657 = vmatprep.subr.mxu0 0.0
      %1658 = vmatpush2.xpose.msra.mxu0 0.0
      %1659 = vmatprep.subr.mxu0 0.0
      %1660 = vmatpush2.xpose.msra.mxu0 0.0
      %1661 = vmatprep.mubr.f32.mxu0 0.0
      %v1662 = vand.u32 %v1289, 4294901760
      %1663 = vmatmul.mubr.f32.gmra.mxu0 %v1662
      %v1664 = vpop.f32.mrf.mxu0
      %v1665 = vadd.f32 %v1591, %v1664
      %v1666 = vpop.f32.mrf.mxu0
      %1667 = vdwg.mxu0
      %1668 = vmatprep.subr.mxu0 0.0
      %1669 = vmatpush1.xpose.msra.mxu0 0.0
      %1670 = vmatprep.subr.mxu0 0.0
      %1671 = vmatpush1.xpose.msra.mxu0 0.0
      %1672 = vmatprep.subr.mxu0 0.0
      %1673 = vmatpush1.xpose.msra.mxu0 0.0
      %1674 = vmatprep.subr.mxu0 0.0
      %1675 = vmatpush1.xpose.msra.mxu0 0.0
      %1676 = vmatprep.subr.mxu0 0.0
      %1677 = vmatpush1.xpose.msra.mxu0 0.0
      %1678 = vmatprep.subr.mxu0 0.0
      %1679 = vmatpush1.xpose.msra.mxu0 0.0
      %1680 = vmatprep.subr.mxu0 0.0
      %1681 = vmatpush1.xpose.msra.mxu0 0.0
      %1682 = vmatprep.subr.mxu0 0.0
      %1683 = vmatpush1.xpose.msra.mxu0 0.0
      %1684 = vmatprep.subr.mxu0 0.0
      %1685 = vmatpush1.xpose.msra.mxu0 0.0
      %1686 = vmatprep.subr.mxu0 0.0
      %1687 = vmatpush1.xpose.msra.mxu0 0.0
      %1688 = vmatprep.subr.mxu0 0.0
      %1689 = vmatpush1.xpose.msra.mxu0 0.0
      %1690 = vmatprep.subr.mxu0 0.0
      %1691 = vmatpush1.xpose.msra.mxu0 0.0
      %1692 = vmatprep.subr.mxu0 0.0
      %1693 = vmatpush1.xpose.msra.mxu0 0.0
      %1694 = vmatprep.subr.mxu0 0.0
      %1695 = vmatpush1.xpose.msra.mxu0 0.0
      %1696 = vmatprep.subr.mxu0 0.0
      %1697 = vmatpush1.xpose.msra.mxu0 0.0
      %1698 = vmatprep.subr.mxu0 0.0
      %v1699 = vand.u32 %v1292, 4294901760
      %1700 = vmatpush1.xpose.msra.mxu0 %v1699
      %1701 = vmatprep.subr.mxu0 0.0
      %1702 = vmatpush2.xpose.msra.mxu0 0.0
      %1703 = vmatprep.subr.mxu0 0.0
      %1704 = vmatpush2.xpose.msra.mxu0 0.0
      %1705 = vmatprep.subr.mxu0 0.0
      %1706 = vmatpush2.xpose.msra.mxu0 0.0
      %1707 = vmatprep.subr.mxu0 0.0
      %1708 = vmatpush2.xpose.msra.mxu0 0.0
      %1709 = vmatprep.subr.mxu0 0.0
      %1710 = vmatpush2.xpose.msra.mxu0 0.0
      %1711 = vmatprep.subr.mxu0 0.0
      %1712 = vmatpush2.xpose.msra.mxu0 0.0
      %1713 = vmatprep.subr.mxu0 0.0
      %1714 = vmatpush2.xpose.msra.mxu0 0.0
      %1715 = vmatprep.subr.mxu0 0.0
      %1716 = vmatpush2.xpose.msra.mxu0 0.0
      %1717 = vmatprep.subr.mxu0 0.0
      %1718 = vmatpush2.xpose.msra.mxu0 0.0
      %1719 = vmatprep.subr.mxu0 0.0
      %1720 = vmatpush2.xpose.msra.mxu0 0.0
      %1721 = vmatprep.subr.mxu0 0.0
      %1722 = vmatpush2.xpose.msra.mxu0 0.0
      %1723 = vmatprep.subr.mxu0 0.0
      %1724 = vmatpush2.xpose.msra.mxu0 0.0
      %1725 = vmatprep.subr.mxu0 0.0
      %1726 = vmatpush2.xpose.msra.mxu0 0.0
      %1727 = vmatprep.subr.mxu0 0.0
      %1728 = vmatpush2.xpose.msra.mxu0 0.0
      %1729 = vmatprep.subr.mxu0 0.0
      %1730 = vmatpush2.xpose.msra.mxu0 0.0
      %1731 = vmatprep.subr.mxu0 0.0
      %1732 = vmatpush2.xpose.msra.mxu0 0.0
      %1733 = vmatprep.mubr.f32.mxu0 0.0
      %v1734 = vand.u32 %v1289, 4294901760
      %1735 = vmatmul.mubr.f32.gmra.mxu0 %v1734
      %v1736 = vpop.f32.mrf.mxu0
      %v1737 = vadd.f32 %v1665, %v1736
      %v1738 = vpop.f32.mrf.mxu0
      %1739 = vdwg.mxu0
      %v1740 = vlaneseq
      %v1741 = vshrl.u32 %v1740, 7
      %v1742 = vsub.s32 0, %v1741
      %v1743 = vrot.slane %v1282, %v1742
      %1744 = vrot.lane.b32.xlu0 %v1743, 96
      %v1745 = vpop.permute.xlu0 %1744
      %v1746 = vsel %vm75, %v1745, 0
      %v1749 = vsel %vm75, %v1260, 0
      %1751 = vmatprep.subr.mxu0 0.0
      %1752 = vmatpush1.xpose.msra.mxu0 0.0
      %1753 = vmatprep.subr.mxu0 0.0
      %1754 = vmatpush1.xpose.msra.mxu0 0.0
      %1755 = vmatprep.subr.mxu0 0.0
      %1756 = vmatpush1.xpose.msra.mxu0 0.0
      %1757 = vmatprep.subr.mxu0 0.0
      %1758 = vmatpush1.xpose.msra.mxu0 0.0
      %1759 = vmatprep.subr.mxu0 0.0
      %1760 = vmatpush1.xpose.msra.mxu0 0.0
      %1761 = vmatprep.subr.mxu0 0.0
      %1762 = vmatpush1.xpose.msra.mxu0 0.0
      %1763 = vmatprep.subr.mxu0 0.0
      %1764 = vmatpush1.xpose.msra.mxu0 0.0
      %1765 = vmatprep.subr.mxu0 0.0
      %1766 = vmatpush1.xpose.msra.mxu0 0.0
      %1767 = vmatprep.subr.mxu0 0.0
      %1768 = vmatpush1.xpose.msra.mxu0 0.0
      %1769 = vmatprep.subr.mxu0 0.0
      %1770 = vmatpush1.xpose.msra.mxu0 0.0
      %1771 = vmatprep.subr.mxu0 0.0
      %1772 = vmatpush1.xpose.msra.mxu0 0.0
      %1773 = vmatprep.subr.mxu0 0.0
      %1774 = vmatpush1.xpose.msra.mxu0 0.0
      %1775 = vmatprep.subr.mxu0 0.0
      %1776 = vmatpush1.xpose.msra.mxu0 0.0
      %1777 = vmatprep.subr.mxu0 0.0
      %1778 = vmatpush1.xpose.msra.mxu0 0.0
      %1779 = vmatprep.subr.mxu0 0.0
      %1780 = vmatpush1.xpose.msra.mxu0 0.0
      %1781 = vmatprep.subr.mxu0 0.0
      %v1782 = vand.u32 %v1749, 4294901760
      %1783 = vmatpush1.xpose.msra.mxu0 %v1782
      %1784 = vmatprep.subr.mxu0 0.0
      %1785 = vmatpush2.xpose.msra.mxu0 0.0
      %1786 = vmatprep.subr.mxu0 0.0
      %1787 = vmatpush2.xpose.msra.mxu0 0.0
      %1788 = vmatprep.subr.mxu0 0.0
      %1789 = vmatpush2.xpose.msra.mxu0 0.0
      %1790 = vmatprep.subr.mxu0 0.0
      %1791 = vmatpush2.xpose.msra.mxu0 0.0
      %1792 = vmatprep.subr.mxu0 0.0
      %1793 = vmatpush2.xpose.msra.mxu0 0.0
      %1794 = vmatprep.subr.mxu0 0.0
      %1795 = vmatpush2.xpose.msra.mxu0 0.0
      %1796 = vmatprep.subr.mxu0 0.0
      %1797 = vmatpush2.xpose.msra.mxu0 0.0
      %1798 = vmatprep.subr.mxu0 0.0
      %1799 = vmatpush2.xpose.msra.mxu0 0.0
      %1800 = vmatprep.subr.mxu0 0.0
      %1801 = vmatpush2.xpose.msra.mxu0 0.0
      %1802 = vmatprep.subr.mxu0 0.0
      %1803 = vmatpush2.xpose.msra.mxu0 0.0
      %1804 = vmatprep.subr.mxu0 0.0
      %1805 = vmatpush2.xpose.msra.mxu0 0.0
      %1806 = vmatprep.subr.mxu0 0.0
      %1807 = vmatpush2.xpose.msra.mxu0 0.0
      %1808 = vmatprep.subr.mxu0 0.0
      %1809 = vmatpush2.xpose.msra.mxu0 0.0
      %1810 = vmatprep.subr.mxu0 0.0
      %1811 = vmatpush2.xpose.msra.mxu0 0.0
      %1812 = vmatprep.subr.mxu0 0.0
      %1813 = vmatpush2.xpose.msra.mxu0 0.0
      %1814 = vmatprep.subr.mxu0 0.0
      %1815 = vmatpush2.xpose.msra.mxu0 0.0
      %1816 = vmatprep.mubr.f32.mxu0 0.0
      %v1817 = vand.u32 %v1746, 4294901760
      %v1818 = vsub.f32 %v1746, %v1817
      %v1819 = vand.u32 %v1818, 4294901760
      %v1820 = vsub.f32 %v1818, %v1819
      %v1821 = vand.u32 %v1820, 4294901760
      %1822 = vmatmul.mubr.f32.gmra.mxu0 %v1821
      %v1823 = vpop.f32.mrf.mxu0
      %v1824 = vadd.f32 0.0, %v1823
      %v1825 = vpop.f32.mrf.mxu0
      %1826 = vdwg.mxu0
      %1827 = vmatprep.subr.mxu0 0.0
      %1828 = vmatpush1.xpose.msra.mxu0 0.0
      %1829 = vmatprep.subr.mxu0 0.0
      %1830 = vmatpush1.xpose.msra.mxu0 0.0
      %1831 = vmatprep.subr.mxu0 0.0
      %1832 = vmatpush1.xpose.msra.mxu0 0.0
      %1833 = vmatprep.subr.mxu0 0.0
      %1834 = vmatpush1.xpose.msra.mxu0 0.0
      %1835 = vmatprep.subr.mxu0 0.0
      %1836 = vmatpush1.xpose.msra.mxu0 0.0
      %1837 = vmatprep.subr.mxu0 0.0
      %1838 = vmatpush1.xpose.msra.mxu0 0.0
      %1839 = vmatprep.subr.mxu0 0.0
      %1840 = vmatpush1.xpose.msra.mxu0 0.0
      %1841 = vmatprep.subr.mxu0 0.0
      %1842 = vmatpush1.xpose.msra.mxu0 0.0
      %1843 = vmatprep.subr.mxu0 0.0
      %1844 = vmatpush1.xpose.msra.mxu0 0.0
      %1845 = vmatprep.subr.mxu0 0.0
      %1846 = vmatpush1.xpose.msra.mxu0 0.0
      %1847 = vmatprep.subr.mxu0 0.0
      %1848 = vmatpush1.xpose.msra.mxu0 0.0
      %1849 = vmatprep.subr.mxu0 0.0
      %1850 = vmatpush1.xpose.msra.mxu0 0.0
      %1851 = vmatprep.subr.mxu0 0.0
      %1852 = vmatpush1.xpose.msra.mxu0 0.0
      %1853 = vmatprep.subr.mxu0 0.0
      %1854 = vmatpush1.xpose.msra.mxu0 0.0
      %1855 = vmatprep.subr.mxu0 0.0
      %1856 = vmatpush1.xpose.msra.mxu0 0.0
      %1857 = vmatprep.subr.mxu0 0.0
      %v1858 = vand.u32 %v1749, 4294901760
      %v1859 = vsub.f32 %v1749, %v1858
      %v1860 = vand.u32 %v1859, 4294901760
      %v1861 = vsub.f32 %v1859, %v1860
      %v1862 = vand.u32 %v1861, 4294901760
      %1863 = vmatpush1.xpose.msra.mxu0 %v1862
      %1864 = vmatprep.subr.mxu0 0.0
      %1865 = vmatpush2.xpose.msra.mxu0 0.0
      %1866 = vmatprep.subr.mxu0 0.0
      %1867 = vmatpush2.xpose.msra.mxu0 0.0
      %1868 = vmatprep.subr.mxu0 0.0
      %1869 = vmatpush2.xpose.msra.mxu0 0.0
      %1870 = vmatprep.subr.mxu0 0.0
      %1871 = vmatpush2.xpose.msra.mxu0 0.0
      %1872 = vmatprep.subr.mxu0 0.0
      %1873 = vmatpush2.xpose.msra.mxu0 0.0
      %1874 = vmatprep.subr.mxu0 0.0
      %1875 = vmatpush2.xpose.msra.mxu0 0.0
      %1876 = vmatprep.subr.mxu0 0.0
      %1877 = vmatpush2.xpose.msra.mxu0 0.0
      %1878 = vmatprep.subr.mxu0 0.0
      %1879 = vmatpush2.xpose.msra.mxu0 0.0
      %1880 = vmatprep.subr.mxu0 0.0
      %1881 = vmatpush2.xpose.msra.mxu0 0.0
      %1882 = vmatprep.subr.mxu0 0.0
      %1883 = vmatpush2.xpose.msra.mxu0 0.0
      %1884 = vmatprep.subr.mxu0 0.0
      %1885 = vmatpush2.xpose.msra.mxu0 0.0
      %1886 = vmatprep.subr.mxu0 0.0
      %1887 = vmatpush2.xpose.msra.mxu0 0.0
      %1888 = vmatprep.subr.mxu0 0.0
      %1889 = vmatpush2.xpose.msra.mxu0 0.0
      %1890 = vmatprep.subr.mxu0 0.0
      %1891 = vmatpush2.xpose.msra.mxu0 0.0
      %1892 = vmatprep.subr.mxu0 0.0
      %1893 = vmatpush2.xpose.msra.mxu0 0.0
      %1894 = vmatprep.subr.mxu0 0.0
      %1895 = vmatpush2.xpose.msra.mxu0 0.0
      %1896 = vmatprep.mubr.f32.mxu0 0.0
      %v1897 = vand.u32 %v1746, 4294901760
      %1898 = vmatmul.mubr.f32.gmra.mxu0 %v1897
      %v1899 = vpop.f32.mrf.mxu0
      %v1900 = vadd.f32 %v1824, %v1899
      %v1901 = vpop.f32.mrf.mxu0
      %1902 = vdwg.mxu0
      %1903 = vmatprep.subr.mxu0 0.0
      %1904 = vmatpush1.xpose.msra.mxu0 0.0
      %1905 = vmatprep.subr.mxu0 0.0
      %1906 = vmatpush1.xpose.msra.mxu0 0.0
      %1907 = vmatprep.subr.mxu0 0.0
      %1908 = vmatpush1.xpose.msra.mxu0 0.0
      %1909 = vmatprep.subr.mxu0 0.0
      %1910 = vmatpush1.xpose.msra.mxu0 0.0
      %1911 = vmatprep.subr.mxu0 0.0
      %1912 = vmatpush1.xpose.msra.mxu0 0.0
      %1913 = vmatprep.subr.mxu0 0.0
      %1914 = vmatpush1.xpose.msra.mxu0 0.0
      %1915 = vmatprep.subr.mxu0 0.0
      %1916 = vmatpush1.xpose.msra.mxu0 0.0
      %1917 = vmatprep.subr.mxu0 0.0
      %1918 = vmatpush1.xpose.msra.mxu0 0.0
      %1919 = vmatprep.subr.mxu0 0.0
      %1920 = vmatpush1.xpose.msra.mxu0 0.0
      %1921 = vmatprep.subr.mxu0 0.0
      %1922 = vmatpush1.xpose.msra.mxu0 0.0
      %1923 = vmatprep.subr.mxu0 0.0
      %1924 = vmatpush1.xpose.msra.mxu0 0.0
      %1925 = vmatprep.subr.mxu0 0.0
      %1926 = vmatpush1.xpose.msra.mxu0 0.0
      %1927 = vmatprep.subr.mxu0 0.0
      %1928 = vmatpush1.xpose.msra.mxu0 0.0
      %1929 = vmatprep.subr.mxu0 0.0
      %1930 = vmatpush1.xpose.msra.mxu0 0.0
      %1931 = vmatprep.subr.mxu0 0.0
      %1932 = vmatpush1.xpose.msra.mxu0 0.0
      %1933 = vmatprep.subr.mxu0 0.0
      %v1934 = vand.u32 %v1749, 4294901760
      %v1935 = vsub.f32 %v1749, %v1934
      %1936 = vmatpush1.xpose.msra.mxu0 %v1935
      %1937 = vmatprep.subr.mxu0 0.0
      %1938 = vmatpush2.xpose.msra.mxu0 0.0
      %1939 = vmatprep.subr.mxu0 0.0
      %1940 = vmatpush2.xpose.msra.mxu0 0.0
      %1941 = vmatprep.subr.mxu0 0.0
      %1942 = vmatpush2.xpose.msra.mxu0 0.0
      %1943 = vmatprep.subr.mxu0 0.0
      %1944 = vmatpush2.xpose.msra.mxu0 0.0
      %1945 = vmatprep.subr.mxu0 0.0
      %1946 = vmatpush2.xpose.msra.mxu0 0.0
      %1947 = vmatprep.subr.mxu0 0.0
      %1948 = vmatpush2.xpose.msra.mxu0 0.0
      %1949 = vmatprep.subr.mxu0 0.0
      %1950 = vmatpush2.xpose.msra.mxu0 0.0
      %1951 = vmatprep.subr.mxu0 0.0
      %1952 = vmatpush2.xpose.msra.mxu0 0.0
      %1953 = vmatprep.subr.mxu0 0.0
      %1954 = vmatpush2.xpose.msra.mxu0 0.0
      %1955 = vmatprep.subr.mxu0 0.0
      %1956 = vmatpush2.xpose.msra.mxu0 0.0
      %1957 = vmatprep.subr.mxu0 0.0
      %1958 = vmatpush2.xpose.msra.mxu0 0.0
      %1959 = vmatprep.subr.mxu0 0.0
      %1960 = vmatpush2.xpose.msra.mxu0 0.0
      %1961 = vmatprep.subr.mxu0 0.0
      %1962 = vmatpush2.xpose.msra.mxu0 0.0
      %1963 = vmatprep.subr.mxu0 0.0
      %1964 = vmatpush2.xpose.msra.mxu0 0.0
      %1965 = vmatprep.subr.mxu0 0.0
      %1966 = vmatpush2.xpose.msra.mxu0 0.0
      %1967 = vmatprep.subr.mxu0 0.0
      %1968 = vmatpush2.xpose.msra.mxu0 0.0
      %1969 = vmatprep.mubr.f32.mxu0 0.0
      %v1970 = vand.u32 %v1746, 4294901760
      %v1971 = vsub.f32 %v1746, %v1970
      %1972 = vmatmul.mubr.f32.gmra.mxu0 %v1971
      %v1973 = vpop.f32.mrf.mxu0
      %v1974 = vadd.f32 %v1900, %v1973
      %v1975 = vpop.f32.mrf.mxu0
      %1976 = vdwg.mxu0
      %1977 = vmatprep.subr.mxu0 0.0
      %1978 = vmatpush1.xpose.msra.mxu0 0.0
      %1979 = vmatprep.subr.mxu0 0.0
      %1980 = vmatpush1.xpose.msra.mxu0 0.0
      %1981 = vmatprep.subr.mxu0 0.0
      %1982 = vmatpush1.xpose.msra.mxu0 0.0
      %1983 = vmatprep.subr.mxu0 0.0
      %1984 = vmatpush1.xpose.msra.mxu0 0.0
      %1985 = vmatprep.subr.mxu0 0.0
      %1986 = vmatpush1.xpose.msra.mxu0 0.0
      %1987 = vmatprep.subr.mxu0 0.0
      %1988 = vmatpush1.xpose.msra.mxu0 0.0
      %1989 = vmatprep.subr.mxu0 0.0
      %1990 = vmatpush1.xpose.msra.mxu0 0.0
      %1991 = vmatprep.subr.mxu0 0.0
      %1992 = vmatpush1.xpose.msra.mxu0 0.0
      %1993 = vmatprep.subr.mxu0 0.0
      %1994 = vmatpush1.xpose.msra.mxu0 0.0
      %1995 = vmatprep.subr.mxu0 0.0
      %1996 = vmatpush1.xpose.msra.mxu0 0.0
      %1997 = vmatprep.subr.mxu0 0.0
      %1998 = vmatpush1.xpose.msra.mxu0 0.0
      %1999 = vmatprep.subr.mxu0 0.0
      %2000 = vmatpush1.xpose.msra.mxu0 0.0
      %2001 = vmatprep.subr.mxu0 0.0
      %2002 = vmatpush1.xpose.msra.mxu0 0.0
      %2003 = vmatprep.subr.mxu0 0.0
      %2004 = vmatpush1.xpose.msra.mxu0 0.0
      %2005 = vmatprep.subr.mxu0 0.0
      %2006 = vmatpush1.xpose.msra.mxu0 0.0
      %2007 = vmatprep.subr.mxu0 0.0
      %v2008 = vand.u32 %v1749, 4294901760
      %2009 = vmatpush1.xpose.msra.mxu0 %v2008
      %2010 = vmatprep.subr.mxu0 0.0
      %2011 = vmatpush2.xpose.msra.mxu0 0.0
      %2012 = vmatprep.subr.mxu0 0.0
      %2013 = vmatpush2.xpose.msra.mxu0 0.0
      %2014 = vmatprep.subr.mxu0 0.0
      %2015 = vmatpush2.xpose.msra.mxu0 0.0
      %2016 = vmatprep.subr.mxu0 0.0
      %2017 = vmatpush2.xpose.msra.mxu0 0.0
      %2018 = vmatprep.subr.mxu0 0.0
      %2019 = vmatpush2.xpose.msra.mxu0 0.0
      %2020 = vmatprep.subr.mxu0 0.0
      %2021 = vmatpush2.xpose.msra.mxu0 0.0
      %2022 = vmatprep.subr.mxu0 0.0
      %2023 = vmatpush2.xpose.msra.mxu0 0.0
      %2024 = vmatprep.subr.mxu0 0.0
      %2025 = vmatpush2.xpose.msra.mxu0 0.0
      %2026 = vmatprep.subr.mxu0 0.0
      %2027 = vmatpush2.xpose.msra.mxu0 0.0
      %2028 = vmatprep.subr.mxu0 0.0
      %2029 = vmatpush2.xpose.msra.mxu0 0.0
      %2030 = vmatprep.subr.mxu0 0.0
      %2031 = vmatpush2.xpose.msra.mxu0 0.0
      %2032 = vmatprep.subr.mxu0 0.0
      %2033 = vmatpush2.xpose.msra.mxu0 0.0
      %2034 = vmatprep.subr.mxu0 0.0
      %2035 = vmatpush2.xpose.msra.mxu0 0.0
      %2036 = vmatprep.subr.mxu0 0.0
      %2037 = vmatpush2.xpose.msra.mxu0 0.0
      %2038 = vmatprep.subr.mxu0 0.0
      %2039 = vmatpush2.xpose.msra.mxu0 0.0
      %2040 = vmatprep.subr.mxu0 0.0
      %2041 = vmatpush2.xpose.msra.mxu0 0.0
      %2042 = vmatprep.mubr.f32.mxu0 0.0
      %v2043 = vand.u32 %v1746, 4294901760
      %v2044 = vsub.f32 %v1746, %v2043
      %v2045 = vand.u32 %v2044, 4294901760
      %2046 = vmatmul.mubr.f32.gmra.mxu0 %v2045
      %v2047 = vpop.f32.mrf.mxu0
      %v2048 = vadd.f32 %v1974, %v2047
      %v2049 = vpop.f32.mrf.mxu0
      %2050 = vdwg.mxu0
      %2051 = vmatprep.subr.mxu0 0.0
      %2052 = vmatpush1.xpose.msra.mxu0 0.0
      %2053 = vmatprep.subr.mxu0 0.0
      %2054 = vmatpush1.xpose.msra.mxu0 0.0
      %2055 = vmatprep.subr.mxu0 0.0
      %2056 = vmatpush1.xpose.msra.mxu0 0.0
      %2057 = vmatprep.subr.mxu0 0.0
      %2058 = vmatpush1.xpose.msra.mxu0 0.0
      %2059 = vmatprep.subr.mxu0 0.0
      %2060 = vmatpush1.xpose.msra.mxu0 0.0
      %2061 = vmatprep.subr.mxu0 0.0
      %2062 = vmatpush1.xpose.msra.mxu0 0.0
      %2063 = vmatprep.subr.mxu0 0.0
      %2064 = vmatpush1.xpose.msra.mxu0 0.0
      %2065 = vmatprep.subr.mxu0 0.0
      %2066 = vmatpush1.xpose.msra.mxu0 0.0
      %2067 = vmatprep.subr.mxu0 0.0
      %2068 = vmatpush1.xpose.msra.mxu0 0.0
      %2069 = vmatprep.subr.mxu0 0.0
      %2070 = vmatpush1.xpose.msra.mxu0 0.0
      %2071 = vmatprep.subr.mxu0 0.0
      %2072 = vmatpush1.xpose.msra.mxu0 0.0
      %2073 = vmatprep.subr.mxu0 0.0
      %2074 = vmatpush1.xpose.msra.mxu0 0.0
      %2075 = vmatprep.subr.mxu0 0.0
      %2076 = vmatpush1.xpose.msra.mxu0 0.0
      %2077 = vmatprep.subr.mxu0 0.0
      %2078 = vmatpush1.xpose.msra.mxu0 0.0
      %2079 = vmatprep.subr.mxu0 0.0
      %2080 = vmatpush1.xpose.msra.mxu0 0.0
      %2081 = vmatprep.subr.mxu0 0.0
      %v2082 = vand.u32 %v1749, 4294901760
      %v2083 = vsub.f32 %v1749, %v2082
      %v2084 = vand.u32 %v2083, 4294901760
      %2085 = vmatpush1.xpose.msra.mxu0 %v2084
      %2086 = vmatprep.subr.mxu0 0.0
      %2087 = vmatpush2.xpose.msra.mxu0 0.0
      %2088 = vmatprep.subr.mxu0 0.0
      %2089 = vmatpush2.xpose.msra.mxu0 0.0
      %2090 = vmatprep.subr.mxu0 0.0
      %2091 = vmatpush2.xpose.msra.mxu0 0.0
      %2092 = vmatprep.subr.mxu0 0.0
      %2093 = vmatpush2.xpose.msra.mxu0 0.0
      %2094 = vmatprep.subr.mxu0 0.0
      %2095 = vmatpush2.xpose.msra.mxu0 0.0
      %2096 = vmatprep.subr.mxu0 0.0
      %2097 = vmatpush2.xpose.msra.mxu0 0.0
      %2098 = vmatprep.subr.mxu0 0.0
      %2099 = vmatpush2.xpose.msra.mxu0 0.0
      %2100 = vmatprep.subr.mxu0 0.0
      %2101 = vmatpush2.xpose.msra.mxu0 0.0
      %2102 = vmatprep.subr.mxu0 0.0
      %2103 = vmatpush2.xpose.msra.mxu0 0.0
      %2104 = vmatprep.subr.mxu0 0.0
      %2105 = vmatpush2.xpose.msra.mxu0 0.0
      %2106 = vmatprep.subr.mxu0 0.0
      %2107 = vmatpush2.xpose.msra.mxu0 0.0
      %2108 = vmatprep.subr.mxu0 0.0
      %2109 = vmatpush2.xpose.msra.mxu0 0.0
      %2110 = vmatprep.subr.mxu0 0.0
      %2111 = vmatpush2.xpose.msra.mxu0 0.0
      %2112 = vmatprep.subr.mxu0 0.0
      %2113 = vmatpush2.xpose.msra.mxu0 0.0
      %2114 = vmatprep.subr.mxu0 0.0
      %2115 = vmatpush2.xpose.msra.mxu0 0.0
      %2116 = vmatprep.subr.mxu0 0.0
      %2117 = vmatpush2.xpose.msra.mxu0 0.0
      %2118 = vmatprep.mubr.f32.mxu0 0.0
      %v2119 = vand.u32 %v1746, 4294901760
      %2120 = vmatmul.mubr.f32.gmra.mxu0 %v2119
      %v2121 = vpop.f32.mrf.mxu0
      %v2122 = vadd.f32 %v2048, %v2121
      %v2123 = vpop.f32.mrf.mxu0
      %2124 = vdwg.mxu0
      %2125 = vmatprep.subr.mxu0 0.0
      %2126 = vmatpush1.xpose.msra.mxu0 0.0
      %2127 = vmatprep.subr.mxu0 0.0
      %2128 = vmatpush1.xpose.msra.mxu0 0.0
      %2129 = vmatprep.subr.mxu0 0.0
      %2130 = vmatpush1.xpose.msra.mxu0 0.0
      %2131 = vmatprep.subr.mxu0 0.0
      %2132 = vmatpush1.xpose.msra.mxu0 0.0
      %2133 = vmatprep.subr.mxu0 0.0
      %2134 = vmatpush1.xpose.msra.mxu0 0.0
      %2135 = vmatprep.subr.mxu0 0.0
      %2136 = vmatpush1.xpose.msra.mxu0 0.0
      %2137 = vmatprep.subr.mxu0 0.0
      %2138 = vmatpush1.xpose.msra.mxu0 0.0
      %2139 = vmatprep.subr.mxu0 0.0
      %2140 = vmatpush1.xpose.msra.mxu0 0.0
      %2141 = vmatprep.subr.mxu0 0.0
      %2142 = vmatpush1.xpose.msra.mxu0 0.0
      %2143 = vmatprep.subr.mxu0 0.0
      %2144 = vmatpush1.xpose.msra.mxu0 0.0
      %2145 = vmatprep.subr.mxu0 0.0
      %2146 = vmatpush1.xpose.msra.mxu0 0.0
      %2147 = vmatprep.subr.mxu0 0.0
      %2148 = vmatpush1.xpose.msra.mxu0 0.0
      %2149 = vmatprep.subr.mxu0 0.0
      %2150 = vmatpush1.xpose.msra.mxu0 0.0
      %2151 = vmatprep.subr.mxu0 0.0
      %2152 = vmatpush1.xpose.msra.mxu0 0.0
      %2153 = vmatprep.subr.mxu0 0.0
      %2154 = vmatpush1.xpose.msra.mxu0 0.0
      %2155 = vmatprep.subr.mxu0 0.0
      %v2156 = vand.u32 %v1749, 4294901760
      %2157 = vmatpush1.xpose.msra.mxu0 %v2156
      %2158 = vmatprep.subr.mxu0 0.0
      %2159 = vmatpush2.xpose.msra.mxu0 0.0
      %2160 = vmatprep.subr.mxu0 0.0
      %2161 = vmatpush2.xpose.msra.mxu0 0.0
      %2162 = vmatprep.subr.mxu0 0.0
      %2163 = vmatpush2.xpose.msra.mxu0 0.0
      %2164 = vmatprep.subr.mxu0 0.0
      %2165 = vmatpush2.xpose.msra.mxu0 0.0
      %2166 = vmatprep.subr.mxu0 0.0
      %2167 = vmatpush2.xpose.msra.mxu0 0.0
      %2168 = vmatprep.subr.mxu0 0.0
      %2169 = vmatpush2.xpose.msra.mxu0 0.0
      %2170 = vmatprep.subr.mxu0 0.0
      %2171 = vmatpush2.xpose.msra.mxu0 0.0
      %2172 = vmatprep.subr.mxu0 0.0
      %2173 = vmatpush2.xpose.msra.mxu0 0.0
      %2174 = vmatprep.subr.mxu0 0.0
      %2175 = vmatpush2.xpose.msra.mxu0 0.0
      %2176 = vmatprep.subr.mxu0 0.0
      %2177 = vmatpush2.xpose.msra.mxu0 0.0
      %2178 = vmatprep.subr.mxu0 0.0
      %2179 = vmatpush2.xpose.msra.mxu0 0.0
      %2180 = vmatprep.subr.mxu0 0.0
      %2181 = vmatpush2.xpose.msra.mxu0 0.0
      %2182 = vmatprep.subr.mxu0 0.0
      %2183 = vmatpush2.xpose.msra.mxu0 0.0
      %2184 = vmatprep.subr.mxu0 0.0
      %2185 = vmatpush2.xpose.msra.mxu0 0.0
      %2186 = vmatprep.subr.mxu0 0.0
      %2187 = vmatpush2.xpose.msra.mxu0 0.0
      %2188 = vmatprep.subr.mxu0 0.0
      %2189 = vmatpush2.xpose.msra.mxu0 0.0
      %2190 = vmatprep.mubr.f32.mxu0 0.0
      %v2191 = vand.u32 %v1746, 4294901760
      %2192 = vmatmul.mubr.f32.gmra.mxu0 %v2191
      %v2193 = vpop.f32.mrf.mxu0
      %v2194 = vadd.f32 %v2122, %v2193
      %v2195 = vpop.f32.mrf.mxu0
      %2196 = vdwg.mxu0
      %vm2197 = vcmask 57344
      %v2198 = vsel %vm2197, %v1737, -inf
      %2199 = vmax.xlane.f32.xlu0 %v2198
      %v2200 = vpop.xlane.xlu0 %2199
      %v2201 = vsel %vm2197, %v2194, -inf
      %2202 = vmax.xlane.f32.xlu0 %v2201
      %v2203 = vpop.xlane.xlu0 %2202
      %v2204 = vsub.f32 %v1737, %v2200
      %v2205 = vsub.f32 %v2194, %v2203
      %v2206 = vmul.f32 %v2204, 1.442695
      %v2207 = vpow.pop %v2206
      %v2208 = vmul.f32 %v2205, 1.442695
      %v2209 = vpow.pop %v2208
      %v2210 = vsel %vm2197, %v2207, 0.0
      %2211 = vadd.xlane.f32.xlu0 %v2210
      %v2212 = vpop.xlane.xlu0 %2211
      %v2213 = vsel %vm2197, %v2209, 0.0
      %2214 = vadd.xlane.f32.xlu0 %v2213
      %v2215 = vpop.xlane.xlu0 %2214
      %v2216 = vrcp.pop %v2212
      %v2217 = vrcp.pop %v2215
      %v2218 = vmul.f32 %v2207, %v2216
      %v2219 = vmul.f32 %v2209, %v2217
      %v2222 = vrot.slane %v2219, 7
      %vm2223 = vcmask 1041409
      %v2224 = vsel %vm2223, %v2222, %v2218
      %vm2226 = vcmask 58368
      %2227 = vst.msk [vmem:[#allocation13] sm:$0x3] %vm2226, %v2224
      %vm2228 = vcmask 64512
      %v2229 = vsel %vm2228, %v2218, 0
      %2231 = vmatprep.subr.mxu0 0.0
      %2232 = vmatpush1.msra.mxu0 0.0
      %2233 = vmatprep.subr.mxu0 0.0
      %2234 = vmatpush1.msra.mxu0 0.0
      %2235 = vmatprep.subr.mxu0 0.0
      %2236 = vmatpush1.msra.mxu0 0.0
      %2237 = vmatprep.subr.mxu0 0.0
      %2238 = vmatpush1.msra.mxu0 0.0
      %2239 = vmatprep.subr.mxu0 0.0
      %2240 = vmatpush1.msra.mxu0 0.0
      %2241 = vmatprep.subr.mxu0 0.0
      %2242 = vmatpush1.msra.mxu0 0.0
      %2243 = vmatprep.subr.mxu0 0.0
      %2244 = vmatpush1.msra.mxu0 0.0
      %2245 = vmatprep.subr.mxu0 0.0
      %2246 = vmatpush1.msra.mxu0 0.0
      %2247 = vmatprep.subr.mxu0 0.0
      %2248 = vmatpush1.msra.mxu0 0.0
      %2249 = vmatprep.subr.mxu0 0.0
      %2250 = vmatpush1.msra.mxu0 0.0
      %2251 = vmatprep.subr.mxu0 0.0
      %2252 = vmatpush1.msra.mxu0 0.0
      %2253 = vmatprep.subr.mxu0 0.0
      %2254 = vmatpush1.msra.mxu0 0.0
      %2255 = vmatprep.subr.mxu0 0.0
      %2256 = vmatpush1.msra.mxu0 0.0
      %2257 = vmatprep.subr.mxu0 0.0
      %2258 = vmatpush1.msra.mxu0 0.0
      %2259 = vmatprep.subr.mxu0 0.0
      %2260 = vmatpush1.msra.mxu0 0.0
      %2261 = vmatprep.subr.mxu0 0.0
      %v2262 = vand.u32 %v1259, 4294901760
      %2263 = vmatpush1.msra.mxu0 %v2262
      %2264 = vmatprep.subr.mxu0 0.0
      %2265 = vmatpush2.msra.mxu0 0.0
      %2266 = vmatprep.subr.mxu0 0.0
      %2267 = vmatpush2.msra.mxu0 0.0
      %2268 = vmatprep.subr.mxu0 0.0
      %2269 = vmatpush2.msra.mxu0 0.0
      %2270 = vmatprep.subr.mxu0 0.0
      %2271 = vmatpush2.msra.mxu0 0.0
      %2272 = vmatprep.subr.mxu0 0.0
      %2273 = vmatpush2.msra.mxu0 0.0
      %2274 = vmatprep.subr.mxu0 0.0
      %2275 = vmatpush2.msra.mxu0 0.0
      %2276 = vmatprep.subr.mxu0 0.0
      %2277 = vmatpush2.msra.mxu0 0.0
      %2278 = vmatprep.subr.mxu0 0.0
      %2279 = vmatpush2.msra.mxu0 0.0
      %2280 = vmatprep.subr.mxu0 0.0
      %2281 = vmatpush2.msra.mxu0 0.0
      %2282 = vmatprep.subr.mxu0 0.0
      %2283 = vmatpush2.msra.mxu0 0.0
      %2284 = vmatprep.subr.mxu0 0.0
      %2285 = vmatpush2.msra.mxu0 0.0
      %2286 = vmatprep.subr.mxu0 0.0
      %2287 = vmatpush2.msra.mxu0 0.0
      %2288 = vmatprep.subr.mxu0 0.0
      %2289 = vmatpush2.msra.mxu0 0.0
      %2290 = vmatprep.subr.mxu0 0.0
      %2291 = vmatpush2.msra.mxu0 0.0
      %2292 = vmatprep.subr.mxu0 0.0
      %2293 = vmatpush2.msra.mxu0 0.0
      %2294 = vmatprep.subr.mxu0 0.0
      %2295 = vmatpush2.msra.mxu0 0.0
      %2296 = vmatprep.mubr.f32.mxu0 0.0
      %v2297 = vand.u32 %v2229, 4294901760
      %v2298 = vsub.f32 %v2229, %v2297
      %v2299 = vand.u32 %v2298, 4294901760
      %v2300 = vsub.f32 %v2298, %v2299
      %v2301 = vand.u32 %v2300, 4294901760
      %2302 = vmatmul.mubr.f32.gmra.mxu0 %v2301
      %v2303 = vpop.f32.mrf.mxu0
      %v2304 = vadd.f32 0.0, %v2303
      %v2305 = vpop.f32.mrf.mxu0
      %2306 = vdwg.mxu0
      %2307 = vmatprep.subr.mxu0 0.0
      %2308 = vmatpush1.msra.mxu0 0.0
      %2309 = vmatprep.subr.mxu0 0.0
      %2310 = vmatpush1.msra.mxu0 0.0
      %2311 = vmatprep.subr.mxu0 0.0
      %2312 = vmatpush1.msra.mxu0 0.0
      %2313 = vmatprep.subr.mxu0 0.0
      %2314 = vmatpush1.msra.mxu0 0.0
      %2315 = vmatprep.subr.mxu0 0.0
      %2316 = vmatpush1.msra.mxu0 0.0
      %2317 = vmatprep.subr.mxu0 0.0
      %2318 = vmatpush1.msra.mxu0 0.0
      %2319 = vmatprep.subr.mxu0 0.0
      %2320 = vmatpush1.msra.mxu0 0.0
      %2321 = vmatprep.subr.mxu0 0.0
      %2322 = vmatpush1.msra.mxu0 0.0
      %2323 = vmatprep.subr.mxu0 0.0
      %2324 = vmatpush1.msra.mxu0 0.0
      %2325 = vmatprep.subr.mxu0 0.0
      %2326 = vmatpush1.msra.mxu0 0.0
      %2327 = vmatprep.subr.mxu0 0.0
      %2328 = vmatpush1.msra.mxu0 0.0
      %2329 = vmatprep.subr.mxu0 0.0
      %2330 = vmatpush1.msra.mxu0 0.0
      %2331 = vmatprep.subr.mxu0 0.0
      %2332 = vmatpush1.msra.mxu0 0.0
      %2333 = vmatprep.subr.mxu0 0.0
      %2334 = vmatpush1.msra.mxu0 0.0
      %2335 = vmatprep.subr.mxu0 0.0
      %2336 = vmatpush1.msra.mxu0 0.0
      %2337 = vmatprep.subr.mxu0 0.0
      %v2338 = vand.u32 %v1259, 4294901760
      %v2339 = vsub.f32 %v1259, %v2338
      %v2340 = vand.u32 %v2339, 4294901760
      %v2341 = vsub.f32 %v2339, %v2340
      %v2342 = vand.u32 %v2341, 4294901760
      %2343 = vmatpush1.msra.mxu0 %v2342
      %2344 = vmatprep.subr.mxu0 0.0
      %2345 = vmatpush2.msra.mxu0 0.0
      %2346 = vmatprep.subr.mxu0 0.0
      %2347 = vmatpush2.msra.mxu0 0.0
      %2348 = vmatprep.subr.mxu0 0.0
      %2349 = vmatpush2.msra.mxu0 0.0
      %2350 = vmatprep.subr.mxu0 0.0
      %2351 = vmatpush2.msra.mxu0 0.0
      %2352 = vmatprep.subr.mxu0 0.0
      %2353 = vmatpush2.msra.mxu0 0.0
      %2354 = vmatprep.subr.mxu0 0.0
      %2355 = vmatpush2.msra.mxu0 0.0
      %2356 = vmatprep.subr.mxu0 0.0
      %2357 = vmatpush2.msra.mxu0 0.0
      %2358 = vmatprep.subr.mxu0 0.0
      %2359 = vmatpush2.msra.mxu0 0.0
      %2360 = vmatprep.subr.mxu0 0.0
      %2361 = vmatpush2.msra.mxu0 0.0
      %2362 = vmatprep.subr.mxu0 0.0
      %2363 = vmatpush2.msra.mxu0 0.0
      %2364 = vmatprep.subr.mxu0 0.0
      %2365 = vmatpush2.msra.mxu0 0.0
      %2366 = vmatprep.subr.mxu0 0.0
      %2367 = vmatpush2.msra.mxu0 0.0
      %2368 = vmatprep.subr.mxu0 0.0
      %2369 = vmatpush2.msra.mxu0 0.0
      %2370 = vmatprep.subr.mxu0 0.0
      %2371 = vmatpush2.msra.mxu0 0.0
      %2372 = vmatprep.subr.mxu0 0.0
      %2373 = vmatpush2.msra.mxu0 0.0
      %2374 = vmatprep.subr.mxu0 0.0
      %2375 = vmatpush2.msra.mxu0 0.0
      %2376 = vmatprep.mubr.f32.mxu0 0.0
      %v2377 = vand.u32 %v2229, 4294901760
      %2378 = vmatmul.mubr.f32.gmra.mxu0 %v2377
      %v2379 = vpop.f32.mrf.mxu0
      %v2380 = vadd.f32 %v2304, %v2379
      %v2381 = vpop.f32.mrf.mxu0
      %2382 = vdwg.mxu0
      %2383 = vmatprep.subr.mxu0 0.0
      %2384 = vmatpush1.msra.mxu0 0.0
      %2385 = vmatprep.subr.mxu0 0.0
      %2386 = vmatpush1.msra.mxu0 0.0
      %2387 = vmatprep.subr.mxu0 0.0
      %2388 = vmatpush1.msra.mxu0 0.0
      %2389 = vmatprep.subr.mxu0 0.0
      %2390 = vmatpush1.msra.mxu0 0.0
      %2391 = vmatprep.subr.mxu0 0.0
      %2392 = vmatpush1.msra.mxu0 0.0
      %2393 = vmatprep.subr.mxu0 0.0
      %2394 = vmatpush1.msra.mxu0 0.0
      %2395 = vmatprep.subr.mxu0 0.0
      %2396 = vmatpush1.msra.mxu0 0.0
      %2397 = vmatprep.subr.mxu0 0.0
      %2398 = vmatpush1.msra.mxu0 0.0
      %2399 = vmatprep.subr.mxu0 0.0
      %2400 = vmatpush1.msra.mxu0 0.0
      %2401 = vmatprep.subr.mxu0 0.0
      %2402 = vmatpush1.msra.mxu0 0.0
      %2403 = vmatprep.subr.mxu0 0.0
      %2404 = vmatpush1.msra.mxu0 0.0
      %2405 = vmatprep.subr.mxu0 0.0
      %2406 = vmatpush1.msra.mxu0 0.0
      %2407 = vmatprep.subr.mxu0 0.0
      %2408 = vmatpush1.msra.mxu0 0.0
      %2409 = vmatprep.subr.mxu0 0.0
      %2410 = vmatpush1.msra.mxu0 0.0
      %2411 = vmatprep.subr.mxu0 0.0
      %2412 = vmatpush1.msra.mxu0 0.0
      %2413 = vmatprep.subr.mxu0 0.0
      %v2414 = vand.u32 %v1259, 4294901760
      %v2415 = vsub.f32 %v1259, %v2414
      %2416 = vmatpush1.msra.mxu0 %v2415
      %2417 = vmatprep.subr.mxu0 0.0
      %2418 = vmatpush2.msra.mxu0 0.0
      %2419 = vmatprep.subr.mxu0 0.0
      %2420 = vmatpush2.msra.mxu0 0.0
      %2421 = vmatprep.subr.mxu0 0.0
      %2422 = vmatpush2.msra.mxu0 0.0
      %2423 = vmatprep.subr.mxu0 0.0
      %2424 = vmatpush2.msra.mxu0 0.0
      %2425 = vmatprep.subr.mxu0 0.0
      %2426 = vmatpush2.msra.mxu0 0.0
      %2427 = vmatprep.subr.mxu0 0.0
      %2428 = vmatpush2.msra.mxu0 0.0
      %2429 = vmatprep.subr.mxu0 0.0
      %2430 = vmatpush2.msra.mxu0 0.0
      %2431 = vmatprep.subr.mxu0 0.0
      %2432 = vmatpush2.msra.mxu0 0.0
      %2433 = vmatprep.subr.mxu0 0.0
      %2434 = vmatpush2.msra.mxu0 0.0
      %2435 = vmatprep.subr.mxu0 0.0
      %2436 = vmatpush2.msra.mxu0 0.0
      %2437 = vmatprep.subr.mxu0 0.0
      %2438 = vmatpush2.msra.mxu0 0.0
      %2439 = vmatprep.subr.mxu0 0.0
      %2440 = vmatpush2.msra.mxu0 0.0
      %2441 = vmatprep.subr.mxu0 0.0
      %2442 = vmatpush2.msra.mxu0 0.0
      %2443 = vmatprep.subr.mxu0 0.0
      %2444 = vmatpush2.msra.mxu0 0.0
      %2445 = vmatprep.subr.mxu0 0.0
      %2446 = vmatpush2.msra.mxu0 0.0
      %2447 = vmatprep.subr.mxu0 0.0
      %2448 = vmatpush2.msra.mxu0 0.0
      %2449 = vmatprep.mubr.f32.mxu0 0.0
      %v2450 = vand.u32 %v2229, 4294901760
      %v2451 = vsub.f32 %v2229, %v2450
      %2452 = vmatmul.mubr.f32.gmra.mxu0 %v2451
      %v2453 = vpop.f32.mrf.mxu0
      %v2454 = vadd.f32 %v2380, %v2453
      %v2455 = vpop.f32.mrf.mxu0
      %2456 = vdwg.mxu0
      %2457 = vmatprep.subr.mxu0 0.0
      %2458 = vmatpush1.msra.mxu0 0.0
      %2459 = vmatprep.subr.mxu0 0.0
      %2460 = vmatpush1.msra.mxu0 0.0
      %2461 = vmatprep.subr.mxu0 0.0
      %2462 = vmatpush1.msra.mxu0 0.0
      %2463 = vmatprep.subr.mxu0 0.0
      %2464 = vmatpush1.msra.mxu0 0.0
      %2465 = vmatprep.subr.mxu0 0.0
      %2466 = vmatpush1.msra.mxu0 0.0
      %2467 = vmatprep.subr.mxu0 0.0
      %2468 = vmatpush1.msra.mxu0 0.0
      %2469 = vmatprep.subr.mxu0 0.0
      %2470 = vmatpush1.msra.mxu0 0.0
      %2471 = vmatprep.subr.mxu0 0.0
      %2472 = vmatpush1.msra.mxu0 0.0
      %2473 = vmatprep.subr.mxu0 0.0
      %2474 = vmatpush1.msra.mxu0 0.0
      %2475 = vmatprep.subr.mxu0 0.0
      %2476 = vmatpush1.msra.mxu0 0.0
      %2477 = vmatprep.subr.mxu0 0.0
      %2478 = vmatpush1.msra.mxu0 0.0
      %2479 = vmatprep.subr.mxu0 0.0
      %2480 = vmatpush1.msra.mxu0 0.0
      %2481 = vmatprep.subr.mxu0 0.0
      %2482 = vmatpush1.msra.mxu0 0.0
      %2483 = vmatprep.subr.mxu0 0.0
      %2484 = vmatpush1.msra.mxu0 0.0
      %2485 = vmatprep.subr.mxu0 0.0
      %2486 = vmatpush1.msra.mxu0 0.0
      %2487 = vmatprep.subr.mxu0 0.0
      %v2488 = vand.u32 %v1259, 4294901760
      %2489 = vmatpush1.msra.mxu0 %v2488
      %2490 = vmatprep.subr.mxu0 0.0
      %2491 = vmatpush2.msra.mxu0 0.0
      %2492 = vmatprep.subr.mxu0 0.0
      %2493 = vmatpush2.msra.mxu0 0.0
      %2494 = vmatprep.subr.mxu0 0.0
      %2495 = vmatpush2.msra.mxu0 0.0
      %2496 = vmatprep.subr.mxu0 0.0
      %2497 = vmatpush2.msra.mxu0 0.0
      %2498 = vmatprep.subr.mxu0 0.0
      %2499 = vmatpush2.msra.mxu0 0.0
      %2500 = vmatprep.subr.mxu0 0.0
      %2501 = vmatpush2.msra.mxu0 0.0
      %2502 = vmatprep.subr.mxu0 0.0
      %2503 = vmatpush2.msra.mxu0 0.0
      %2504 = vmatprep.subr.mxu0 0.0
      %2505 = vmatpush2.msra.mxu0 0.0
      %2506 = vmatprep.subr.mxu0 0.0
      %2507 = vmatpush2.msra.mxu0 0.0
      %2508 = vmatprep.subr.mxu0 0.0
      %2509 = vmatpush2.msra.mxu0 0.0
      %2510 = vmatprep.subr.mxu0 0.0
      %2511 = vmatpush2.msra.mxu0 0.0
      %2512 = vmatprep.subr.mxu0 0.0
      %2513 = vmatpush2.msra.mxu0 0.0
      %2514 = vmatprep.subr.mxu0 0.0
      %2515 = vmatpush2.msra.mxu0 0.0
      %2516 = vmatprep.subr.mxu0 0.0
      %2517 = vmatpush2.msra.mxu0 0.0
      %2518 = vmatprep.subr.mxu0 0.0
      %2519 = vmatpush2.msra.mxu0 0.0
      %2520 = vmatprep.subr.mxu0 0.0
      %2521 = vmatpush2.msra.mxu0 0.0
      %2522 = vmatprep.mubr.f32.mxu0 0.0
      %v2523 = vand.u32 %v2229, 4294901760
      %v2524 = vsub.f32 %v2229, %v2523
      %v2525 = vand.u32 %v2524, 4294901760
      %2526 = vmatmul.mubr.f32.gmra.mxu0 %v2525
      %v2527 = vpop.f32.mrf.mxu0
      %v2528 = vadd.f32 %v2454, %v2527
      %v2529 = vpop.f32.mrf.mxu0
      %2530 = vdwg.mxu0
      %2531 = vmatprep.subr.mxu0 0.0
      %2532 = vmatpush1.msra.mxu0 0.0
      %2533 = vmatprep.subr.mxu0 0.0
      %2534 = vmatpush1.msra.mxu0 0.0
      %2535 = vmatprep.subr.mxu0 0.0
      %2536 = vmatpush1.msra.mxu0 0.0
      %2537 = vmatprep.subr.mxu0 0.0
      %2538 = vmatpush1.msra.mxu0 0.0
      %2539 = vmatprep.subr.mxu0 0.0
      %2540 = vmatpush1.msra.mxu0 0.0
      %2541 = vmatprep.subr.mxu0 0.0
      %2542 = vmatpush1.msra.mxu0 0.0
      %2543 = vmatprep.subr.mxu0 0.0
      %2544 = vmatpush1.msra.mxu0 0.0
      %2545 = vmatprep.subr.mxu0 0.0
      %2546 = vmatpush1.msra.mxu0 0.0
      %2547 = vmatprep.subr.mxu0 0.0
      %2548 = vmatpush1.msra.mxu0 0.0
      %2549 = vmatprep.subr.mxu0 0.0
      %2550 = vmatpush1.msra.mxu0 0.0
      %2551 = vmatprep.subr.mxu0 0.0
      %2552 = vmatpush1.msra.mxu0 0.0
      %2553 = vmatprep.subr.mxu0 0.0
      %2554 = vmatpush1.msra.mxu0 0.0
      %2555 = vmatprep.subr.mxu0 0.0
      %2556 = vmatpush1.msra.mxu0 0.0
      %2557 = vmatprep.subr.mxu0 0.0
      %2558 = vmatpush1.msra.mxu0 0.0
      %2559 = vmatprep.subr.mxu0 0.0
      %2560 = vmatpush1.msra.mxu0 0.0
      %2561 = vmatprep.subr.mxu0 0.0
      %v2562 = vand.u32 %v1259, 4294901760
      %v2563 = vsub.f32 %v1259, %v2562
      %v2564 = vand.u32 %v2563, 4294901760
      %2565 = vmatpush1.msra.mxu0 %v2564
      %2566 = vmatprep.subr.mxu0 0.0
      %2567 = vmatpush2.msra.mxu0 0.0
      %2568 = vmatprep.subr.mxu0 0.0
      %2569 = vmatpush2.msra.mxu0 0.0
      %2570 = vmatprep.subr.mxu0 0.0
      %2571 = vmatpush2.msra.mxu0 0.0
      %2572 = vmatprep.subr.mxu0 0.0
      %2573 = vmatpush2.msra.mxu0 0.0
      %2574 = vmatprep.subr.mxu0 0.0
      %2575 = vmatpush2.msra.mxu0 0.0
      %2576 = vmatprep.subr.mxu0 0.0
      %2577 = vmatpush2.msra.mxu0 0.0
      %2578 = vmatprep.subr.mxu0 0.0
      %2579 = vmatpush2.msra.mxu0 0.0
      %2580 = vmatprep.subr.mxu0 0.0
      %2581 = vmatpush2.msra.mxu0 0.0
      %2582 = vmatprep.subr.mxu0 0.0
      %2583 = vmatpush2.msra.mxu0 0.0
      %2584 = vmatprep.subr.mxu0 0.0
      %2585 = vmatpush2.msra.mxu0 0.0
      %2586 = vmatprep.subr.mxu0 0.0
      %2587 = vmatpush2.msra.mxu0 0.0
      %2588 = vmatprep.subr.mxu0 0.0
      %2589 = vmatpush2.msra.mxu0 0.0
      %2590 = vmatprep.subr.mxu0 0.0
      %2591 = vmatpush2.msra.mxu0 0.0
      %2592 = vmatprep.subr.mxu0 0.0
      %2593 = vmatpush2.msra.mxu0 0.0
      %2594 = vmatprep.subr.mxu0 0.0
      %2595 = vmatpush2.msra.mxu0 0.0
      %2596 = vmatprep.subr.mxu0 0.0
      %2597 = vmatpush2.msra.mxu0 0.0
      %2598 = vmatprep.mubr.f32.mxu0 0.0
      %v2599 = vand.u32 %v2229, 4294901760
      %2600 = vmatmul.mubr.f32.gmra.mxu0 %v2599
      %v2601 = vpop.f32.mrf.mxu0
      %v2602 = vadd.f32 %v2528, %v2601
      %v2603 = vpop.f32.mrf.mxu0
      %2604 = vdwg.mxu0
      %2605 = vmatprep.subr.mxu0 0.0
      %2606 = vmatpush1.msra.mxu0 0.0
      %2607 = vmatprep.subr.mxu0 0.0
      %2608 = vmatpush1.msra.mxu0 0.0
      %2609 = vmatprep.subr.mxu0 0.0
      %2610 = vmatpush1.msra.mxu0 0.0
      %2611 = vmatprep.subr.mxu0 0.0
      %2612 = vmatpush1.msra.mxu0 0.0
      %2613 = vmatprep.subr.mxu0 0.0
      %2614 = vmatpush1.msra.mxu0 0.0
      %2615 = vmatprep.subr.mxu0 0.0
      %2616 = vmatpush1.msra.mxu0 0.0
      %2617 = vmatprep.subr.mxu0 0.0
      %2618 = vmatpush1.msra.mxu0 0.0
      %2619 = vmatprep.subr.mxu0 0.0
      %2620 = vmatpush1.msra.mxu0 0.0
      %2621 = vmatprep.subr.mxu0 0.0
      %2622 = vmatpush1.msra.mxu0 0.0
      %2623 = vmatprep.subr.mxu0 0.0
      %2624 = vmatpush1.msra.mxu0 0.0
      %2625 = vmatprep.subr.mxu0 0.0
      %2626 = vmatpush1.msra.mxu0 0.0
      %2627 = vmatprep.subr.mxu0 0.0
      %2628 = vmatpush1.msra.mxu0 0.0
      %2629 = vmatprep.subr.mxu0 0.0
      %2630 = vmatpush1.msra.mxu0 0.0
      %2631 = vmatprep.subr.mxu0 0.0
      %2632 = vmatpush1.msra.mxu0 0.0
      %2633 = vmatprep.subr.mxu0 0.0
      %2634 = vmatpush1.msra.mxu0 0.0
      %2635 = vmatprep.subr.mxu0 0.0
      %v2636 = vand.u32 %v1259, 4294901760
      %2637 = vmatpush1.msra.mxu0 %v2636
      %2638 = vmatprep.subr.mxu0 0.0
      %2639 = vmatpush2.msra.mxu0 0.0
      %2640 = vmatprep.subr.mxu0 0.0
      %2641 = vmatpush2.msra.mxu0 0.0
      %2642 = vmatprep.subr.mxu0 0.0
      %2643 = vmatpush2.msra.mxu0 0.0
      %2644 = vmatprep.subr.mxu0 0.0
      %2645 = vmatpush2.msra.mxu0 0.0
      %2646 = vmatprep.subr.mxu0 0.0
      %2647 = vmatpush2.msra.mxu0 0.0
      %2648 = vmatprep.subr.mxu0 0.0
      %2649 = vmatpush2.msra.mxu0 0.0
      %2650 = vmatprep.subr.mxu0 0.0
      %2651 = vmatpush2.msra.mxu0 0.0
      %2652 = vmatprep.subr.mxu0 0.0
      %2653 = vmatpush2.msra.mxu0 0.0
      %2654 = vmatprep.subr.mxu0 0.0
      %2655 = vmatpush2.msra.mxu0 0.0
      %2656 = vmatprep.subr.mxu0 0.0
      %2657 = vmatpush2.msra.mxu0 0.0
      %2658 = vmatprep.subr.mxu0 0.0
      %2659 = vmatpush2.msra.mxu0 0.0
      %2660 = vmatprep.subr.mxu0 0.0
      %2661 = vmatpush2.msra.mxu0 0.0
      %2662 = vmatprep.subr.mxu0 0.0
      %2663 = vmatpush2.msra.mxu0 0.0
      %2664 = vmatprep.subr.mxu0 0.0
      %2665 = vmatpush2.msra.mxu0 0.0
      %2666 = vmatprep.subr.mxu0 0.0
      %2667 = vmatpush2.msra.mxu0 0.0
      %2668 = vmatprep.subr.mxu0 0.0
      %2669 = vmatpush2.msra.mxu0 0.0
      %2670 = vmatprep.mubr.f32.mxu0 0.0
      %v2671 = vand.u32 %v2229, 4294901760
      %2672 = vmatmul.mubr.f32.gmra.mxu0 %v2671
      %v2673 = vpop.f32.mrf.mxu0
      %v2674 = vadd.f32 %v2602, %v2673
      %v2675 = vpop.f32.mrf.mxu0
      %2676 = vdwg.mxu0
      %v2677 = vsel %vm2228, %v2219, 0
      %2679 = vmatprep.subr.mxu0 0.0
      %2680 = vmatpush1.msra.mxu0 0.0
      %2681 = vmatprep.subr.mxu0 0.0
      %2682 = vmatpush1.msra.mxu0 0.0
      %2683 = vmatprep.subr.mxu0 0.0
      %2684 = vmatpush1.msra.mxu0 0.0
      %2685 = vmatprep.subr.mxu0 0.0
      %2686 = vmatpush1.msra.mxu0 0.0
      %2687 = vmatprep.subr.mxu0 0.0
      %2688 = vmatpush1.msra.mxu0 0.0
      %2689 = vmatprep.subr.mxu0 0.0
      %2690 = vmatpush1.msra.mxu0 0.0
      %2691 = vmatprep.subr.mxu0 0.0
      %2692 = vmatpush1.msra.mxu0 0.0
      %2693 = vmatprep.subr.mxu0 0.0
      %2694 = vmatpush1.msra.mxu0 0.0
      %2695 = vmatprep.subr.mxu0 0.0
      %2696 = vmatpush1.msra.mxu0 0.0
      %2697 = vmatprep.subr.mxu0 0.0
      %2698 = vmatpush1.msra.mxu0 0.0
      %2699 = vmatprep.subr.mxu0 0.0
      %2700 = vmatpush1.msra.mxu0 0.0
      %2701 = vmatprep.subr.mxu0 0.0
      %2702 = vmatpush1.msra.mxu0 0.0
      %2703 = vmatprep.subr.mxu0 0.0
      %2704 = vmatpush1.msra.mxu0 0.0
      %2705 = vmatprep.subr.mxu0 0.0
      %2706 = vmatpush1.msra.mxu0 0.0
      %2707 = vmatprep.subr.mxu0 0.0
      %2708 = vmatpush1.msra.mxu0 0.0
      %2709 = vmatprep.subr.mxu0 0.0
      %v2710 = vand.u32 %v1260, 4294901760
      %2711 = vmatpush1.msra.mxu0 %v2710
      %2712 = vmatprep.subr.mxu0 0.0
      %2713 = vmatpush2.msra.mxu0 0.0
      %2714 = vmatprep.subr.mxu0 0.0
      %2715 = vmatpush2.msra.mxu0 0.0
      %2716 = vmatprep.subr.mxu0 0.0
      %2717 = vmatpush2.msra.mxu0 0.0
      %2718 = vmatprep.subr.mxu0 0.0
      %2719 = vmatpush2.msra.mxu0 0.0
      %2720 = vmatprep.subr.mxu0 0.0
      %2721 = vmatpush2.msra.mxu0 0.0
      %2722 = vmatprep.subr.mxu0 0.0
      %2723 = vmatpush2.msra.mxu0 0.0
      %2724 = vmatprep.subr.mxu0 0.0
      %2725 = vmatpush2.msra.mxu0 0.0
      %2726 = vmatprep.subr.mxu0 0.0
      %2727 = vmatpush2.msra.mxu0 0.0
      %2728 = vmatprep.subr.mxu0 0.0
      %2729 = vmatpush2.msra.mxu0 0.0
      %2730 = vmatprep.subr.mxu0 0.0
      %2731 = vmatpush2.msra.mxu0 0.0
      %2732 = vmatprep.subr.mxu0 0.0
      %2733 = vmatpush2.msra.mxu0 0.0
      %2734 = vmatprep.subr.mxu0 0.0
      %2735 = vmatpush2.msra.mxu0 0.0
      %2736 = vmatprep.subr.mxu0 0.0
      %2737 = vmatpush2.msra.mxu0 0.0
      %2738 = vmatprep.subr.mxu0 0.0
      %2739 = vmatpush2.msra.mxu0 0.0
      %2740 = vmatprep.subr.mxu0 0.0
      %2741 = vmatpush2.msra.mxu0 0.0
      %2742 = vmatprep.subr.mxu0 0.0
      %2743 = vmatpush2.msra.mxu0 0.0
      %2744 = vmatprep.mubr.f32.mxu0 0.0
      %v2745 = vand.u32 %v2677, 4294901760
      %v2746 = vsub.f32 %v2677, %v2745
      %v2747 = vand.u32 %v2746, 4294901760
      %v2748 = vsub.f32 %v2746, %v2747
      %v2749 = vand.u32 %v2748, 4294901760
      %2750 = vmatmul.mubr.f32.gmra.mxu0 %v2749
      %v2751 = vpop.f32.mrf.mxu0
      %v2752 = vadd.f32 0.0, %v2751
      %v2753 = vpop.f32.mrf.mxu0
      %2754 = vdwg.mxu0
      %2755 = vmatprep.subr.mxu0 0.0
      %2756 = vmatpush1.msra.mxu0 0.0
      %2757 = vmatprep.subr.mxu0 0.0
      %2758 = vmatpush1.msra.mxu0 0.0
      %2759 = vmatprep.subr.mxu0 0.0
      %2760 = vmatpush1.msra.mxu0 0.0
      %2761 = vmatprep.subr.mxu0 0.0
      %2762 = vmatpush1.msra.mxu0 0.0
      %2763 = vmatprep.subr.mxu0 0.0
      %2764 = vmatpush1.msra.mxu0 0.0
      %2765 = vmatprep.subr.mxu0 0.0
      %2766 = vmatpush1.msra.mxu0 0.0
      %2767 = vmatprep.subr.mxu0 0.0
      %2768 = vmatpush1.msra.mxu0 0.0
      %2769 = vmatprep.subr.mxu0 0.0
      %2770 = vmatpush1.msra.mxu0 0.0
      %2771 = vmatprep.subr.mxu0 0.0
      %2772 = vmatpush1.msra.mxu0 0.0
      %2773 = vmatprep.subr.mxu0 0.0
      %2774 = vmatpush1.msra.mxu0 0.0
      %2775 = vmatprep.subr.mxu0 0.0
      %2776 = vmatpush1.msra.mxu0 0.0
      %2777 = vmatprep.subr.mxu0 0.0
      %2778 = vmatpush1.msra.mxu0 0.0
      %2779 = vmatprep.subr.mxu0 0.0
      %2780 = vmatpush1.msra.mxu0 0.0
      %2781 = vmatprep.subr.mxu0 0.0
      %2782 = vmatpush1.msra.mxu0 0.0
      %2783 = vmatprep.subr.mxu0 0.0
      %2784 = vmatpush1.msra.mxu0 0.0
      %2785 = vmatprep.subr.mxu0 0.0
      %v2786 = vand.u32 %v1260, 4294901760
      %v2787 = vsub.f32 %v1260, %v2786
      %v2788 = vand.u32 %v2787, 4294901760
      %v2789 = vsub.f32 %v2787, %v2788
      %v2790 = vand.u32 %v2789, 4294901760
      %2791 = vmatpush1.msra.mxu0 %v2790
      %2792 = vmatprep.subr.mxu0 0.0
      %2793 = vmatpush2.msra.mxu0 0.0
      %2794 = vmatprep.subr.mxu0 0.0
      %2795 = vmatpush2.msra.mxu0 0.0
      %2796 = vmatprep.subr.mxu0 0.0
      %2797 = vmatpush2.msra.mxu0 0.0
      %2798 = vmatprep.subr.mxu0 0.0
      %2799 = vmatpush2.msra.mxu0 0.0
      %2800 = vmatprep.subr.mxu0 0.0
      %2801 = vmatpush2.msra.mxu0 0.0
      %2802 = vmatprep.subr.mxu0 0.0
      %2803 = vmatpush2.msra.mxu0 0.0
      %2804 = vmatprep.subr.mxu0 0.0
      %2805 = vmatpush2.msra.mxu0 0.0
      %2806 = vmatprep.subr.mxu0 0.0
      %2807 = vmatpush2.msra.mxu0 0.0
      %2808 = vmatprep.subr.mxu0 0.0
      %2809 = vmatpush2.msra.mxu0 0.0
      %2810 = vmatprep.subr.mxu0 0.0
      %2811 = vmatpush2.msra.mxu0 0.0
      %2812 = vmatprep.subr.mxu0 0.0
      %2813 = vmatpush2.msra.mxu0 0.0
      %2814 = vmatprep.subr.mxu0 0.0
      %2815 = vmatpush2.msra.mxu0 0.0
      %2816 = vmatprep.subr.mxu0 0.0
      %2817 = vmatpush2.msra.mxu0 0.0
      %2818 = vmatprep.subr.mxu0 0.0
      %2819 = vmatpush2.msra.mxu0 0.0
      %2820 = vmatprep.subr.mxu0 0.0
      %2821 = vmatpush2.msra.mxu0 0.0
      %2822 = vmatprep.subr.mxu0 0.0
      %2823 = vmatpush2.msra.mxu0 0.0
      %2824 = vmatprep.mubr.f32.mxu0 0.0
      %v2825 = vand.u32 %v2677, 4294901760
      %2826 = vmatmul.mubr.f32.gmra.mxu0 %v2825
      %v2827 = vpop.f32.mrf.mxu0
      %v2828 = vadd.f32 %v2752, %v2827
      %v2829 = vpop.f32.mrf.mxu0
      %2830 = vdwg.mxu0
      %2831 = vmatprep.subr.mxu0 0.0
      %2832 = vmatpush1.msra.mxu0 0.0
      %2833 = vmatprep.subr.mxu0 0.0
      %2834 = vmatpush1.msra.mxu0 0.0
      %2835 = vmatprep.subr.mxu0 0.0
      %2836 = vmatpush1.msra.mxu0 0.0
      %2837 = vmatprep.subr.mxu0 0.0
      %2838 = vmatpush1.msra.mxu0 0.0
      %2839 = vmatprep.subr.mxu0 0.0
      %2840 = vmatpush1.msra.mxu0 0.0
      %2841 = vmatprep.subr.mxu0 0.0
      %2842 = vmatpush1.msra.mxu0 0.0
      %2843 = vmatprep.subr.mxu0 0.0
      %2844 = vmatpush1.msra.mxu0 0.0
      %2845 = vmatprep.subr.mxu0 0.0
      %2846 = vmatpush1.msra.mxu0 0.0
      %2847 = vmatprep.subr.mxu0 0.0
      %2848 = vmatpush1.msra.mxu0 0.0
      %2849 = vmatprep.subr.mxu0 0.0
      %2850 = vmatpush1.msra.mxu0 0.0
      %2851 = vmatprep.subr.mxu0 0.0
      %2852 = vmatpush1.msra.mxu0 0.0
      %2853 = vmatprep.subr.mxu0 0.0
      %2854 = vmatpush1.msra.mxu0 0.0
      %2855 = vmatprep.subr.mxu0 0.0
      %2856 = vmatpush1.msra.mxu0 0.0
      %2857 = vmatprep.subr.mxu0 0.0
      %2858 = vmatpush1.msra.mxu0 0.0
      %2859 = vmatprep.subr.mxu0 0.0
      %2860 = vmatpush1.msra.mxu0 0.0
      %2861 = vmatprep.subr.mxu0 0.0
      %v2862 = vand.u32 %v1260, 4294901760
      %v2863 = vsub.f32 %v1260, %v2862
      %2864 = vmatpush1.msra.mxu0 %v2863
      %2865 = vmatprep.subr.mxu0 0.0
      %2866 = vmatpush2.msra.mxu0 0.0
      %2867 = vmatprep.subr.mxu0 0.0
      %2868 = vmatpush2.msra.mxu0 0.0
      %2869 = vmatprep.subr.mxu0 0.0
      %2870 = vmatpush2.msra.mxu0 0.0
      %2871 = vmatprep.subr.mxu0 0.0
      %2872 = vmatpush2.msra.mxu0 0.0
      %2873 = vmatprep.subr.mxu0 0.0
      %2874 = vmatpush2.msra.mxu0 0.0
      %2875 = vmatprep.subr.mxu0 0.0
      %2876 = vmatpush2.msra.mxu0 0.0
      %2877 = vmatprep.subr.mxu0 0.0
      %2878 = vmatpush2.msra.mxu0 0.0
      %2879 = vmatprep.subr.mxu0 0.0
      %2880 = vmatpush2.msra.mxu0 0.0
      %2881 = vmatprep.subr.mxu0 0.0
      %2882 = vmatpush2.msra.mxu0 0.0
      %2883 = vmatprep.subr.mxu0 0.0
      %2884 = vmatpush2.msra.mxu0 0.0
      %2885 = vmatprep.subr.mxu0 0.0
      %2886 = vmatpush2.msra.mxu0 0.0
      %2887 = vmatprep.subr.mxu0 0.0
      %2888 = vmatpush2.msra.mxu0 0.0
      %2889 = vmatprep.subr.mxu0 0.0
      %2890 = vmatpush2.msra.mxu0 0.0
      %2891 = vmatprep.subr.mxu0 0.0
      %2892 = vmatpush2.msra.mxu0 0.0
      %2893 = vmatprep.subr.mxu0 0.0
      %2894 = vmatpush2.msra.mxu0 0.0
      %2895 = vmatprep.subr.mxu0 0.0
      %2896 = vmatpush2.msra.mxu0 0.0
      %2897 = vmatprep.mubr.f32.mxu0 0.0
      %v2898 = vand.u32 %v2677, 4294901760
      %v2899 = vsub.f32 %v2677, %v2898
      %2900 = vmatmul.mubr.f32.gmra.mxu0 %v2899
      %v2901 = vpop.f32.mrf.mxu0
      %v2902 = vadd.f32 %v2828, %v2901
      %v2903 = vpop.f32.mrf.mxu0
      %2904 = vdwg.mxu0
      %2905 = vmatprep.subr.mxu0 0.0
      %2906 = vmatpush1.msra.mxu0 0.0
      %2907 = vmatprep.subr.mxu0 0.0
      %2908 = vmatpush1.msra.mxu0 0.0
      %2909 = vmatprep.subr.mxu0 0.0
      %2910 = vmatpush1.msra.mxu0 0.0
      %2911 = vmatprep.subr.mxu0 0.0
      %2912 = vmatpush1.msra.mxu0 0.0
      %2913 = vmatprep.subr.mxu0 0.0
      %2914 = vmatpush1.msra.mxu0 0.0
      %2915 = vmatprep.subr.mxu0 0.0
      %2916 = vmatpush1.msra.mxu0 0.0
      %2917 = vmatprep.subr.mxu0 0.0
      %2918 = vmatpush1.msra.mxu0 0.0
      %2919 = vmatprep.subr.mxu0 0.0
      %2920 = vmatpush1.msra.mxu0 0.0
      %2921 = vmatprep.subr.mxu0 0.0
      %2922 = vmatpush1.msra.mxu0 0.0
      %2923 = vmatprep.subr.mxu0 0.0
      %2924 = vmatpush1.msra.mxu0 0.0
      %2925 = vmatprep.subr.mxu0 0.0
      %2926 = vmatpush1.msra.mxu0 0.0
      %2927 = vmatprep.subr.mxu0 0.0
      %2928 = vmatpush1.msra.mxu0 0.0
      %2929 = vmatprep.subr.mxu0 0.0
      %2930 = vmatpush1.msra.mxu0 0.0
      %2931 = vmatprep.subr.mxu0 0.0
      %2932 = vmatpush1.msra.mxu0 0.0
      %2933 = vmatprep.subr.mxu0 0.0
      %2934 = vmatpush1.msra.mxu0 0.0
      %2935 = vmatprep.subr.mxu0 0.0
      %v2936 = vand.u32 %v1260, 4294901760
      %2937 = vmatpush1.msra.mxu0 %v2936
      %2938 = vmatprep.subr.mxu0 0.0
      %2939 = vmatpush2.msra.mxu0 0.0
      %2940 = vmatprep.subr.mxu0 0.0
      %2941 = vmatpush2.msra.mxu0 0.0
      %2942 = vmatprep.subr.mxu0 0.0
      %2943 = vmatpush2.msra.mxu0 0.0
      %2944 = vmatprep.subr.mxu0 0.0
      %2945 = vmatpush2.msra.mxu0 0.0
      %2946 = vmatprep.subr.mxu0 0.0
      %2947 = vmatpush2.msra.mxu0 0.0
      %2948 = vmatprep.subr.mxu0 0.0
      %2949 = vmatpush2.msra.mxu0 0.0
      %2950 = vmatprep.subr.mxu0 0.0
      %2951 = vmatpush2.msra.mxu0 0.0
      %2952 = vmatprep.subr.mxu0 0.0
      %2953 = vmatpush2.msra.mxu0 0.0
      %2954 = vmatprep.subr.mxu0 0.0
      %2955 = vmatpush2.msra.mxu0 0.0
      %2956 = vmatprep.subr.mxu0 0.0
      %2957 = vmatpush2.msra.mxu0 0.0
      %2958 = vmatprep.subr.mxu0 0.0
      %2959 = vmatpush2.msra.mxu0 0.0
      %2960 = vmatprep.subr.mxu0 0.0
      %2961 = vmatpush2.msra.mxu0 0.0
      %2962 = vmatprep.subr.mxu0 0.0
      %2963 = vmatpush2.msra.mxu0 0.0
      %2964 = vmatprep.subr.mxu0 0.0
      %2965 = vmatpush2.msra.mxu0 0.0
      %2966 = vmatprep.subr.mxu0 0.0
      %2967 = vmatpush2.msra.mxu0 0.0
      %2968 = vmatprep.subr.mxu0 0.0
      %2969 = vmatpush2.msra.mxu0 0.0
      %2970 = vmatprep.mubr.f32.mxu0 0.0
      %v2971 = vand.u32 %v2677, 4294901760
      %v2972 = vsub.f32 %v2677, %v2971
      %v2973 = vand.u32 %v2972, 4294901760
      %2974 = vmatmul.mubr.f32.gmra.mxu0 %v2973
      %v2975 = vpop.f32.mrf.mxu0
      %v2976 = vadd.f32 %v2902, %v2975
      %v2977 = vpop.f32.mrf.mxu0
      %2978 = vdwg.mxu0
      %2979 = vmatprep.subr.mxu0 0.0
      %2980 = vmatpush1.msra.mxu0 0.0
      %2981 = vmatprep.subr.mxu0 0.0
      %2982 = vmatpush1.msra.mxu0 0.0
      %2983 = vmatprep.subr.mxu0 0.0
      %2984 = vmatpush1.msra.mxu0 0.0
      %2985 = vmatprep.subr.mxu0 0.0
      %2986 = vmatpush1.msra.mxu0 0.0
      %2987 = vmatprep.subr.mxu0 0.0
      %2988 = vmatpush1.msra.mxu0 0.0
      %2989 = vmatprep.subr.mxu0 0.0
      %2990 = vmatpush1.msra.mxu0 0.0
      %2991 = vmatprep.subr.mxu0 0.0
      %2992 = vmatpush1.msra.mxu0 0.0
      %2993 = vmatprep.subr.mxu0 0.0
      %2994 = vmatpush1.msra.mxu0 0.0
      %2995 = vmatprep.subr.mxu0 0.0
      %2996 = vmatpush1.msra.mxu0 0.0
      %2997 = vmatprep.subr.mxu0 0.0
      %2998 = vmatpush1.msra.mxu0 0.0
      %2999 = vmatprep.subr.mxu0 0.0
      %3000 = vmatpush1.msra.mxu0 0.0
      %3001 = vmatprep.subr.mxu0 0.0
      %3002 = vmatpush1.msra.mxu0 0.0
      %3003 = vmatprep.subr.mxu0 0.0
      %3004 = vmatpush1.msra.mxu0 0.0
      %3005 = vmatprep.subr.mxu0 0.0
      %3006 = vmatpush1.msra.mxu0 0.0
      %3007 = vmatprep.subr.mxu0 0.0
      %3008 = vmatpush1.msra.mxu0 0.0
      %3009 = vmatprep.subr.mxu0 0.0
      %v3010 = vand.u32 %v1260, 4294901760
      %v3011 = vsub.f32 %v1260, %v3010
      %v3012 = vand.u32 %v3011, 4294901760
      %3013 = vmatpush1.msra.mxu0 %v3012
      %3014 = vmatprep.subr.mxu0 0.0
      %3015 = vmatpush2.msra.mxu0 0.0
      %3016 = vmatprep.subr.mxu0 0.0
      %3017 = vmatpush2.msra.mxu0 0.0
      %3018 = vmatprep.subr.mxu0 0.0
      %3019 = vmatpush2.msra.mxu0 0.0
      %3020 = vmatprep.subr.mxu0 0.0
      %3021 = vmatpush2.msra.mxu0 0.0
      %3022 = vmatprep.subr.mxu0 0.0
      %3023 = vmatpush2.msra.mxu0 0.0
      %3024 = vmatprep.subr.mxu0 0.0
      %3025 = vmatpush2.msra.mxu0 0.0
      %3026 = vmatprep.subr.mxu0 0.0
      %3027 = vmatpush2.msra.mxu0 0.0
      %3028 = vmatprep.subr.mxu0 0.0
      %3029 = vmatpush2.msra.mxu0 0.0
      %3030 = vmatprep.subr.mxu0 0.0
      %3031 = vmatpush2.msra.mxu0 0.0
      %3032 = vmatprep.subr.mxu0 0.0
      %3033 = vmatpush2.msra.mxu0 0.0
      %3034 = vmatprep.subr.mxu0 0.0
      %3035 = vmatpush2.msra.mxu0 0.0
      %3036 = vmatprep.subr.mxu0 0.0
      %3037 = vmatpush2.msra.mxu0 0.0
      %3038 = vmatprep.subr.mxu0 0.0
      %3039 = vmatpush2.msra.mxu0 0.0
      %3040 = vmatprep.subr.mxu0 0.0
      %3041 = vmatpush2.msra.mxu0 0.0
      %3042 = vmatprep.subr.mxu0 0.0
      %3043 = vmatpush2.msra.mxu0 0.0
      %3044 = vmatprep.subr.mxu0 0.0
      %3045 = vmatpush2.msra.mxu0 0.0
      %3046 = vmatprep.mubr.f32.mxu0 0.0
      %v3047 = vand.u32 %v2677, 4294901760
      %3048 = vmatmul.mubr.f32.gmra.mxu0 %v3047
      %v3049 = vpop.f32.mrf.mxu0
      %v3050 = vadd.f32 %v2976, %v3049
      %v3051 = vpop.f32.mrf.mxu0
      %3052 = vdwg.mxu0
      %3053 = vmatprep.subr.mxu0 0.0
      %3054 = vmatpush1.msra.mxu0 0.0
      %3055 = vmatprep.subr.mxu0 0.0
      %3056 = vmatpush1.msra.mxu0 0.0
      %3057 = vmatprep.subr.mxu0 0.0
      %3058 = vmatpush1.msra.mxu0 0.0
      %3059 = vmatprep.subr.mxu0 0.0
      %3060 = vmatpush1.msra.mxu0 0.0
      %3061 = vmatprep.subr.mxu0 0.0
      %3062 = vmatpush1.msra.mxu0 0.0
      %3063 = vmatprep.subr.mxu0 0.0
      %3064 = vmatpush1.msra.mxu0 0.0
      %3065 = vmatprep.subr.mxu0 0.0
      %3066 = vmatpush1.msra.mxu0 0.0
      %3067 = vmatprep.subr.mxu0 0.0
      %3068 = vmatpush1.msra.mxu0 0.0
      %3069 = vmatprep.subr.mxu0 0.0
      %3070 = vmatpush1.msra.mxu0 0.0
      %3071 = vmatprep.subr.mxu0 0.0
      %3072 = vmatpush1.msra.mxu0 0.0
      %3073 = vmatprep.subr.mxu0 0.0
      %3074 = vmatpush1.msra.mxu0 0.0
      %3075 = vmatprep.subr.mxu0 0.0
      %3076 = vmatpush1.msra.mxu0 0.0
      %3077 = vmatprep.subr.mxu0 0.0
      %3078 = vmatpush1.msra.mxu0 0.0
      %3079 = vmatprep.subr.mxu0 0.0
      %3080 = vmatpush1.msra.mxu0 0.0
      %3081 = vmatprep.subr.mxu0 0.0
      %3082 = vmatpush1.msra.mxu0 0.0
      %3083 = vmatprep.subr.mxu0 0.0
      %v3084 = vand.u32 %v1260, 4294901760
      %3085 = vmatpush1.msra.mxu0 %v3084
      %3086 = vmatprep.subr.mxu0 0.0
      %3087 = vmatpush2.msra.mxu0 0.0
      %3088 = vmatprep.subr.mxu0 0.0
      %3089 = vmatpush2.msra.mxu0 0.0
      %3090 = vmatprep.subr.mxu0 0.0
      %3091 = vmatpush2.msra.mxu0 0.0
      %3092 = vmatprep.subr.mxu0 0.0
      %3093 = vmatpush2.msra.mxu0 0.0
      %3094 = vmatprep.subr.mxu0 0.0
      %3095 = vmatpush2.msra.mxu0 0.0
      %3096 = vmatprep.subr.mxu0 0.0
      %3097 = vmatpush2.msra.mxu0 0.0
      %3098 = vmatprep.subr.mxu0 0.0
      %3099 = vmatpush2.msra.mxu0 0.0
      %3100 = vmatprep.subr.mxu0 0.0
      %3101 = vmatpush2.msra.mxu0 0.0
      %3102 = vmatprep.subr.mxu0 0.0
      %3103 = vmatpush2.msra.mxu0 0.0
      %3104 = vmatprep.subr.mxu0 0.0
      %3105 = vmatpush2.msra.mxu0 0.0
      %3106 = vmatprep.subr.mxu0 0.0
      %3107 = vmatpush2.msra.mxu0 0.0
      %3108 = vmatprep.subr.mxu0 0.0
      %3109 = vmatpush2.msra.mxu0 0.0
      %3110 = vmatprep.subr.mxu0 0.0
      %3111 = vmatpush2.msra.mxu0 0.0
      %3112 = vmatprep.subr.mxu0 0.0
      %3113 = vmatpush2.msra.mxu0 0.0
      %3114 = vmatprep.subr.mxu0 0.0
      %3115 = vmatpush2.msra.mxu0 0.0
      %3116 = vmatprep.subr.mxu0 0.0
      %3117 = vmatpush2.msra.mxu0 0.0
      %3118 = vmatprep.mubr.f32.mxu0 0.0
      %v3119 = vand.u32 %v2677, 4294901760
      %3120 = vmatmul.mubr.f32.gmra.mxu0 %v3119
      %v3121 = vpop.f32.mrf.mxu0
      %v3122 = vadd.f32 %v3050, %v3121
      %v3123 = vpop.f32.mrf.mxu0
      %3124 = vdwg.mxu0
      %v3127 = vrot.slane %v3122, 7
      %v3128 = vsel %vm2223, %v3127, %v2674
      %3129 = vrot.lane.b32.xlu0 %v3128, 32
      %v3130 = vpop.permute.xlu0 %3129
      %v3132 = vsel %vm75, %v1255, %v3130
      %v3133 = vld [vmem:[%s5] sm:$0xff]
      %v3134 = vld [vmem:[%s5 + $0x8] sm:$0xff]
      %v3135 = vld [vmem:[%s5 + $0x10] sm:$0xff]
      %v3136 = vld [vmem:[%s5 + $0x18] sm:$0xff]
      %v3137 = vld [vmem:[%s5 + $0x20] sm:$0xff]
      %v3138 = vld [vmem:[%s5 + $0x28] sm:$0xff]
      %v3139 = vld [vmem:[%s5 + $0x30] sm:$0xff]
      %v3140 = vld [vmem:[%s5 + $0x38] sm:$0xff]
      %v3141 = vld [vmem:[%s6] sm:$0x1]
      %v3143 = vlaneseq
      %v3144 = vshrl.u32 %v3143, 7
      %v3145 = vsub.s32 0, %v3144
      %v3146 = vrot.slane %v3141, %v3145
      %v3149 = vsel %vm92, %v3132, 0
      %3151 = vmatprep.subr.mxu0 0.0
      %3152 = vmatpush1.msra.mxu0 0.0
      %3153 = vmatprep.subr.mxu0 0.0
      %3154 = vmatpush1.msra.mxu0 0.0
      %3155 = vmatprep.subr.mxu0 0.0
      %3156 = vmatpush1.msra.mxu0 0.0
      %3157 = vmatprep.subr.mxu0 0.0
      %3158 = vmatpush1.msra.mxu0 0.0
      %3159 = vmatprep.subr.mxu0 0.0
      %3160 = vmatpush1.msra.mxu0 0.0
      %3161 = vmatprep.subr.mxu0 0.0
      %3162 = vmatpush1.msra.mxu0 0.0
      %3163 = vmatprep.subr.mxu0 0.0
      %3164 = vmatpush1.msra.mxu0 0.0
      %3165 = vmatprep.subr.mxu0 0.0
      %3166 = vmatpush1.msra.mxu0 0.0
      %3167 = vmatprep.subr.mxu0 0.0
      %v3168 = vand.u32 %v3140, 4294901760
      %3169 = vmatpush1.msra.mxu0 %v3168
      %3170 = vmatprep.subr.mxu0 0.0
      %v3171 = vand.u32 %v3139, 4294901760
      %3172 = vmatpush1.msra.mxu0 %v3171
      %3173 = vmatprep.subr.mxu0 0.0
      %v3174 = vand.u32 %v3138, 4294901760
      %3175 = vmatpush1.msra.mxu0 %v3174
      %3176 = vmatprep.subr.mxu0 0.0
      %v3177 = vand.u32 %v3137, 4294901760
      %3178 = vmatpush1.msra.mxu0 %v3177
      %3179 = vmatprep.subr.mxu0 0.0
      %v3180 = vand.u32 %v3136, 4294901760
      %3181 = vmatpush1.msra.mxu0 %v3180
      %3182 = vmatprep.subr.mxu0 0.0
      %v3183 = vand.u32 %v3135, 4294901760
      %3184 = vmatpush1.msra.mxu0 %v3183
      %3185 = vmatprep.subr.mxu0 0.0
      %v3186 = vand.u32 %v3134, 4294901760
      %3187 = vmatpush1.msra.mxu0 %v3186
      %3188 = vmatprep.subr.mxu0 0.0
      %v3189 = vand.u32 %v3133, 4294901760
      %3190 = vmatpush1.msra.mxu0 %v3189
      %3191 = vmatprep.subr.mxu0 0.0
      %3192 = vmatpush2.msra.mxu0 0.0
      %3193 = vmatprep.subr.mxu0 0.0
      %3194 = vmatpush2.msra.mxu0 0.0
      %3195 = vmatprep.subr.mxu0 0.0
      %3196 = vmatpush2.msra.mxu0 0.0
      %3197 = vmatprep.subr.mxu0 0.0
      %3198 = vmatpush2.msra.mxu0 0.0
      %3199 = vmatprep.subr.mxu0 0.0
      %3200 = vmatpush2.msra.mxu0 0.0
      %3201 = vmatprep.subr.mxu0 0.0
      %3202 = vmatpush2.msra.mxu0 0.0
      %3203 = vmatprep.subr.mxu0 0.0
      %3204 = vmatpush2.msra.mxu0 0.0
      %3205 = vmatprep.subr.mxu0 0.0
      %3206 = vmatpush2.msra.mxu0 0.0
      %3207 = vmatprep.subr.mxu0 0.0
      %3208 = vmatpush2.msra.mxu0 0.0
      %3209 = vmatprep.subr.mxu0 0.0
      %3210 = vmatpush2.msra.mxu0 0.0
      %3211 = vmatprep.subr.mxu0 0.0
      %3212 = vmatpush2.msra.mxu0 0.0
      %3213 = vmatprep.subr.mxu0 0.0
      %3214 = vmatpush2.msra.mxu0 0.0
      %3215 = vmatprep.subr.mxu0 0.0
      %3216 = vmatpush2.msra.mxu0 0.0
      %3217 = vmatprep.subr.mxu0 0.0
      %3218 = vmatpush2.msra.mxu0 0.0
      %3219 = vmatprep.subr.mxu0 0.0
      %3220 = vmatpush2.msra.mxu0 0.0
      %3221 = vmatprep.subr.mxu0 0.0
      %3222 = vmatpush2.msra.mxu0 0.0
      %3223 = vmatprep.mubr.f32.mxu0 0.0
      %v3224 = vand.u32 %v3149, 4294901760
      %v3225 = vsub.f32 %v3149, %v3224
      %v3226 = vand.u32 %v3225, 4294901760
      %v3227 = vsub.f32 %v3225, %v3226
      %v3228 = vand.u32 %v3227, 4294901760
      %3229 = vmatmul.mubr.f32.gmra.mxu0 %v3228
      %v3230 = vpop.f32.mrf.mxu0
      %v3231 = vadd.f32 %v3146, %v3230
      %v3232 = vpop.f32.mrf.mxu0
      %3233 = vdwg.mxu0
      %3234 = vmatprep.subr.mxu0 0.0
      %3235 = vmatpush1.msra.mxu0 0.0
      %3236 = vmatprep.subr.mxu0 0.0
      %3237 = vmatpush1.msra.mxu0 0.0
      %3238 = vmatprep.subr.mxu0 0.0
      %3239 = vmatpush1.msra.mxu0 0.0
      %3240 = vmatprep.subr.mxu0 0.0
      %3241 = vmatpush1.msra.mxu0 0.0
      %3242 = vmatprep.subr.mxu0 0.0
      %3243 = vmatpush1.msra.mxu0 0.0
      %3244 = vmatprep.subr.mxu0 0.0
      %3245 = vmatpush1.msra.mxu0 0.0
      %3246 = vmatprep.subr.mxu0 0.0
      %3247 = vmatpush1.msra.mxu0 0.0
      %3248 = vmatprep.subr.mxu0 0.0
      %3249 = vmatpush1.msra.mxu0 0.0
      %3250 = vmatprep.subr.mxu0 0.0
      %v3251 = vand.u32 %v3140, 4294901760
      %v3252 = vsub.f32 %v3140, %v3251
      %v3253 = vand.u32 %v3252, 4294901760
      %v3254 = vsub.f32 %v3252, %v3253
      %v3255 = vand.u32 %v3254, 4294901760
      %3256 = vmatpush1.msra.mxu0 %v3255
      %3257 = vmatprep.subr.mxu0 0.0
      %v3258 = vand.u32 %v3139, 4294901760
      %v3259 = vsub.f32 %v3139, %v3258
      %v3260 = vand.u32 %v3259, 4294901760
      %v3261 = vsub.f32 %v3259, %v3260
      %v3262 = vand.u32 %v3261, 4294901760
      %3263 = vmatpush1.msra.mxu0 %v3262
      %3264 = vmatprep.subr.mxu0 0.0
      %v3265 = vand.u32 %v3138, 4294901760
      %v3266 = vsub.f32 %v3138, %v3265
      %v3267 = vand.u32 %v3266, 4294901760
      %v3268 = vsub.f32 %v3266, %v3267
      %v3269 = vand.u32 %v3268, 4294901760
      %3270 = vmatpush1.msra.mxu0 %v3269
      %3271 = vmatprep.subr.mxu0 0.0
      %v3272 = vand.u32 %v3137, 4294901760
      %v3273 = vsub.f32 %v3137, %v3272
      %v3274 = vand.u32 %v3273, 4294901760
      %v3275 = vsub.f32 %v3273, %v3274
      %v3276 = vand.u32 %v3275, 4294901760
      %3277 = vmatpush1.msra.mxu0 %v3276
      %3278 = vmatprep.subr.mxu0 0.0
      %v3279 = vand.u32 %v3136, 4294901760
      %v3280 = vsub.f32 %v3136, %v3279
      %v3281 = vand.u32 %v3280, 4294901760
      %v3282 = vsub.f32 %v3280, %v3281
      %v3283 = vand.u32 %v3282, 4294901760
      %3284 = vmatpush1.msra.mxu0 %v3283
      %3285 = vmatprep.subr.mxu0 0.0
      %v3286 = vand.u32 %v3135, 4294901760
      %v3287 = vsub.f32 %v3135, %v3286
      %v3288 = vand.u32 %v3287, 4294901760
      %v3289 = vsub.f32 %v3287, %v3288
      %v3290 = vand.u32 %v3289, 4294901760
      %3291 = vmatpush1.msra.mxu0 %v3290
      %3292 = vmatprep.subr.mxu0 0.0
      %v3293 = vand.u32 %v3134, 4294901760
      %v3294 = vsub.f32 %v3134, %v3293
      %v3295 = vand.u32 %v3294, 4294901760
      %v3296 = vsub.f32 %v3294, %v3295
      %v3297 = vand.u32 %v3296, 4294901760
      %3298 = vmatpush1.msra.mxu0 %v3297
      %3299 = vmatprep.subr.mxu0 0.0
      %v3300 = vand.u32 %v3133, 4294901760
      %v3301 = vsub.f32 %v3133, %v3300
      %v3302 = vand.u32 %v3301, 4294901760
      %v3303 = vsub.f32 %v3301, %v3302
      %v3304 = vand.u32 %v3303, 4294901760
      %3305 = vmatpush1.msra.mxu0 %v3304
      %3306 = vmatprep.subr.mxu0 0.0
      %3307 = vmatpush2.msra.mxu0 0.0
      %3308 = vmatprep.subr.mxu0 0.0
      %3309 = vmatpush2.msra.mxu0 0.0
      %3310 = vmatprep.subr.mxu0 0.0
      %3311 = vmatpush2.msra.mxu0 0.0
      %3312 = vmatprep.subr.mxu0 0.0
      %3313 = vmatpush2.msra.mxu0 0.0
      %3314 = vmatprep.subr.mxu0 0.0
      %3315 = vmatpush2.msra.mxu0 0.0
      %3316 = vmatprep.subr.mxu0 0.0
      %3317 = vmatpush2.msra.mxu0 0.0
      %3318 = vmatprep.subr.mxu0 0.0
      %3319 = vmatpush2.msra.mxu0 0.0
      %3320 = vmatprep.subr.mxu0 0.0
      %3321 = vmatpush2.msra.mxu0 0.0
      %3322 = vmatprep.subr.mxu0 0.0
      %3323 = vmatpush2.msra.mxu0 0.0
      %3324 = vmatprep.subr.mxu0 0.0
      %3325 = vmatpush2.msra.mxu0 0.0
      %3326 = vmatprep.subr.mxu0 0.0
      %3327 = vmatpush2.msra.mxu0 0.0
      %3328 = vmatprep.subr.mxu0 0.0
      %3329 = vmatpush2.msra.mxu0 0.0
      %3330 = vmatprep.subr.mxu0 0.0
      %3331 = vmatpush2.msra.mxu0 0.0
      %3332 = vmatprep.subr.mxu0 0.0
      %3333 = vmatpush2.msra.mxu0 0.0
      %3334 = vmatprep.subr.mxu0 0.0
      %3335 = vmatpush2.msra.mxu0 0.0
      %3336 = vmatprep.subr.mxu0 0.0
      %3337 = vmatpush2.msra.mxu0 0.0
      %3338 = vmatprep.mubr.f32.mxu0 0.0
      %v3339 = vand.u32 %v3149, 4294901760
      %3340 = vmatmul.mubr.f32.gmra.mxu0 %v3339
      %v3341 = vpop.f32.mrf.mxu0
      %v3342 = vadd.f32 %v3231, %v3341
      %v3343 = vpop.f32.mrf.mxu0
      %3344 = vdwg.mxu0
      %3345 = vmatprep.subr.mxu0 0.0
      %3346 = vmatpush1.msra.mxu0 0.0
      %3347 = vmatprep.subr.mxu0 0.0
      %3348 = vmatpush1.msra.mxu0 0.0
      %3349 = vmatprep.subr.mxu0 0.0
      %3350 = vmatpush1.msra.mxu0 0.0
      %3351 = vmatprep.subr.mxu0 0.0
      %3352 = vmatpush1.msra.mxu0 0.0
      %3353 = vmatprep.subr.mxu0 0.0
      %3354 = vmatpush1.msra.mxu0 0.0
      %3355 = vmatprep.subr.mxu0 0.0
      %3356 = vmatpush1.msra.mxu0 0.0
      %3357 = vmatprep.subr.mxu0 0.0
      %3358 = vmatpush1.msra.mxu0 0.0
      %3359 = vmatprep.subr.mxu0 0.0
      %3360 = vmatpush1.msra.mxu0 0.0
      %3361 = vmatprep.subr.mxu0 0.0
      %v3362 = vand.u32 %v3140, 4294901760
      %v3363 = vsub.f32 %v3140, %v3362
      %3364 = vmatpush1.msra.mxu0 %v3363
      %3365 = vmatprep.subr.mxu0 0.0
      %v3366 = vand.u32 %v3139, 4294901760
      %v3367 = vsub.f32 %v3139, %v3366
      %3368 = vmatpush1.msra.mxu0 %v3367
      %3369 = vmatprep.subr.mxu0 0.0
      %v3370 = vand.u32 %v3138, 4294901760
      %v3371 = vsub.f32 %v3138, %v3370
      %3372 = vmatpush1.msra.mxu0 %v3371
      %3373 = vmatprep.subr.mxu0 0.0
      %v3374 = vand.u32 %v3137, 4294901760
      %v3375 = vsub.f32 %v3137, %v3374
      %3376 = vmatpush1.msra.mxu0 %v3375
      %3377 = vmatprep.subr.mxu0 0.0
      %v3378 = vand.u32 %v3136, 4294901760
      %v3379 = vsub.f32 %v3136, %v3378
      %3380 = vmatpush1.msra.mxu0 %v3379
      %3381 = vmatprep.subr.mxu0 0.0
      %v3382 = vand.u32 %v3135, 4294901760
      %v3383 = vsub.f32 %v3135, %v3382
      %3384 = vmatpush1.msra.mxu0 %v3383
      %3385 = vmatprep.subr.mxu0 0.0
      %v3386 = vand.u32 %v3134, 4294901760
      %v3387 = vsub.f32 %v3134, %v3386
      %3388 = vmatpush1.msra.mxu0 %v3387
      %3389 = vmatprep.subr.mxu0 0.0
      %v3390 = vand.u32 %v3133, 4294901760
      %v3391 = vsub.f32 %v3133, %v3390
      %3392 = vmatpush1.msra.mxu0 %v3391
      %3393 = vmatprep.subr.mxu0 0.0
      %3394 = vmatpush2.msra.mxu0 0.0
      %3395 = vmatprep.subr.mxu0 0.0
      %3396 = vmatpush2.msra.mxu0 0.0
      %3397 = vmatprep.subr.mxu0 0.0
      %3398 = vmatpush2.msra.mxu0 0.0
      %3399 = vmatprep.subr.mxu0 0.0
      %3400 = vmatpush2.msra.mxu0 0.0
      %3401 = vmatprep.subr.mxu0 0.0
      %3402 = vmatpush2.msra.mxu0 0.0
      %3403 = vmatprep.subr.mxu0 0.0
      %3404 = vmatpush2.msra.mxu0 0.0
      %3405 = vmatprep.subr.mxu0 0.0
      %3406 = vmatpush2.msra.mxu0 0.0
      %3407 = vmatprep.subr.mxu0 0.0
      %3408 = vmatpush2.msra.mxu0 0.0
      %3409 = vmatprep.subr.mxu0 0.0
      %3410 = vmatpush2.msra.mxu0 0.0
      %3411 = vmatprep.subr.mxu0 0.0
      %3412 = vmatpush2.msra.mxu0 0.0
      %3413 = vmatprep.subr.mxu0 0.0
      %3414 = vmatpush2.msra.mxu0 0.0
      %3415 = vmatprep.subr.mxu0 0.0
      %3416 = vmatpush2.msra.mxu0 0.0
      %3417 = vmatprep.subr.mxu0 0.0
      %3418 = vmatpush2.msra.mxu0 0.0
      %3419 = vmatprep.subr.mxu0 0.0
      %3420 = vmatpush2.msra.mxu0 0.0
      %3421 = vmatprep.subr.mxu0 0.0
      %3422 = vmatpush2.msra.mxu0 0.0
      %3423 = vmatprep.subr.mxu0 0.0
      %3424 = vmatpush2.msra.mxu0 0.0
      %3425 = vmatprep.mubr.f32.mxu0 0.0
      %v3426 = vand.u32 %v3149, 4294901760
      %v3427 = vsub.f32 %v3149, %v3426
      %3428 = vmatmul.mubr.f32.gmra.mxu0 %v3427
      %v3429 = vpop.f32.mrf.mxu0
      %v3430 = vadd.f32 %v3342, %v3429
      %v3431 = vpop.f32.mrf.mxu0
      %3432 = vdwg.mxu0
      %3433 = vmatprep.subr.mxu0 0.0
      %3434 = vmatpush1.msra.mxu0 0.0
      %3435 = vmatprep.subr.mxu0 0.0
      %3436 = vmatpush1.msra.mxu0 0.0
      %3437 = vmatprep.subr.mxu0 0.0
      %3438 = vmatpush1.msra.mxu0 0.0
      %3439 = vmatprep.subr.mxu0 0.0
      %3440 = vmatpush1.msra.mxu0 0.0
      %3441 = vmatprep.subr.mxu0 0.0
      %3442 = vmatpush1.msra.mxu0 0.0
      %3443 = vmatprep.subr.mxu0 0.0
      %3444 = vmatpush1.msra.mxu0 0.0
      %3445 = vmatprep.subr.mxu0 0.0
      %3446 = vmatpush1.msra.mxu0 0.0
      %3447 = vmatprep.subr.mxu0 0.0
      %3448 = vmatpush1.msra.mxu0 0.0
      %3449 = vmatprep.subr.mxu0 0.0
      %v3450 = vand.u32 %v3140, 4294901760
      %3451 = vmatpush1.msra.mxu0 %v3450
      %3452 = vmatprep.subr.mxu0 0.0
      %v3453 = vand.u32 %v3139, 4294901760
      %3454 = vmatpush1.msra.mxu0 %v3453
      %3455 = vmatprep.subr.mxu0 0.0
      %v3456 = vand.u32 %v3138, 4294901760
      %3457 = vmatpush1.msra.mxu0 %v3456
      %3458 = vmatprep.subr.mxu0 0.0
      %v3459 = vand.u32 %v3137, 4294901760
      %3460 = vmatpush1.msra.mxu0 %v3459
      %3461 = vmatprep.subr.mxu0 0.0
      %v3462 = vand.u32 %v3136, 4294901760
      %3463 = vmatpush1.msra.mxu0 %v3462
      %3464 = vmatprep.subr.mxu0 0.0
      %v3465 = vand.u32 %v3135, 4294901760
      %3466 = vmatpush1.msra.mxu0 %v3465
      %3467 = vmatprep.subr.mxu0 0.0
      %v3468 = vand.u32 %v3134, 4294901760
      %3469 = vmatpush1.msra.mxu0 %v3468
      %3470 = vmatprep.subr.mxu0 0.0
      %v3471 = vand.u32 %v3133, 4294901760
      %3472 = vmatpush1.msra.mxu0 %v3471
      %3473 = vmatprep.subr.mxu0 0.0
      %3474 = vmatpush2.msra.mxu0 0.0
      %3475 = vmatprep.subr.mxu0 0.0
      %3476 = vmatpush2.msra.mxu0 0.0
      %3477 = vmatprep.subr.mxu0 0.0
      %3478 = vmatpush2.msra.mxu0 0.0
      %3479 = vmatprep.subr.mxu0 0.0
      %3480 = vmatpush2.msra.mxu0 0.0
      %3481 = vmatprep.subr.mxu0 0.0
      %3482 = vmatpush2.msra.mxu0 0.0
      %3483 = vmatprep.subr.mxu0 0.0
      %3484 = vmatpush2.msra.mxu0 0.0
      %3485 = vmatprep.subr.mxu0 0.0
      %3486 = vmatpush2.msra.mxu0 0.0
      %3487 = vmatprep.subr.mxu0 0.0
      %3488 = vmatpush2.msra.mxu0 0.0
      %3489 = vmatprep.subr.mxu0 0.0
      %3490 = vmatpush2.msra.mxu0 0.0
      %3491 = vmatprep.subr.mxu0 0.0
      %3492 = vmatpush2.msra.mxu0 0.0
      %3493 = vmatprep.subr.mxu0 0.0
      %3494 = vmatpush2.msra.mxu0 0.0
      %3495 = vmatprep.subr.mxu0 0.0
      %3496 = vmatpush2.msra.mxu0 0.0
      %3497 = vmatprep.subr.mxu0 0.0
      %3498 = vmatpush2.msra.mxu0 0.0
      %3499 = vmatprep.subr.mxu0 0.0
      %3500 = vmatpush2.msra.mxu0 0.0
      %3501 = vmatprep.subr.mxu0 0.0
      %3502 = vmatpush2.msra.mxu0 0.0
      %3503 = vmatprep.subr.mxu0 0.0
      %3504 = vmatpush2.msra.mxu0 0.0
      %3505 = vmatprep.mubr.f32.mxu0 0.0
      %v3506 = vand.u32 %v3149, 4294901760
      %v3507 = vsub.f32 %v3149, %v3506
      %v3508 = vand.u32 %v3507, 4294901760
      %3509 = vmatmul.mubr.f32.gmra.mxu0 %v3508
      %v3510 = vpop.f32.mrf.mxu0
      %v3511 = vadd.f32 %v3430, %v3510
      %v3512 = vpop.f32.mrf.mxu0
      %3513 = vdwg.mxu0
      %3514 = vmatprep.subr.mxu0 0.0
      %3515 = vmatpush1.msra.mxu0 0.0
      %3516 = vmatprep.subr.mxu0 0.0
      %3517 = vmatpush1.msra.mxu0 0.0
      %3518 = vmatprep.subr.mxu0 0.0
      %3519 = vmatpush1.msra.mxu0 0.0
      %3520 = vmatprep.subr.mxu0 0.0
      %3521 = vmatpush1.msra.mxu0 0.0
      %3522 = vmatprep.subr.mxu0 0.0
      %3523 = vmatpush1.msra.mxu0 0.0
      %3524 = vmatprep.subr.mxu0 0.0
      %3525 = vmatpush1.msra.mxu0 0.0
      %3526 = vmatprep.subr.mxu0 0.0
      %3527 = vmatpush1.msra.mxu0 0.0
      %3528 = vmatprep.subr.mxu0 0.0
      %3529 = vmatpush1.msra.mxu0 0.0
      %3530 = vmatprep.subr.mxu0 0.0
      %v3531 = vand.u32 %v3140, 4294901760
      %v3532 = vsub.f32 %v3140, %v3531
      %v3533 = vand.u32 %v3532, 4294901760
      %3534 = vmatpush1.msra.mxu0 %v3533
      %3535 = vmatprep.subr.mxu0 0.0
      %v3536 = vand.u32 %v3139, 4294901760
      %v3537 = vsub.f32 %v3139, %v3536
      %v3538 = vand.u32 %v3537, 4294901760
      %3539 = vmatpush1.msra.mxu0 %v3538
      %3540 = vmatprep.subr.mxu0 0.0
      %v3541 = vand.u32 %v3138, 4294901760
      %v3542 = vsub.f32 %v3138, %v3541
      %v3543 = vand.u32 %v3542, 4294901760
      %3544 = vmatpush1.msra.mxu0 %v3543
      %3545 = vmatprep.subr.mxu0 0.0
      %v3546 = vand.u32 %v3137, 4294901760
      %v3547 = vsub.f32 %v3137, %v3546
      %v3548 = vand.u32 %v3547, 4294901760
      %3549 = vmatpush1.msra.mxu0 %v3548
      %3550 = vmatprep.subr.mxu0 0.0
      %v3551 = vand.u32 %v3136, 4294901760
      %v3552 = vsub.f32 %v3136, %v3551
      %v3553 = vand.u32 %v3552, 4294901760
      %3554 = vmatpush1.msra.mxu0 %v3553
      %3555 = vmatprep.subr.mxu0 0.0
      %v3556 = vand.u32 %v3135, 4294901760
      %v3557 = vsub.f32 %v3135, %v3556
      %v3558 = vand.u32 %v3557, 4294901760
      %3559 = vmatpush1.msra.mxu0 %v3558
      %3560 = vmatprep.subr.mxu0 0.0
      %v3561 = vand.u32 %v3134, 4294901760
      %v3562 = vsub.f32 %v3134, %v3561
      %v3563 = vand.u32 %v3562, 4294901760
      %3564 = vmatpush1.msra.mxu0 %v3563
      %3565 = vmatprep.subr.mxu0 0.0
      %v3566 = vand.u32 %v3133, 4294901760
      %v3567 = vsub.f32 %v3133, %v3566
      %v3568 = vand.u32 %v3567, 4294901760
      %3569 = vmatpush1.msra.mxu0 %v3568
      %3570 = vmatprep.subr.mxu0 0.0
      %3571 = vmatpush2.msra.mxu0 0.0
      %3572 = vmatprep.subr.mxu0 0.0
      %3573 = vmatpush2.msra.mxu0 0.0
      %3574 = vmatprep.subr.mxu0 0.0
      %3575 = vmatpush2.msra.mxu0 0.0
      %3576 = vmatprep.subr.mxu0 0.0
      %3577 = vmatpush2.msra.mxu0 0.0
      %3578 = vmatprep.subr.mxu0 0.0
      %3579 = vmatpush2.msra.mxu0 0.0
      %3580 = vmatprep.subr.mxu0 0.0
      %3581 = vmatpush2.msra.mxu0 0.0
      %3582 = vmatprep.subr.mxu0 0.0
      %3583 = vmatpush2.msra.mxu0 0.0
      %3584 = vmatprep.subr.mxu0 0.0
      %3585 = vmatpush2.msra.mxu0 0.0
      %3586 = vmatprep.subr.mxu0 0.0
      %3587 = vmatpush2.msra.mxu0 0.0
      %3588 = vmatprep.subr.mxu0 0.0
      %3589 = vmatpush2.msra.mxu0 0.0
      %3590 = vmatprep.subr.mxu0 0.0
      %3591 = vmatpush2.msra.mxu0 0.0
      %3592 = vmatprep.subr.mxu0 0.0
      %3593 = vmatpush2.msra.mxu0 0.0
      %3594 = vmatprep.subr.mxu0 0.0
      %3595 = vmatpush2.msra.mxu0 0.0
      %3596 = vmatprep.subr.mxu0 0.0
      %3597 = vmatpush2.msra.mxu0 0.0
      %3598 = vmatprep.subr.mxu0 0.0
      %3599 = vmatpush2.msra.mxu0 0.0
      %3600 = vmatprep.subr.mxu0 0.0
      %3601 = vmatpush2.msra.mxu0 0.0
      %3602 = vmatprep.mubr.f32.mxu0 0.0
      %v3603 = vand.u32 %v3149, 4294901760
      %3604 = vmatmul.mubr.f32.gmra.mxu0 %v3603
      %v3605 = vpop.f32.mrf.mxu0
      %v3606 = vadd.f32 %v3511, %v3605
      %v3607 = vpop.f32.mrf.mxu0
      %3608 = vdwg.mxu0
      %3609 = vmatprep.subr.mxu0 0.0
      %3610 = vmatpush1.msra.mxu0 0.0
      %3611 = vmatprep.subr.mxu0 0.0
      %3612 = vmatpush1.msra.mxu0 0.0
      %3613 = vmatprep.subr.mxu0 0.0
      %3614 = vmatpush1.msra.mxu0 0.0
      %3615 = vmatprep.subr.mxu0 0.0
      %3616 = vmatpush1.msra.mxu0 0.0
      %3617 = vmatprep.subr.mxu0 0.0
      %3618 = vmatpush1.msra.mxu0 0.0
      %3619 = vmatprep.subr.mxu0 0.0
      %3620 = vmatpush1.msra.mxu0 0.0
      %3621 = vmatprep.subr.mxu0 0.0
      %3622 = vmatpush1.msra.mxu0 0.0
      %3623 = vmatprep.subr.mxu0 0.0
      %3624 = vmatpush1.msra.mxu0 0.0
      %3625 = vmatprep.subr.mxu0 0.0
      %v3626 = vand.u32 %v3140, 4294901760
      %3627 = vmatpush1.msra.mxu0 %v3626
      %3628 = vmatprep.subr.mxu0 0.0
      %v3629 = vand.u32 %v3139, 4294901760
      %3630 = vmatpush1.msra.mxu0 %v3629
      %3631 = vmatprep.subr.mxu0 0.0
      %v3632 = vand.u32 %v3138, 4294901760
      %3633 = vmatpush1.msra.mxu0 %v3632
      %3634 = vmatprep.subr.mxu0 0.0
      %v3635 = vand.u32 %v3137, 4294901760
      %3636 = vmatpush1.msra.mxu0 %v3635
      %3637 = vmatprep.subr.mxu0 0.0
      %v3638 = vand.u32 %v3136, 4294901760
      %3639 = vmatpush1.msra.mxu0 %v3638
      %3640 = vmatprep.subr.mxu0 0.0
      %v3641 = vand.u32 %v3135, 4294901760
      %3642 = vmatpush1.msra.mxu0 %v3641
      %3643 = vmatprep.subr.mxu0 0.0
      %v3644 = vand.u32 %v3134, 4294901760
      %3645 = vmatpush1.msra.mxu0 %v3644
      %3646 = vmatprep.subr.mxu0 0.0
      %v3647 = vand.u32 %v3133, 4294901760
      %3648 = vmatpush1.msra.mxu0 %v3647
      %3649 = vmatprep.subr.mxu0 0.0
      %3650 = vmatpush2.msra.mxu0 0.0
      %3651 = vmatprep.subr.mxu0 0.0
      %3652 = vmatpush2.msra.mxu0 0.0
      %3653 = vmatprep.subr.mxu0 0.0
      %3654 = vmatpush2.msra.mxu0 0.0
      %3655 = vmatprep.subr.mxu0 0.0
      %3656 = vmatpush2.msra.mxu0 0.0
      %3657 = vmatprep.subr.mxu0 0.0
      %3658 = vmatpush2.msra.mxu0 0.0
      %3659 = vmatprep.subr.mxu0 0.0
      %3660 = vmatpush2.msra.mxu0 0.0
      %3661 = vmatprep.subr.mxu0 0.0
      %3662 = vmatpush2.msra.mxu0 0.0
      %3663 = vmatprep.subr.mxu0 0.0
      %3664 = vmatpush2.msra.mxu0 0.0
      %3665 = vmatprep.subr.mxu0 0.0
      %3666 = vmatpush2.msra.mxu0 0.0
      %3667 = vmatprep.subr.mxu0 0.0
      %3668 = vmatpush2.msra.mxu0 0.0
      %3669 = vmatprep.subr.mxu0 0.0
      %3670 = vmatpush2.msra.mxu0 0.0
      %3671 = vmatprep.subr.mxu0 0.0
      %3672 = vmatpush2.msra.mxu0 0.0
      %3673 = vmatprep.subr.mxu0 0.0
      %3674 = vmatpush2.msra.mxu0 0.0
      %3675 = vmatprep.subr.mxu0 0.0
      %3676 = vmatpush2.msra.mxu0 0.0
      %3677 = vmatprep.subr.mxu0 0.0
      %3678 = vmatpush2.msra.mxu0 0.0
      %3679 = vmatprep.subr.mxu0 0.0
      %3680 = vmatpush2.msra.mxu0 0.0
      %3681 = vmatprep.mubr.f32.mxu0 0.0
      %v3682 = vand.u32 %v3149, 4294901760
      %3683 = vmatmul.mubr.f32.gmra.mxu0 %v3682
      %v3684 = vpop.f32.mrf.mxu0
      %v3685 = vadd.f32 %v3606, %v3684
      %v3686 = vpop.f32.mrf.mxu0
      %3687 = vdwg.mxu0
      %v3688 = vtanh.pop %v3685
      %3689 = vst.msk [vmem:[#allocation2] sm:$0x3] %vm662, %v3688
      %vm3690 = vcmask 1024
      %3691 = vst.msk [vmem:[#allocation3] sm:$0x3] %vm3690, -1e+30
      %3692 = vst.msk [vmem:[#allocation4] sm:$0x3] %vm3690, 0.0
    $region49: #{tpu_custom_call.1} parent=1 // pred_fallthru
      _
    %v3693 = vld [vmem:[#allocation2] sm:$0x3]
    %v3694 = vld [vmem:[#allocation8] sm:$0xff]
    %v3695 = vld [vmem:[#allocation8 + $0x8] sm:$0xff]
    %v3696 = vld [vmem:[#allocation8 + $0x10] sm:$0xff]
    %v3697 = vld [vmem:[#allocation8 + $0x18] sm:$0xff]
    %v3698 = vld [vmem:[#allocation8 + $0x20] sm:$0xff]
    %v3699 = vld [vmem:[#allocation8 + $0x28] sm:$0xff]
    %v3700 = vld [vmem:[#allocation8 + $0x30] sm:$0xff]
    %v3701 = vld [vmem:[#allocation8 + $0x38] sm:$0xff]
    %v3702 = vld [vmem:[#allocation8 + $0x40] sm:$0xff]
    %v3703 = vld [vmem:[#allocation8 + $0x48] sm:$0xff]
    %v3704 = vld [vmem:[#allocation8 + $0x50] sm:$0xff]
    %v3705 = vld [vmem:[#allocation8 + $0x58] sm:$0xff]
    %v3706 = vld [vmem:[#allocation8 + $0x60] sm:$0xff]
    %v3707 = vld [vmem:[#allocation8 + $0x68] sm:$0xff]
    %v3708 = vld [vmem:[#allocation8 + $0x70] sm:$0xff]
    %v3709 = vld [vmem:[#allocation8 + $0x78] sm:$0xff]
    %v3710 = vld [vmem:[%s8] sm:$0xf]
    %v3712 = vlaneseq
    %v3713 = vshrl.u32 %v3712, 7
    %v3714 = vsub.s32 0, %v3713
    %v3715 = vrot.slane %v3710, %v3714
    %v3716 = vlaneseq
    %v3717 = vshrl.u32 %v3716, 7
    %v3718 = vsub.s32 1, %v3717
    %v3719 = vrot.slane %v3710, %v3718
    %v3720 = vlaneseq
    %v3721 = vshrl.u32 %v3720, 7
    %v3722 = vsub.s32 2, %v3721
    %v3723 = vrot.slane %v3710, %v3722
    %v3724 = vlaneseq
    %v3725 = vshrl.u32 %v3724, 7
    %v3726 = vsub.s32 3, %v3725
    %v3727 = vrot.slane %v3710, %v3726
    %vm3732 = vcmask 261120
    %v3734 = vsel %vm3732, %v3693, 0
    %3736 = vmatprep.subr.mxu0 0.0
    %3737 = vmatpush1.msra.mxu0 0.0
    %3738 = vmatprep.subr.mxu0 0.0
    %3739 = vmatpush1.msra.mxu0 0.0
    %3740 = vmatprep.subr.mxu0 0.0
    %3741 = vmatpush1.msra.mxu0 0.0
    %3742 = vmatprep.subr.mxu0 0.0
    %3743 = vmatpush1.msra.mxu0 0.0
    %3744 = vmatprep.subr.mxu0 0.0
    %3745 = vmatpush1.msra.mxu0 0.0
    %3746 = vmatprep.subr.mxu0 0.0
    %3747 = vmatpush1.msra.mxu0 0.0
    %3748 = vmatprep.subr.mxu0 0.0
    %3749 = vmatpush1.msra.mxu0 0.0
    %3750 = vmatprep.subr.mxu0 0.0
    %3751 = vmatpush1.msra.mxu0 0.0
    %3752 = vmatprep.subr.mxu0 0.0
    %3753 = vmatpush1.msra.mxu0 0.0
    %3754 = vmatprep.subr.mxu0 0.0
    %3755 = vmatpush1.msra.mxu0 0.0
    %3756 = vmatprep.subr.mxu0 0.0
    %3757 = vmatpush1.msra.mxu0 0.0
    %3758 = vmatprep.subr.mxu0 0.0
    %3759 = vmatpush1.msra.mxu0 0.0
    %v3760 = vand.u32 %v3707, 4294901760
    %3761 = vmatprep.subr.mxu0 %v3760
    %v3762 = vand.u32 %v3706, 4294901760
    %3763 = vmatpush1.msra.mxu0 %v3762
    %v3764 = vand.u32 %v3703, 4294901760
    %3765 = vmatprep.subr.mxu0 %v3764
    %v3766 = vand.u32 %v3702, 4294901760
    %3767 = vmatpush1.msra.mxu0 %v3766
    %v3768 = vand.u32 %v3699, 4294901760
    %3769 = vmatprep.subr.mxu0 %v3768
    %v3770 = vand.u32 %v3698, 4294901760
    %3771 = vmatpush1.msra.mxu0 %v3770
    %v3772 = vand.u32 %v3695, 4294901760
    %3773 = vmatprep.subr.mxu0 %v3772
    %v3774 = vand.u32 %v3694, 4294901760
    %3775 = vmatpush1.msra.mxu0 %v3774
    %3776 = vmatprep.subr.mxu0 0.0
    %3777 = vmatpush2.msra.mxu0 0.0
    %3778 = vmatprep.subr.mxu0 0.0
    %3779 = vmatpush2.msra.mxu0 0.0
    %3780 = vmatprep.subr.mxu0 0.0
    %3781 = vmatpush2.msra.mxu0 0.0
    %3782 = vmatprep.subr.mxu0 0.0
    %3783 = vmatpush2.msra.mxu0 0.0
    %3784 = vmatprep.subr.mxu0 0.0
    %3785 = vmatpush2.msra.mxu0 0.0
    %3786 = vmatprep.subr.mxu0 0.0
    %3787 = vmatpush2.msra.mxu0 0.0
    %3788 = vmatprep.subr.mxu0 0.0
    %3789 = vmatpush2.msra.mxu0 0.0
    %3790 = vmatprep.subr.mxu0 0.0
    %3791 = vmatpush2.msra.mxu0 0.0
    %3792 = vmatprep.subr.mxu0 0.0
    %3793 = vmatpush2.msra.mxu0 0.0
    %3794 = vmatprep.subr.mxu0 0.0
    %3795 = vmatpush2.msra.mxu0 0.0
    %3796 = vmatprep.subr.mxu0 0.0
    %3797 = vmatpush2.msra.mxu0 0.0
    %3798 = vmatprep.subr.mxu0 0.0
    %3799 = vmatpush2.msra.mxu0 0.0
    %3800 = vmatprep.subr.mxu0 0.0
    %3801 = vmatpush2.msra.mxu0 0.0
    %3802 = vmatprep.subr.mxu0 0.0
    %3803 = vmatpush2.msra.mxu0 0.0
    %3804 = vmatprep.subr.mxu0 0.0
    %3805 = vmatpush2.msra.mxu0 0.0
    %3806 = vmatprep.subr.mxu0 0.0
    %3807 = vmatpush2.msra.mxu0 0.0
    %3808 = vmatprep.mubr.f32.mxu0 0.0
    %v3809 = vand.u32 %v3734, 4294901760
    %v3810 = vsub.f32 %v3734, %v3809
    %v3811 = vand.u32 %v3810, 4294901760
    %v3812 = vsub.f32 %v3810, %v3811
    %v3813 = vand.u32 %v3812, 4294901760
    %3814 = vmatmul.mubr.f32.gmra.mxu0 %v3813
    %v3815 = vpop.f32.mrf.mxu0
    %v3816 = vadd.f32 %v3715, %v3815
    %v3817 = vpop.f32.mrf.mxu0
    %v3818 = vadd.f32 %v3719, %v3817
    %3819 = vdwg.mxu0
    %3820 = vmatprep.subr.mxu0 0.0
    %3821 = vmatpush1.msra.mxu0 0.0
    %3822 = vmatprep.subr.mxu0 0.0
    %3823 = vmatpush1.msra.mxu0 0.0
    %3824 = vmatprep.subr.mxu0 0.0
    %3825 = vmatpush1.msra.mxu0 0.0
    %3826 = vmatprep.subr.mxu0 0.0
    %3827 = vmatpush1.msra.mxu0 0.0
    %3828 = vmatprep.subr.mxu0 0.0
    %3829 = vmatpush1.msra.mxu0 0.0
    %3830 = vmatprep.subr.mxu0 0.0
    %3831 = vmatpush1.msra.mxu0 0.0
    %3832 = vmatprep.subr.mxu0 0.0
    %3833 = vmatpush1.msra.mxu0 0.0
    %3834 = vmatprep.subr.mxu0 0.0
    %3835 = vmatpush1.msra.mxu0 0.0
    %3836 = vmatprep.subr.mxu0 0.0
    %3837 = vmatpush1.msra.mxu0 0.0
    %3838 = vmatprep.subr.mxu0 0.0
    %3839 = vmatpush1.msra.mxu0 0.0
    %3840 = vmatprep.subr.mxu0 0.0
    %3841 = vmatpush1.msra.mxu0 0.0
    %3842 = vmatprep.subr.mxu0 0.0
    %3843 = vmatpush1.msra.mxu0 0.0
    %v3844 = vand.u32 %v3707, 4294901760
    %v3845 = vsub.f32 %v3707, %v3844
    %v3846 = vand.u32 %v3845, 4294901760
    %v3847 = vsub.f32 %v3845, %v3846
    %v3848 = vand.u32 %v3847, 4294901760
    %3849 = vmatprep.subr.mxu0 %v3848
    %v3850 = vand.u32 %v3706, 4294901760
    %v3851 = vsub.f32 %v3706, %v3850
    %v3852 = vand.u32 %v3851, 4294901760
    %v3853 = vsub.f32 %v3851, %v3852
    %v3854 = vand.u32 %v3853, 4294901760
    %3855 = vmatpush1.msra.mxu0 %v3854
    %v3856 = vand.u32 %v3703, 4294901760
    %v3857 = vsub.f32 %v3703, %v3856
    %v3858 = vand.u32 %v3857, 4294901760
    %v3859 = vsub.f32 %v3857, %v3858
    %v3860 = vand.u32 %v3859, 4294901760
    %3861 = vmatprep.subr.mxu0 %v3860
    %v3862 = vand.u32 %v3702, 4294901760
    %v3863 = vsub.f32 %v3702, %v3862
    %v3864 = vand.u32 %v3863, 4294901760
    %v3865 = vsub.f32 %v3863, %v3864
    %v3866 = vand.u32 %v3865, 4294901760
    %3867 = vmatpush1.msra.mxu0 %v3866
    %v3868 = vand.u32 %v3699, 4294901760
    %v3869 = vsub.f32 %v3699, %v3868
    %v3870 = vand.u32 %v3869, 4294901760
    %v3871 = vsub.f32 %v3869, %v3870
    %v3872 = vand.u32 %v3871, 4294901760
    %3873 = vmatprep.subr.mxu0 %v3872
    %v3874 = vand.u32 %v3698, 4294901760
    %v3875 = vsub.f32 %v3698, %v3874
    %v3876 = vand.u32 %v3875, 4294901760
    %v3877 = vsub.f32 %v3875, %v3876
    %v3878 = vand.u32 %v3877, 4294901760
    %3879 = vmatpush1.msra.mxu0 %v3878
    %v3880 = vand.u32 %v3695, 4294901760
    %v3881 = vsub.f32 %v3695, %v3880
    %v3882 = vand.u32 %v3881, 4294901760
    %v3883 = vsub.f32 %v3881, %v3882
    %v3884 = vand.u32 %v3883, 4294901760
    %3885 = vmatprep.subr.mxu0 %v3884
    %v3886 = vand.u32 %v3694, 4294901760
    %v3887 = vsub.f32 %v3694, %v3886
    %v3888 = vand.u32 %v3887, 4294901760
    %v3889 = vsub.f32 %v3887, %v3888
    %v3890 = vand.u32 %v3889, 4294901760
    %3891 = vmatpush1.msra.mxu0 %v3890
    %3892 = vmatprep.subr.mxu0 0.0
    %3893 = vmatpush2.msra.mxu0 0.0
    %3894 = vmatprep.subr.mxu0 0.0
    %3895 = vmatpush2.msra.mxu0 0.0
    %3896 = vmatprep.subr.mxu0 0.0
    %3897 = vmatpush2.msra.mxu0 0.0
    %3898 = vmatprep.subr.mxu0 0.0
    %3899 = vmatpush2.msra.mxu0 0.0
    %3900 = vmatprep.subr.mxu0 0.0
    %3901 = vmatpush2.msra.mxu0 0.0
    %3902 = vmatprep.subr.mxu0 0.0
    %3903 = vmatpush2.msra.mxu0 0.0
    %3904 = vmatprep.subr.mxu0 0.0
    %3905 = vmatpush2.msra.mxu0 0.0
    %3906 = vmatprep.subr.mxu0 0.0
    %3907 = vmatpush2.msra.mxu0 0.0
    %3908 = vmatprep.subr.mxu0 0.0
    %3909 = vmatpush2.msra.mxu0 0.0
    %3910 = vmatprep.subr.mxu0 0.0
    %3911 = vmatpush2.msra.mxu0 0.0
    %3912 = vmatprep.subr.mxu0 0.0
    %3913 = vmatpush2.msra.mxu0 0.0
    %3914 = vmatprep.subr.mxu0 0.0
    %3915 = vmatpush2.msra.mxu0 0.0
    %3916 = vmatprep.subr.mxu0 0.0
    %3917 = vmatpush2.msra.mxu0 0.0
    %3918 = vmatprep.subr.mxu0 0.0
    %3919 = vmatpush2.msra.mxu0 0.0
    %3920 = vmatprep.subr.mxu0 0.0
    %3921 = vmatpush2.msra.mxu0 0.0
    %3922 = vmatprep.subr.mxu0 0.0
    %3923 = vmatpush2.msra.mxu0 0.0
    %3924 = vmatprep.mubr.f32.mxu0 0.0
    %v3925 = vand.u32 %v3734, 4294901760
    %3926 = vmatmul.mubr.f32.gmra.mxu0 %v3925
    %v3927 = vpop.f32.mrf.mxu0
    %v3928 = vadd.f32 %v3816, %v3927
    %v3929 = vpop.f32.mrf.mxu0
    %v3930 = vadd.f32 %v3818, %v3929
    %3931 = vdwg.mxu0
    %3932 = vmatprep.subr.mxu0 0.0
    %3933 = vmatpush1.msra.mxu0 0.0
    %3934 = vmatprep.subr.mxu0 0.0
    %3935 = vmatpush1.msra.mxu0 0.0
    %3936 = vmatprep.subr.mxu0 0.0
    %3937 = vmatpush1.msra.mxu0 0.0
    %3938 = vmatprep.subr.mxu0 0.0
    %3939 = vmatpush1.msra.mxu0 0.0
    %3940 = vmatprep.subr.mxu0 0.0
    %3941 = vmatpush1.msra.mxu0 0.0
    %3942 = vmatprep.subr.mxu0 0.0
    %3943 = vmatpush1.msra.mxu0 0.0
    %3944 = vmatprep.subr.mxu0 0.0
    %3945 = vmatpush1.msra.mxu0 0.0
    %3946 = vmatprep.subr.mxu0 0.0
    %3947 = vmatpush1.msra.mxu0 0.0
    %3948 = vmatprep.subr.mxu0 0.0
    %3949 = vmatpush1.msra.mxu0 0.0
    %3950 = vmatprep.subr.mxu0 0.0
    %3951 = vmatpush1.msra.mxu0 0.0
    %3952 = vmatprep.subr.mxu0 0.0
    %3953 = vmatpush1.msra.mxu0 0.0
    %3954 = vmatprep.subr.mxu0 0.0
    %3955 = vmatpush1.msra.mxu0 0.0
    %v3956 = vand.u32 %v3707, 4294901760
    %v3957 = vsub.f32 %v3707, %v3956
    %3958 = vmatprep.subr.mxu0 %v3957
    %v3959 = vand.u32 %v3706, 4294901760
    %v3960 = vsub.f32 %v3706, %v3959
    %3961 = vmatpush1.msra.mxu0 %v3960
    %v3962 = vand.u32 %v3703, 4294901760
    %v3963 = vsub.f32 %v3703, %v3962
    %3964 = vmatprep.subr.mxu0 %v3963
    %v3965 = vand.u32 %v3702, 4294901760
    %v3966 = vsub.f32 %v3702, %v3965
    %3967 = vmatpush1.msra.mxu0 %v3966
    %v3968 = vand.u32 %v3699, 4294901760
    %v3969 = vsub.f32 %v3699, %v3968
    %3970 = vmatprep.subr.mxu0 %v3969
    %v3971 = vand.u32 %v3698, 4294901760
    %v3972 = vsub.f32 %v3698, %v3971
    %3973 = vmatpush1.msra.mxu0 %v3972
    %v3974 = vand.u32 %v3695, 4294901760
    %v3975 = vsub.f32 %v3695, %v3974
    %3976 = vmatprep.subr.mxu0 %v3975
    %v3977 = vand.u32 %v3694, 4294901760
    %v3978 = vsub.f32 %v3694, %v3977
    %3979 = vmatpush1.msra.mxu0 %v3978
    %3980 = vmatprep.subr.mxu0 0.0
    %3981 = vmatpush2.msra.mxu0 0.0
    %3982 = vmatprep.subr.mxu0 0.0
    %3983 = vmatpush2.msra.mxu0 0.0
    %3984 = vmatprep.subr.mxu0 0.0
    %3985 = vmatpush2.msra.mxu0 0.0
    %3986 = vmatprep.subr.mxu0 0.0
    %3987 = vmatpush2.msra.mxu0 0.0
    %3988 = vmatprep.subr.mxu0 0.0
    %3989 = vmatpush2.msra.mxu0 0.0
    %3990 = vmatprep.subr.mxu0 0.0
    %3991 = vmatpush2.msra.mxu0 0.0
    %3992 = vmatprep.subr.mxu0 0.0
    %3993 = vmatpush2.msra.mxu0 0.0
    %3994 = vmatprep.subr.mxu0 0.0
    %3995 = vmatpush2.msra.mxu0 0.0
    %3996 = vmatprep.subr.mxu0 0.0
    %3997 = vmatpush2.msra.mxu0 0.0
    %3998 = vmatprep.subr.mxu0 0.0
    %3999 = vmatpush2.msra.mxu0 0.0
    %4000 = vmatprep.subr.mxu0 0.0
    %4001 = vmatpush2.msra.mxu0 0.0
    %4002 = vmatprep.subr.mxu0 0.0
    %4003 = vmatpush2.msra.mxu0 0.0
    %4004 = vmatprep.subr.mxu0 0.0
    %4005 = vmatpush2.msra.mxu0 0.0
    %4006 = vmatprep.subr.mxu0 0.0
    %4007 = vmatpush2.msra.mxu0 0.0
    %4008 = vmatprep.subr.mxu0 0.0
    %4009 = vmatpush2.msra.mxu0 0.0
    %4010 = vmatprep.subr.mxu0 0.0
    %4011 = vmatpush2.msra.mxu0 0.0
    %4012 = vmatprep.mubr.f32.mxu0 0.0
    %v4013 = vand.u32 %v3734, 4294901760
    %v4014 = vsub.f32 %v3734, %v4013
    %4015 = vmatmul.mubr.f32.gmra.mxu0 %v4014
    %v4016 = vpop.f32.mrf.mxu0
    %v4017 = vadd.f32 %v3928, %v4016
    %v4018 = vpop.f32.mrf.mxu0
    %v4019 = vadd.f32 %v3930, %v4018
    %4020 = vdwg.mxu0
    %4021 = vmatprep.subr.mxu0 0.0
    %4022 = vmatpush1.msra.mxu0 0.0
    %4023 = vmatprep.subr.mxu0 0.0
    %4024 = vmatpush1.msra.mxu0 0.0
    %4025 = vmatprep.subr.mxu0 0.0
    %4026 = vmatpush1.msra.mxu0 0.0
    %4027 = vmatprep.subr.mxu0 0.0
    %4028 = vmatpush1.msra.mxu0 0.0
    %4029 = vmatprep.subr.mxu0 0.0
    %4030 = vmatpush1.msra.mxu0 0.0
    %4031 = vmatprep.subr.mxu0 0.0
    %4032 = vmatpush1.msra.mxu0 0.0
    %4033 = vmatprep.subr.mxu0 0.0
    %4034 = vmatpush1.msra.mxu0 0.0
    %4035 = vmatprep.subr.mxu0 0.0
    %4036 = vmatpush1.msra.mxu0 0.0
    %4037 = vmatprep.subr.mxu0 0.0
    %4038 = vmatpush1.msra.mxu0 0.0
    %4039 = vmatprep.subr.mxu0 0.0
    %4040 = vmatpush1.msra.mxu0 0.0
    %4041 = vmatprep.subr.mxu0 0.0
    %4042 = vmatpush1.msra.mxu0 0.0
    %4043 = vmatprep.subr.mxu0 0.0
    %4044 = vmatpush1.msra.mxu0 0.0
    %v4045 = vand.u32 %v3707, 4294901760
    %4046 = vmatprep.subr.mxu0 %v4045
    %v4047 = vand.u32 %v3706, 4294901760
    %4048 = vmatpush1.msra.mxu0 %v4047
    %v4049 = vand.u32 %v3703, 4294901760
    %4050 = vmatprep.subr.mxu0 %v4049
    %v4051 = vand.u32 %v3702, 4294901760
    %4052 = vmatpush1.msra.mxu0 %v4051
    %v4053 = vand.u32 %v3699, 4294901760
    %4054 = vmatprep.subr.mxu0 %v4053
    %v4055 = vand.u32 %v3698, 4294901760
    %4056 = vmatpush1.msra.mxu0 %v4055
    %v4057 = vand.u32 %v3695, 4294901760
    %4058 = vmatprep.subr.mxu0 %v4057
    %v4059 = vand.u32 %v3694, 4294901760
    %4060 = vmatpush1.msra.mxu0 %v4059
    %4061 = vmatprep.subr.mxu0 0.0
    %4062 = vmatpush2.msra.mxu0 0.0
    %4063 = vmatprep.subr.mxu0 0.0
    %4064 = vmatpush2.msra.mxu0 0.0
    %4065 = vmatprep.subr.mxu0 0.0
    %4066 = vmatpush2.msra.mxu0 0.0
    %4067 = vmatprep.subr.mxu0 0.0
    %4068 = vmatpush2.msra.mxu0 0.0
    %4069 = vmatprep.subr.mxu0 0.0
    %4070 = vmatpush2.msra.mxu0 0.0
    %4071 = vmatprep.subr.mxu0 0.0
    %4072 = vmatpush2.msra.mxu0 0.0
    %4073 = vmatprep.subr.mxu0 0.0
    %4074 = vmatpush2.msra.mxu0 0.0
    %4075 = vmatprep.subr.mxu0 0.0
    %4076 = vmatpush2.msra.mxu0 0.0
    %4077 = vmatprep.subr.mxu0 0.0
    %4078 = vmatpush2.msra.mxu0 0.0
    %4079 = vmatprep.subr.mxu0 0.0
    %4080 = vmatpush2.msra.mxu0 0.0
    %4081 = vmatprep.subr.mxu0 0.0
    %4082 = vmatpush2.msra.mxu0 0.0
    %4083 = vmatprep.subr.mxu0 0.0
    %4084 = vmatpush2.msra.mxu0 0.0
    %4085 = vmatprep.subr.mxu0 0.0
    %4086 = vmatpush2.msra.mxu0 0.0
    %4087 = vmatprep.subr.mxu0 0.0
    %4088 = vmatpush2.msra.mxu0 0.0
    %4089 = vmatprep.subr.mxu0 0.0
    %4090 = vmatpush2.msra.mxu0 0.0
    %4091 = vmatprep.subr.mxu0 0.0
    %4092 = vmatpush2.msra.mxu0 0.0
    %4093 = vmatprep.mubr.f32.mxu0 0.0
    %v4094 = vand.u32 %v3734, 4294901760
    %v4095 = vsub.f32 %v3734, %v4094
    %v4096 = vand.u32 %v4095, 4294901760
    %4097 = vmatmul.mubr.f32.gmra.mxu0 %v4096
    %v4098 = vpop.f32.mrf.mxu0
    %v4099 = vadd.f32 %v4017, %v4098
    %v4100 = vpop.f32.mrf.mxu0
    %v4101 = vadd.f32 %v4019, %v4100
    %4102 = vdwg.mxu0
    %4103 = vmatprep.subr.mxu0 0.0
    %4104 = vmatpush1.msra.mxu0 0.0
    %4105 = vmatprep.subr.mxu0 0.0
    %4106 = vmatpush1.msra.mxu0 0.0
    %4107 = vmatprep.subr.mxu0 0.0
    %4108 = vmatpush1.msra.mxu0 0.0
    %4109 = vmatprep.subr.mxu0 0.0
    %4110 = vmatpush1.msra.mxu0 0.0
    %4111 = vmatprep.subr.mxu0 0.0
    %4112 = vmatpush1.msra.mxu0 0.0
    %4113 = vmatprep.subr.mxu0 0.0
    %4114 = vmatpush1.msra.mxu0 0.0
    %4115 = vmatprep.subr.mxu0 0.0
    %4116 = vmatpush1.msra.mxu0 0.0
    %4117 = vmatprep.subr.mxu0 0.0
    %4118 = vmatpush1.msra.mxu0 0.0
    %4119 = vmatprep.subr.mxu0 0.0
    %4120 = vmatpush1.msra.mxu0 0.0
    %4121 = vmatprep.subr.mxu0 0.0
    %4122 = vmatpush1.msra.mxu0 0.0
    %4123 = vmatprep.subr.mxu0 0.0
    %4124 = vmatpush1.msra.mxu0 0.0
    %4125 = vmatprep.subr.mxu0 0.0
    %4126 = vmatpush1.msra.mxu0 0.0
    %v4127 = vand.u32 %v3707, 4294901760
    %v4128 = vsub.f32 %v3707, %v4127
    %v4129 = vand.u32 %v4128, 4294901760
    %4130 = vmatprep.subr.mxu0 %v4129
    %v4131 = vand.u32 %v3706, 4294901760
    %v4132 = vsub.f32 %v3706, %v4131
    %v4133 = vand.u32 %v4132, 4294901760
    %4134 = vmatpush1.msra.mxu0 %v4133
    %v4135 = vand.u32 %v3703, 4294901760
    %v4136 = vsub.f32 %v3703, %v4135
    %v4137 = vand.u32 %v4136, 4294901760
    %4138 = vmatprep.subr.mxu0 %v4137
    %v4139 = vand.u32 %v3702, 4294901760
    %v4140 = vsub.f32 %v3702, %v4139
    %v4141 = vand.u32 %v4140, 4294901760
    %4142 = vmatpush1.msra.mxu0 %v4141
    %v4143 = vand.u32 %v3699, 4294901760
    %v4144 = vsub.f32 %v3699, %v4143
    %v4145 = vand.u32 %v4144, 4294901760
    %4146 = vmatprep.subr.mxu0 %v4145
    %v4147 = vand.u32 %v3698, 4294901760
    %v4148 = vsub.f32 %v3698, %v4147
    %v4149 = vand.u32 %v4148, 4294901760
    %4150 = vmatpush1.msra.mxu0 %v4149
    %v4151 = vand.u32 %v3695, 4294901760
    %v4152 = vsub.f32 %v3695, %v4151
    %v4153 = vand.u32 %v4152, 4294901760
    %4154 = vmatprep.subr.mxu0 %v4153
    %v4155 = vand.u32 %v3694, 4294901760
    %v4156 = vsub.f32 %v3694, %v4155
    %v4157 = vand.u32 %v4156, 4294901760
    %4158 = vmatpush1.msra.mxu0 %v4157
    %4159 = vmatprep.subr.mxu0 0.0
    %4160 = vmatpush2.msra.mxu0 0.0
    %4161 = vmatprep.subr.mxu0 0.0
    %4162 = vmatpush2.msra.mxu0 0.0
    %4163 = vmatprep.subr.mxu0 0.0
    %4164 = vmatpush2.msra.mxu0 0.0
    %4165 = vmatprep.subr.mxu0 0.0
    %4166 = vmatpush2.msra.mxu0 0.0
    %4167 = vmatprep.subr.mxu0 0.0
    %4168 = vmatpush2.msra.mxu0 0.0
    %4169 = vmatprep.subr.mxu0 0.0
    %4170 = vmatpush2.msra.mxu0 0.0
    %4171 = vmatprep.subr.mxu0 0.0
    %4172 = vmatpush2.msra.mxu0 0.0
    %4173 = vmatprep.subr.mxu0 0.0
    %4174 = vmatpush2.msra.mxu0 0.0
    %4175 = vmatprep.subr.mxu0 0.0
    %4176 = vmatpush2.msra.mxu0 0.0
    %4177 = vmatprep.subr.mxu0 0.0
    %4178 = vmatpush2.msra.mxu0 0.0
    %4179 = vmatprep.subr.mxu0 0.0
    %4180 = vmatpush2.msra.mxu0 0.0
    %4181 = vmatprep.subr.mxu0 0.0
    %4182 = vmatpush2.msra.mxu0 0.0
    %4183 = vmatprep.subr.mxu0 0.0
    %4184 = vmatpush2.msra.mxu0 0.0
    %4185 = vmatprep.subr.mxu0 0.0
    %4186 = vmatpush2.msra.mxu0 0.0
    %4187 = vmatprep.subr.mxu0 0.0
    %4188 = vmatpush2.msra.mxu0 0.0
    %4189 = vmatprep.subr.mxu0 0.0
    %4190 = vmatpush2.msra.mxu0 0.0
    %4191 = vmatprep.mubr.f32.mxu0 0.0
    %v4192 = vand.u32 %v3734, 4294901760
    %4193 = vmatmul.mubr.f32.gmra.mxu0 %v4192
    %v4194 = vpop.f32.mrf.mxu0
    %v4195 = vadd.f32 %v4099, %v4194
    %v4196 = vpop.f32.mrf.mxu0
    %v4197 = vadd.f32 %v4101, %v4196
    %4198 = vdwg.mxu0
    %4199 = vmatprep.subr.mxu0 0.0
    %4200 = vmatpush1.msra.mxu0 0.0
    %4201 = vmatprep.subr.mxu0 0.0
    %4202 = vmatpush1.msra.mxu0 0.0
    %4203 = vmatprep.subr.mxu0 0.0
    %4204 = vmatpush1.msra.mxu0 0.0
    %4205 = vmatprep.subr.mxu0 0.0
    %4206 = vmatpush1.msra.mxu0 0.0
    %4207 = vmatprep.subr.mxu0 0.0
    %4208 = vmatpush1.msra.mxu0 0.0
    %4209 = vmatprep.subr.mxu0 0.0
    %4210 = vmatpush1.msra.mxu0 0.0
    %4211 = vmatprep.subr.mxu0 0.0
    %4212 = vmatpush1.msra.mxu0 0.0
    %4213 = vmatprep.subr.mxu0 0.0
    %4214 = vmatpush1.msra.mxu0 0.0
    %4215 = vmatprep.subr.mxu0 0.0
    %4216 = vmatpush1.msra.mxu0 0.0
    %4217 = vmatprep.subr.mxu0 0.0
    %4218 = vmatpush1.msra.mxu0 0.0
    %4219 = vmatprep.subr.mxu0 0.0
    %4220 = vmatpush1.msra.mxu0 0.0
    %4221 = vmatprep.subr.mxu0 0.0
    %4222 = vmatpush1.msra.mxu0 0.0
    %v4223 = vand.u32 %v3707, 4294901760
    %4224 = vmatprep.subr.mxu0 %v4223
    %v4225 = vand.u32 %v3706, 4294901760
    %4226 = vmatpush1.msra.mxu0 %v4225
    %v4227 = vand.u32 %v3703, 4294901760
    %4228 = vmatprep.subr.mxu0 %v4227
    %v4229 = vand.u32 %v3702, 4294901760
    %4230 = vmatpush1.msra.mxu0 %v4229
    %v4231 = vand.u32 %v3699, 4294901760
    %4232 = vmatprep.subr.mxu0 %v4231
    %v4233 = vand.u32 %v3698, 4294901760
    %4234 = vmatpush1.msra.mxu0 %v4233
    %v4235 = vand.u32 %v3695, 4294901760
    %4236 = vmatprep.subr.mxu0 %v4235
    %v4237 = vand.u32 %v3694, 4294901760
    %4238 = vmatpush1.msra.mxu0 %v4237
    %4239 = vmatprep.subr.mxu0 0.0
    %4240 = vmatpush2.msra.mxu0 0.0
    %4241 = vmatprep.subr.mxu0 0.0
    %4242 = vmatpush2.msra.mxu0 0.0
    %4243 = vmatprep.subr.mxu0 0.0
    %4244 = vmatpush2.msra.mxu0 0.0
    %4245 = vmatprep.subr.mxu0 0.0
    %4246 = vmatpush2.msra.mxu0 0.0
    %4247 = vmatprep.subr.mxu0 0.0
    %4248 = vmatpush2.msra.mxu0 0.0
    %4249 = vmatprep.subr.mxu0 0.0
    %4250 = vmatpush2.msra.mxu0 0.0
    %4251 = vmatprep.subr.mxu0 0.0
    %4252 = vmatpush2.msra.mxu0 0.0
    %4253 = vmatprep.subr.mxu0 0.0
    %4254 = vmatpush2.msra.mxu0 0.0
    %4255 = vmatprep.subr.mxu0 0.0
    %4256 = vmatpush2.msra.mxu0 0.0
    %4257 = vmatprep.subr.mxu0 0.0
    %4258 = vmatpush2.msra.mxu0 0.0
    %4259 = vmatprep.subr.mxu0 0.0
    %4260 = vmatpush2.msra.mxu0 0.0
    %4261 = vmatprep.subr.mxu0 0.0
    %4262 = vmatpush2.msra.mxu0 0.0
    %4263 = vmatprep.subr.mxu0 0.0
    %4264 = vmatpush2.msra.mxu0 0.0
    %4265 = vmatprep.subr.mxu0 0.0
    %4266 = vmatpush2.msra.mxu0 0.0
    %4267 = vmatprep.subr.mxu0 0.0
    %4268 = vmatpush2.msra.mxu0 0.0
    %4269 = vmatprep.subr.mxu0 0.0
    %4270 = vmatpush2.msra.mxu0 0.0
    %4271 = vmatprep.mubr.f32.mxu0 0.0
    %v4272 = vand.u32 %v3734, 4294901760
    %4273 = vmatmul.mubr.f32.gmra.mxu0 %v4272
    %v4274 = vpop.f32.mrf.mxu0
    %v4275 = vadd.f32 %v4195, %v4274
    %v4276 = vpop.f32.mrf.mxu0
    %v4277 = vadd.f32 %v4197, %v4276
    %4278 = vdwg.mxu0
    %4279 = vmatprep.subr.mxu0 0.0
    %4280 = vmatpush1.msra.mxu0 0.0
    %4281 = vmatprep.subr.mxu0 0.0
    %4282 = vmatpush1.msra.mxu0 0.0
    %4283 = vmatprep.subr.mxu0 0.0
    %4284 = vmatpush1.msra.mxu0 0.0
    %4285 = vmatprep.subr.mxu0 0.0
    %4286 = vmatpush1.msra.mxu0 0.0
    %4287 = vmatprep.subr.mxu0 0.0
    %4288 = vmatpush1.msra.mxu0 0.0
    %4289 = vmatprep.subr.mxu0 0.0
    %4290 = vmatpush1.msra.mxu0 0.0
    %4291 = vmatprep.subr.mxu0 0.0
    %4292 = vmatpush1.msra.mxu0 0.0
    %4293 = vmatprep.subr.mxu0 0.0
    %4294 = vmatpush1.msra.mxu0 0.0
    %4295 = vmatprep.subr.mxu0 0.0
    %4296 = vmatpush1.msra.mxu0 0.0
    %4297 = vmatprep.subr.mxu0 0.0
    %4298 = vmatpush1.msra.mxu0 0.0
    %4299 = vmatprep.subr.mxu0 0.0
    %4300 = vmatpush1.msra.mxu0 0.0
    %4301 = vmatprep.subr.mxu0 0.0
    %4302 = vmatpush1.msra.mxu0 0.0
    %v4303 = vand.u32 %v3709, 4294901760
    %4304 = vmatprep.subr.mxu0 %v4303
    %v4305 = vand.u32 %v3708, 4294901760
    %4306 = vmatpush1.msra.mxu0 %v4305
    %v4307 = vand.u32 %v3705, 4294901760
    %4308 = vmatprep.subr.mxu0 %v4307
    %v4309 = vand.u32 %v3704, 4294901760
    %4310 = vmatpush1.msra.mxu0 %v4309
    %v4311 = vand.u32 %v3701, 4294901760
    %4312 = vmatprep.subr.mxu0 %v4311
    %v4313 = vand.u32 %v3700, 4294901760
    %4314 = vmatpush1.msra.mxu0 %v4313
    %v4315 = vand.u32 %v3697, 4294901760
    %4316 = vmatprep.subr.mxu0 %v4315
    %v4317 = vand.u32 %v3696, 4294901760
    %4318 = vmatpush1.msra.mxu0 %v4317
    %4319 = vmatprep.subr.mxu0 0.0
    %4320 = vmatpush2.msra.mxu0 0.0
    %4321 = vmatprep.subr.mxu0 0.0
    %4322 = vmatpush2.msra.mxu0 0.0
    %4323 = vmatprep.subr.mxu0 0.0
    %4324 = vmatpush2.msra.mxu0 0.0
    %4325 = vmatprep.subr.mxu0 0.0
    %4326 = vmatpush2.msra.mxu0 0.0
    %4327 = vmatprep.subr.mxu0 0.0
    %4328 = vmatpush2.msra.mxu0 0.0
    %4329 = vmatprep.subr.mxu0 0.0
    %4330 = vmatpush2.msra.mxu0 0.0
    %4331 = vmatprep.subr.mxu0 0.0
    %4332 = vmatpush2.msra.mxu0 0.0
    %4333 = vmatprep.subr.mxu0 0.0
    %4334 = vmatpush2.msra.mxu0 0.0
    %4335 = vmatprep.subr.mxu0 0.0
    %4336 = vmatpush2.msra.mxu0 0.0
    %4337 = vmatprep.subr.mxu0 0.0
    %4338 = vmatpush2.msra.mxu0 0.0
    %4339 = vmatprep.subr.mxu0 0.0
    %4340 = vmatpush2.msra.mxu0 0.0
    %4341 = vmatprep.subr.mxu0 0.0
    %4342 = vmatpush2.msra.mxu0 0.0
    %4343 = vmatprep.subr.mxu0 0.0
    %4344 = vmatpush2.msra.mxu0 0.0
    %4345 = vmatprep.subr.mxu0 0.0
    %4346 = vmatpush2.msra.mxu0 0.0
    %4347 = vmatprep.subr.mxu0 0.0
    %4348 = vmatpush2.msra.mxu0 0.0
    %4349 = vmatprep.subr.mxu0 0.0
    %4350 = vmatpush2.msra.mxu0 0.0
    %4351 = vmatprep.mubr.f32.mxu0 0.0
    %v4352 = vand.u32 %v3734, 4294901760
    %v4353 = vsub.f32 %v3734, %v4352
    %v4354 = vand.u32 %v4353, 4294901760
    %v4355 = vsub.f32 %v4353, %v4354
    %v4356 = vand.u32 %v4355, 4294901760
    %4357 = vmatmul.mubr.f32.gmra.mxu0 %v4356
    %v4358 = vpop.f32.mrf.mxu0
    %v4359 = vadd.f32 %v3723, %v4358
    %v4360 = vpop.f32.mrf.mxu0
    %v4361 = vadd.f32 %v3727, %v4360
    %4362 = vdwg.mxu0
    %4363 = vmatprep.subr.mxu0 0.0
    %4364 = vmatpush1.msra.mxu0 0.0
    %4365 = vmatprep.subr.mxu0 0.0
    %4366 = vmatpush1.msra.mxu0 0.0
    %4367 = vmatprep.subr.mxu0 0.0
    %4368 = vmatpush1.msra.mxu0 0.0
    %4369 = vmatprep.subr.mxu0 0.0
    %4370 = vmatpush1.msra.mxu0 0.0
    %4371 = vmatprep.subr.mxu0 0.0
    %4372 = vmatpush1.msra.mxu0 0.0
    %4373 = vmatprep.subr.mxu0 0.0
    %4374 = vmatpush1.msra.mxu0 0.0
    %4375 = vmatprep.subr.mxu0 0.0
    %4376 = vmatpush1.msra.mxu0 0.0
    %4377 = vmatprep.subr.mxu0 0.0
    %4378 = vmatpush1.msra.mxu0 0.0
    %4379 = vmatprep.subr.mxu0 0.0
    %4380 = vmatpush1.msra.mxu0 0.0
    %4381 = vmatprep.subr.mxu0 0.0
    %4382 = vmatpush1.msra.mxu0 0.0
    %4383 = vmatprep.subr.mxu0 0.0
    %4384 = vmatpush1.msra.mxu0 0.0
    %4385 = vmatprep.subr.mxu0 0.0
    %4386 = vmatpush1.msra.mxu0 0.0
    %v4387 = vand.u32 %v3709, 4294901760
    %v4388 = vsub.f32 %v3709, %v4387
    %v4389 = vand.u32 %v4388, 4294901760
    %v4390 = vsub.f32 %v4388, %v4389
    %v4391 = vand.u32 %v4390, 4294901760
    %4392 = vmatprep.subr.mxu0 %v4391
    %v4393 = vand.u32 %v3708, 4294901760
    %v4394 = vsub.f32 %v3708, %v4393
    %v4395 = vand.u32 %v4394, 4294901760
    %v4396 = vsub.f32 %v4394, %v4395
    %v4397 = vand.u32 %v4396, 4294901760
    %4398 = vmatpush1.msra.mxu0 %v4397
    %v4399 = vand.u32 %v3705, 4294901760
    %v4400 = vsub.f32 %v3705, %v4399
    %v4401 = vand.u32 %v4400, 4294901760
    %v4402 = vsub.f32 %v4400, %v4401
    %v4403 = vand.u32 %v4402, 4294901760
    %4404 = vmatprep.subr.mxu0 %v4403
    %v4405 = vand.u32 %v3704, 4294901760
    %v4406 = vsub.f32 %v3704, %v4405
    %v4407 = vand.u32 %v4406, 4294901760
    %v4408 = vsub.f32 %v4406, %v4407
    %v4409 = vand.u32 %v4408, 4294901760
    %4410 = vmatpush1.msra.mxu0 %v4409
    %v4411 = vand.u32 %v3701, 4294901760
    %v4412 = vsub.f32 %v3701, %v4411
    %v4413 = vand.u32 %v4412, 4294901760
    %v4414 = vsub.f32 %v4412, %v4413
    %v4415 = vand.u32 %v4414, 4294901760
    %4416 = vmatprep.subr.mxu0 %v4415
    %v4417 = vand.u32 %v3700, 4294901760
    %v4418 = vsub.f32 %v3700, %v4417
    %v4419 = vand.u32 %v4418, 4294901760
    %v4420 = vsub.f32 %v4418, %v4419
    %v4421 = vand.u32 %v4420, 4294901760
    %4422 = vmatpush1.msra.mxu0 %v4421
    %v4423 = vand.u32 %v3697, 4294901760
    %v4424 = vsub.f32 %v3697, %v4423
    %v4425 = vand.u32 %v4424, 4294901760
    %v4426 = vsub.f32 %v4424, %v4425
    %v4427 = vand.u32 %v4426, 4294901760
    %4428 = vmatprep.subr.mxu0 %v4427
    %v4429 = vand.u32 %v3696, 4294901760
    %v4430 = vsub.f32 %v3696, %v4429
    %v4431 = vand.u32 %v4430, 4294901760
    %v4432 = vsub.f32 %v4430, %v4431
    %v4433 = vand.u32 %v4432, 4294901760
    %4434 = vmatpush1.msra.mxu0 %v4433
    %4435 = vmatprep.subr.mxu0 0.0
    %4436 = vmatpush2.msra.mxu0 0.0
    %4437 = vmatprep.subr.mxu0 0.0
    %4438 = vmatpush2.msra.mxu0 0.0
    %4439 = vmatprep.subr.mxu0 0.0
    %4440 = vmatpush2.msra.mxu0 0.0
    %4441 = vmatprep.subr.mxu0 0.0
    %4442 = vmatpush2.msra.mxu0 0.0
    %4443 = vmatprep.subr.mxu0 0.0
    %4444 = vmatpush2.msra.mxu0 0.0
    %4445 = vmatprep.subr.mxu0 0.0
    %4446 = vmatpush2.msra.mxu0 0.0
    %4447 = vmatprep.subr.mxu0 0.0
    %4448 = vmatpush2.msra.mxu0 0.0
    %4449 = vmatprep.subr.mxu0 0.0
    %4450 = vmatpush2.msra.mxu0 0.0
    %4451 = vmatprep.subr.mxu0 0.0
    %4452 = vmatpush2.msra.mxu0 0.0
    %4453 = vmatprep.subr.mxu0 0.0
    %4454 = vmatpush2.msra.mxu0 0.0
    %4455 = vmatprep.subr.mxu0 0.0
    %4456 = vmatpush2.msra.mxu0 0.0
    %4457 = vmatprep.subr.mxu0 0.0
    %4458 = vmatpush2.msra.mxu0 0.0
    %4459 = vmatprep.subr.mxu0 0.0
    %4460 = vmatpush2.msra.mxu0 0.0
    %4461 = vmatprep.subr.mxu0 0.0
    %4462 = vmatpush2.msra.mxu0 0.0
    %4463 = vmatprep.subr.mxu0 0.0
    %4464 = vmatpush2.msra.mxu0 0.0
    %4465 = vmatprep.subr.mxu0 0.0
    %4466 = vmatpush2.msra.mxu0 0.0
    %4467 = vmatprep.mubr.f32.mxu0 0.0
    %v4468 = vand.u32 %v3734, 4294901760
    %4469 = vmatmul.mubr.f32.gmra.mxu0 %v4468
    %v4470 = vpop.f32.mrf.mxu0
    %v4471 = vadd.f32 %v4359, %v4470
    %v4472 = vpop.f32.mrf.mxu0
    %v4473 = vadd.f32 %v4361, %v4472
    %4474 = vdwg.mxu0
    %4475 = vmatprep.subr.mxu0 0.0
    %4476 = vmatpush1.msra.mxu0 0.0
    %4477 = vmatprep.subr.mxu0 0.0
    %4478 = vmatpush1.msra.mxu0 0.0
    %4479 = vmatprep.subr.mxu0 0.0
    %4480 = vmatpush1.msra.mxu0 0.0
    %4481 = vmatprep.subr.mxu0 0.0
    %4482 = vmatpush1.msra.mxu0 0.0
    %4483 = vmatprep.subr.mxu0 0.0
    %4484 = vmatpush1.msra.mxu0 0.0
    %4485 = vmatprep.subr.mxu0 0.0
    %4486 = vmatpush1.msra.mxu0 0.0
    %4487 = vmatprep.subr.mxu0 0.0
    %4488 = vmatpush1.msra.mxu0 0.0
    %4489 = vmatprep.subr.mxu0 0.0
    %4490 = vmatpush1.msra.mxu0 0.0
    %4491 = vmatprep.subr.mxu0 0.0
    %4492 = vmatpush1.msra.mxu0 0.0
    %4493 = vmatprep.subr.mxu0 0.0
    %4494 = vmatpush1.msra.mxu0 0.0
    %4495 = vmatprep.subr.mxu0 0.0
    %4496 = vmatpush1.msra.mxu0 0.0
    %4497 = vmatprep.subr.mxu0 0.0
    %4498 = vmatpush1.msra.mxu0 0.0
    %v4499 = vand.u32 %v3709, 4294901760
    %v4500 = vsub.f32 %v3709, %v4499
    %4501 = vmatprep.subr.mxu0 %v4500
    %v4502 = vand.u32 %v3708, 4294901760
    %v4503 = vsub.f32 %v3708, %v4502
    %4504 = vmatpush1.msra.mxu0 %v4503
    %v4505 = vand.u32 %v3705, 4294901760
    %v4506 = vsub.f32 %v3705, %v4505
    %4507 = vmatprep.subr.mxu0 %v4506
    %v4508 = vand.u32 %v3704, 4294901760
    %v4509 = vsub.f32 %v3704, %v4508
    %4510 = vmatpush1.msra.mxu0 %v4509
    %v4511 = vand.u32 %v3701, 4294901760
    %v4512 = vsub.f32 %v3701, %v4511
    %4513 = vmatprep.subr.mxu0 %v4512
    %v4514 = vand.u32 %v3700, 4294901760
    %v4515 = vsub.f32 %v3700, %v4514
    %4516 = vmatpush1.msra.mxu0 %v4515
    %v4517 = vand.u32 %v3697, 4294901760
    %v4518 = vsub.f32 %v3697, %v4517
    %4519 = vmatprep.subr.mxu0 %v4518
    %v4520 = vand.u32 %v3696, 4294901760
    %v4521 = vsub.f32 %v3696, %v4520
    %4522 = vmatpush1.msra.mxu0 %v4521
    %4523 = vmatprep.subr.mxu0 0.0
    %4524 = vmatpush2.msra.mxu0 0.0
    %4525 = vmatprep.subr.mxu0 0.0
    %4526 = vmatpush2.msra.mxu0 0.0
    %4527 = vmatprep.subr.mxu0 0.0
    %4528 = vmatpush2.msra.mxu0 0.0
    %4529 = vmatprep.subr.mxu0 0.0
    %4530 = vmatpush2.msra.mxu0 0.0
    %4531 = vmatprep.subr.mxu0 0.0
    %4532 = vmatpush2.msra.mxu0 0.0
    %4533 = vmatprep.subr.mxu0 0.0
    %4534 = vmatpush2.msra.mxu0 0.0
    %4535 = vmatprep.subr.mxu0 0.0
    %4536 = vmatpush2.msra.mxu0 0.0
    %4537 = vmatprep.subr.mxu0 0.0
    %4538 = vmatpush2.msra.mxu0 0.0
    %4539 = vmatprep.subr.mxu0 0.0
    %4540 = vmatpush2.msra.mxu0 0.0
    %4541 = vmatprep.subr.mxu0 0.0
    %4542 = vmatpush2.msra.mxu0 0.0
    %4543 = vmatprep.subr.mxu0 0.0
    %4544 = vmatpush2.msra.mxu0 0.0
    %4545 = vmatprep.subr.mxu0 0.0
    %4546 = vmatpush2.msra.mxu0 0.0
    %4547 = vmatprep.subr.mxu0 0.0
    %4548 = vmatpush2.msra.mxu0 0.0
    %4549 = vmatprep.subr.mxu0 0.0
    %4550 = vmatpush2.msra.mxu0 0.0
    %4551 = vmatprep.subr.mxu0 0.0
    %4552 = vmatpush2.msra.mxu0 0.0
    %4553 = vmatprep.subr.mxu0 0.0
    %4554 = vmatpush2.msra.mxu0 0.0
    %4555 = vmatprep.mubr.f32.mxu0 0.0
    %v4556 = vand.u32 %v3734, 4294901760
    %v4557 = vsub.f32 %v3734, %v4556
    %4558 = vmatmul.mubr.f32.gmra.mxu0 %v4557
    %v4559 = vpop.f32.mrf.mxu0
    %v4560 = vadd.f32 %v4471, %v4559
    %v4561 = vpop.f32.mrf.mxu0
    %v4562 = vadd.f32 %v4473, %v4561
    %4563 = vdwg.mxu0
    %4564 = vmatprep.subr.mxu0 0.0
    %4565 = vmatpush1.msra.mxu0 0.0
    %4566 = vmatprep.subr.mxu0 0.0
    %4567 = vmatpush1.msra.mxu0 0.0
    %4568 = vmatprep.subr.mxu0 0.0
    %4569 = vmatpush1.msra.mxu0 0.0
    %4570 = vmatprep.subr.mxu0 0.0
    %4571 = vmatpush1.msra.mxu0 0.0
    %4572 = vmatprep.subr.mxu0 0.0
    %4573 = vmatpush1.msra.mxu0 0.0
    %4574 = vmatprep.subr.mxu0 0.0
    %4575 = vmatpush1.msra.mxu0 0.0
    %4576 = vmatprep.subr.mxu0 0.0
    %4577 = vmatpush1.msra.mxu0 0.0
    %4578 = vmatprep.subr.mxu0 0.0
    %4579 = vmatpush1.msra.mxu0 0.0
    %4580 = vmatprep.subr.mxu0 0.0
    %4581 = vmatpush1.msra.mxu0 0.0
    %4582 = vmatprep.subr.mxu0 0.0
    %4583 = vmatpush1.msra.mxu0 0.0
    %4584 = vmatprep.subr.mxu0 0.0
    %4585 = vmatpush1.msra.mxu0 0.0
    %4586 = vmatprep.subr.mxu0 0.0
    %4587 = vmatpush1.msra.mxu0 0.0
    %v4588 = vand.u32 %v3709, 4294901760
    %4589 = vmatprep.subr.mxu0 %v4588
    %v4590 = vand.u32 %v3708, 4294901760
    %4591 = vmatpush1.msra.mxu0 %v4590
    %v4592 = vand.u32 %v3705, 4294901760
    %4593 = vmatprep.subr.mxu0 %v4592
    %v4594 = vand.u32 %v3704, 4294901760
    %4595 = vmatpush1.msra.mxu0 %v4594
    %v4596 = vand.u32 %v3701, 4294901760
    %4597 = vmatprep.subr.mxu0 %v4596
    %v4598 = vand.u32 %v3700, 4294901760
    %4599 = vmatpush1.msra.mxu0 %v4598
    %v4600 = vand.u32 %v3697, 4294901760
    %4601 = vmatprep.subr.mxu0 %v4600
    %v4602 = vand.u32 %v3696, 4294901760
    %4603 = vmatpush1.msra.mxu0 %v4602
    %4604 = vmatprep.subr.mxu0 0.0
    %4605 = vmatpush2.msra.mxu0 0.0
    %4606 = vmatprep.subr.mxu0 0.0
    %4607 = vmatpush2.msra.mxu0 0.0
    %4608 = vmatprep.subr.mxu0 0.0
    %4609 = vmatpush2.msra.mxu0 0.0
    %4610 = vmatprep.subr.mxu0 0.0
    %4611 = vmatpush2.msra.mxu0 0.0
    %4612 = vmatprep.subr.mxu0 0.0
    %4613 = vmatpush2.msra.mxu0 0.0
    %4614 = vmatprep.subr.mxu0 0.0
    %4615 = vmatpush2.msra.mxu0 0.0
    %4616 = vmatprep.subr.mxu0 0.0
    %4617 = vmatpush2.msra.mxu0 0.0
    %4618 = vmatprep.subr.mxu0 0.0
    %4619 = vmatpush2.msra.mxu0 0.0
    %4620 = vmatprep.subr.mxu0 0.0
    %4621 = vmatpush2.msra.mxu0 0.0
    %4622 = vmatprep.subr.mxu0 0.0
    %4623 = vmatpush2.msra.mxu0 0.0
    %4624 = vmatprep.subr.mxu0 0.0
    %4625 = vmatpush2.msra.mxu0 0.0
    %4626 = vmatprep.subr.mxu0 0.0
    %4627 = vmatpush2.msra.mxu0 0.0
    %4628 = vmatprep.subr.mxu0 0.0
    %4629 = vmatpush2.msra.mxu0 0.0
    %4630 = vmatprep.subr.mxu0 0.0
    %4631 = vmatpush2.msra.mxu0 0.0
    %4632 = vmatprep.subr.mxu0 0.0
    %4633 = vmatpush2.msra.mxu0 0.0
    %4634 = vmatprep.subr.mxu0 0.0
    %4635 = vmatpush2.msra.mxu0 0.0
    %4636 = vmatprep.mubr.f32.mxu0 0.0
    %v4637 = vand.u32 %v3734, 4294901760
    %v4638 = vsub.f32 %v3734, %v4637
    %v4639 = vand.u32 %v4638, 4294901760
    %4640 = vmatmul.mubr.f32.gmra.mxu0 %v4639
    %v4641 = vpop.f32.mrf.mxu0
    %v4642 = vadd.f32 %v4560, %v4641
    %v4643 = vpop.f32.mrf.mxu0
    %v4644 = vadd.f32 %v4562, %v4643
    %4645 = vdwg.mxu0
    %4646 = vmatprep.subr.mxu0 0.0
    %4647 = vmatpush1.msra.mxu0 0.0
    %4648 = vmatprep.subr.mxu0 0.0
    %4649 = vmatpush1.msra.mxu0 0.0
    %4650 = vmatprep.subr.mxu0 0.0
    %4651 = vmatpush1.msra.mxu0 0.0
    %4652 = vmatprep.subr.mxu0 0.0
    %4653 = vmatpush1.msra.mxu0 0.0
    %4654 = vmatprep.subr.mxu0 0.0
    %4655 = vmatpush1.msra.mxu0 0.0
    %4656 = vmatprep.subr.mxu0 0.0
    %4657 = vmatpush1.msra.mxu0 0.0
    %4658 = vmatprep.subr.mxu0 0.0
    %4659 = vmatpush1.msra.mxu0 0.0
    %4660 = vmatprep.subr.mxu0 0.0
    %4661 = vmatpush1.msra.mxu0 0.0
    %4662 = vmatprep.subr.mxu0 0.0
    %4663 = vmatpush1.msra.mxu0 0.0
    %4664 = vmatprep.subr.mxu0 0.0
    %4665 = vmatpush1.msra.mxu0 0.0
    %4666 = vmatprep.subr.mxu0 0.0
    %4667 = vmatpush1.msra.mxu0 0.0
    %4668 = vmatprep.subr.mxu0 0.0
    %4669 = vmatpush1.msra.mxu0 0.0
    %v4670 = vand.u32 %v3709, 4294901760
    %v4671 = vsub.f32 %v3709, %v4670
    %v4672 = vand.u32 %v4671, 4294901760
    %4673 = vmatprep.subr.mxu0 %v4672
    %v4674 = vand.u32 %v3708, 4294901760
    %v4675 = vsub.f32 %v3708, %v4674
    %v4676 = vand.u32 %v4675, 4294901760
    %4677 = vmatpush1.msra.mxu0 %v4676
    %v4678 = vand.u32 %v3705, 4294901760
    %v4679 = vsub.f32 %v3705, %v4678
    %v4680 = vand.u32 %v4679, 4294901760
    %4681 = vmatprep.subr.mxu0 %v4680
    %v4682 = vand.u32 %v3704, 4294901760
    %v4683 = vsub.f32 %v3704, %v4682
    %v4684 = vand.u32 %v4683, 4294901760
    %4685 = vmatpush1.msra.mxu0 %v4684
    %v4686 = vand.u32 %v3701, 4294901760
    %v4687 = vsub.f32 %v3701, %v4686
    %v4688 = vand.u32 %v4687, 4294901760
    %4689 = vmatprep.subr.mxu0 %v4688
    %v4690 = vand.u32 %v3700, 4294901760
    %v4691 = vsub.f32 %v3700, %v4690
    %v4692 = vand.u32 %v4691, 4294901760
    %4693 = vmatpush1.msra.mxu0 %v4692
    %v4694 = vand.u32 %v3697, 4294901760
    %v4695 = vsub.f32 %v3697, %v4694
    %v4696 = vand.u32 %v4695, 4294901760
    %4697 = vmatprep.subr.mxu0 %v4696
    %v4698 = vand.u32 %v3696, 4294901760
    %v4699 = vsub.f32 %v3696, %v4698
    %v4700 = vand.u32 %v4699, 4294901760
    %4701 = vmatpush1.msra.mxu0 %v4700
    %4702 = vmatprep.subr.mxu0 0.0
    %4703 = vmatpush2.msra.mxu0 0.0
    %4704 = vmatprep.subr.mxu0 0.0
    %4705 = vmatpush2.msra.mxu0 0.0
    %4706 = vmatprep.subr.mxu0 0.0
    %4707 = vmatpush2.msra.mxu0 0.0
    %4708 = vmatprep.subr.mxu0 0.0
    %4709 = vmatpush2.msra.mxu0 0.0
    %4710 = vmatprep.subr.mxu0 0.0
    %4711 = vmatpush2.msra.mxu0 0.0
    %4712 = vmatprep.subr.mxu0 0.0
    %4713 = vmatpush2.msra.mxu0 0.0
    %4714 = vmatprep.subr.mxu0 0.0
    %4715 = vmatpush2.msra.mxu0 0.0
    %4716 = vmatprep.subr.mxu0 0.0
    %4717 = vmatpush2.msra.mxu0 0.0
    %4718 = vmatprep.subr.mxu0 0.0
    %4719 = vmatpush2.msra.mxu0 0.0
    %4720 = vmatprep.subr.mxu0 0.0
    %4721 = vmatpush2.msra.mxu0 0.0
    %4722 = vmatprep.subr.mxu0 0.0
    %4723 = vmatpush2.msra.mxu0 0.0
    %4724 = vmatprep.subr.mxu0 0.0
    %4725 = vmatpush2.msra.mxu0 0.0
    %4726 = vmatprep.subr.mxu0 0.0
    %4727 = vmatpush2.msra.mxu0 0.0
    %4728 = vmatprep.subr.mxu0 0.0
    %4729 = vmatpush2.msra.mxu0 0.0
    %4730 = vmatprep.subr.mxu0 0.0
    %4731 = vmatpush2.msra.mxu0 0.0
    %4732 = vmatprep.subr.mxu0 0.0
    %4733 = vmatpush2.msra.mxu0 0.0
    %4734 = vmatprep.mubr.f32.mxu0 0.0
    %v4735 = vand.u32 %v3734, 4294901760
    %4736 = vmatmul.mubr.f32.gmra.mxu0 %v4735
    %v4737 = vpop.f32.mrf.mxu0
    %v4738 = vadd.f32 %v4642, %v4737
    %v4739 = vpop.f32.mrf.mxu0
    %v4740 = vadd.f32 %v4644, %v4739
    %4741 = vdwg.mxu0
    %4742 = vmatprep.subr.mxu0 0.0
    %4743 = vmatpush1.msra.mxu0 0.0
    %4744 = vmatprep.subr.mxu0 0.0
    %4745 = vmatpush1.msra.mxu0 0.0
    %4746 = vmatprep.subr.mxu0 0.0
    %4747 = vmatpush1.msra.mxu0 0.0
    %4748 = vmatprep.subr.mxu0 0.0
    %4749 = vmatpush1.msra.mxu0 0.0
    %4750 = vmatprep.subr.mxu0 0.0
    %4751 = vmatpush1.msra.mxu0 0.0
    %4752 = vmatprep.subr.mxu0 0.0
    %4753 = vmatpush1.msra.mxu0 0.0
    %4754 = vmatprep.subr.mxu0 0.0
    %4755 = vmatpush1.msra.mxu0 0.0
    %4756 = vmatprep.subr.mxu0 0.0
    %4757 = vmatpush1.msra.mxu0 0.0
    %4758 = vmatprep.subr.mxu0 0.0
    %4759 = vmatpush1.msra.mxu0 0.0
    %4760 = vmatprep.subr.mxu0 0.0
    %4761 = vmatpush1.msra.mxu0 0.0
    %4762 = vmatprep.subr.mxu0 0.0
    %4763 = vmatpush1.msra.mxu0 0.0
    %4764 = vmatprep.subr.mxu0 0.0
    %4765 = vmatpush1.msra.mxu0 0.0
    %v4766 = vand.u32 %v3709, 4294901760
    %4767 = vmatprep.subr.mxu0 %v4766
    %v4768 = vand.u32 %v3708, 4294901760
    %4769 = vmatpush1.msra.mxu0 %v4768
    %v4770 = vand.u32 %v3705, 4294901760
    %4771 = vmatprep.subr.mxu0 %v4770
    %v4772 = vand.u32 %v3704, 4294901760
    %4773 = vmatpush1.msra.mxu0 %v4772
    %v4774 = vand.u32 %v3701, 4294901760
    %4775 = vmatprep.subr.mxu0 %v4774
    %v4776 = vand.u32 %v3700, 4294901760
    %4777 = vmatpush1.msra.mxu0 %v4776
    %v4778 = vand.u32 %v3697, 4294901760
    %4779 = vmatprep.subr.mxu0 %v4778
    %v4780 = vand.u32 %v3696, 4294901760
    %4781 = vmatpush1.msra.mxu0 %v4780
    %4782 = vmatprep.subr.mxu0 0.0
    %4783 = vmatpush2.msra.mxu0 0.0
    %4784 = vmatprep.subr.mxu0 0.0
    %4785 = vmatpush2.msra.mxu0 0.0
    %4786 = vmatprep.subr.mxu0 0.0
    %4787 = vmatpush2.msra.mxu0 0.0
    %4788 = vmatprep.subr.mxu0 0.0
    %4789 = vmatpush2.msra.mxu0 0.0
    %4790 = vmatprep.subr.mxu0 0.0
    %4791 = vmatpush2.msra.mxu0 0.0
    %4792 = vmatprep.subr.mxu0 0.0
    %4793 = vmatpush2.msra.mxu0 0.0
    %4794 = vmatprep.subr.mxu0 0.0
    %4795 = vmatpush2.msra.mxu0 0.0
    %4796 = vmatprep.subr.mxu0 0.0
    %4797 = vmatpush2.msra.mxu0 0.0
    %4798 = vmatprep.subr.mxu0 0.0
    %4799 = vmatpush2.msra.mxu0 0.0
    %4800 = vmatprep.subr.mxu0 0.0
    %4801 = vmatpush2.msra.mxu0 0.0
    %4802 = vmatprep.subr.mxu0 0.0
    %4803 = vmatpush2.msra.mxu0 0.0
    %4804 = vmatprep.subr.mxu0 0.0
    %4805 = vmatpush2.msra.mxu0 0.0
    %4806 = vmatprep.subr.mxu0 0.0
    %4807 = vmatpush2.msra.mxu0 0.0
    %4808 = vmatprep.subr.mxu0 0.0
    %4809 = vmatpush2.msra.mxu0 0.0
    %4810 = vmatprep.subr.mxu0 0.0
    %4811 = vmatpush2.msra.mxu0 0.0
    %4812 = vmatprep.subr.mxu0 0.0
    %4813 = vmatpush2.msra.mxu0 0.0
    %4814 = vmatprep.mubr.f32.mxu0 0.0
    %v4815 = vand.u32 %v3734, 4294901760
    %4816 = vmatmul.mubr.f32.gmra.mxu0 %v4815
    %v4817 = vpop.f32.mrf.mxu0
    %v4818 = vadd.f32 %v4738, %v4817
    %v4819 = vpop.f32.mrf.mxu0
    %v4820 = vadd.f32 %v4740, %v4819
    %4821 = vdwg.mxu0
    %s4822 = smul.u32 0, 512
    %v4827 = vcombine.low %v4275, %v4277
    %v4828 = vcombine.low %v4818, %v4820
    %v4830 = vunpack.c.l.s4 1983009808
    %v4831 = vunpack.c.0.s8 %v4830
    %v4832 = vlaneseq
    %v4833 = vshrl.u32 %v4832, 7
    %v4834 = vsub.s32 %v4831, %v4833
    %v4835 = vrot.slane %v4827, %v4834
    %v4837 = vunpack.c.l.s4 1983009808
    %v4838 = vunpack.c.0.s8 %v4837
    %v4839 = vlaneseq
    %v4840 = vshrl.u32 %v4839, 7
    %v4841 = vsub.s32 %v4838, %v4840
    %v4842 = vrot.slane %v4828, %v4841
    %v4843 = vcombine.low %v4835, %v4842
    %s4845 = sshra.s32 %s4822, 7
    %s4846 = sand.u32 %s4822, 127
    %s4847 = smul.addr %s4845, 2
    %s4848 = scalar_lea.vmem [#allocation10], %s4847
    %4849 = vst [vmem:[%s4848] sm:$0xff] %v4843
    %v4850 = vld [vmem:[#allocation3] sm:$0x3]
    %vm4851 = vcmask 1041408
    %v4852 = vsel %vm4851, %v4275, -inf
    %v4853 = vsel %vm4851, %v4277, -inf
    %v4854 = vsel %vm4851, %v4818, -inf
    %v4855 = vsel %vm4851, %v4820, -inf
    %v4856 = vmax.f32 %v4852, %v4853
    %v4857 = vmax.f32 %v4854, %v4855
    %v4858 = vmax.f32 %v4856, %v4857
    %4859 = vmax.xlane.f32.xlu0 %v4858
    %v4860 = vpop.xlane.xlu0 %4859
    %v4861 = vmax.f32 %v4850, %v4860
    %v4862 = vld [vmem:[#allocation4] sm:$0x3]
    %v4863 = vsub.f32 %v4850, %v4861
    %v4864 = vmul.f32 %v4863, 1.442695
    %v4865 = vpow.pop %v4864
    %v4866 = vmul.f32 %v4862, %v4865
    %4868 = vset.pattern.permute.xlu0 0
    %4869 = vperm.xlu0 %4868, %v4861
    %v4870 = vpop.permute.xlu0 %4869
    %v4872 = vsub.f32 %v4275, %v4870
    %v4873 = vsub.f32 %v4277, %v4870
    %v4874 = vsub.f32 %v4818, %v4870
    %v4875 = vsub.f32 %v4820, %v4870
    %v4876 = vmul.f32 %v4872, 1.442695
    %v4877 = vpow.pop %v4876
    %v4878 = vmul.f32 %v4873, 1.442695
    %v4879 = vpow.pop %v4878
    %v4880 = vmul.f32 %v4874, 1.442695
    %v4881 = vpow.pop %v4880
    %v4882 = vmul.f32 %v4875, 1.442695
    %v4883 = vpow.pop %v4882
    %v4884 = vsel %vm4851, %v4877, 0.0
    %v4885 = vsel %vm4851, %v4879, 0.0
    %v4886 = vadd.f32 %v4884, %v4885
    %v4887 = vsel %vm4851, %v4881, 0.0
    %v4888 = vadd.f32 %v4886, %v4887
    %v4889 = vsel %vm4851, %v4883, 0.0
    %v4890 = vadd.f32 %v4888, %v4889
    %4891 = vadd.xlane.f32.xlu0 %v4890
    %v4892 = vpop.xlane.xlu0 %4891
    %v4893 = vadd.f32 %v4866, %v4892
    %vm4894 = vcmask 1024
    %4895 = vst.msk [vmem:[#allocation4] sm:$0x3] %vm4894, %v4893
    %4896 = vst.msk [vmem:[#allocation3] sm:$0x3] %vm4894, %v4861
    // Predicated region
    $region50: #{tpu_custom_call.1} parent=1 // pred_check
      %p4897 = pneg %p65
    $region51: #{tpu_custom_call.1} parent=1 // pred_check_branch
      %4899 = sbr.rel (%p4897) target = $region53
    $region52: #{tpu_custom_call.1} parent=1 // pred_region
      %v4900 = vld [vmem:[#allocation3] sm:$0x3]
      %v4901 = vld [vmem:[#allocation4] sm:$0x3]
      %v4902 = vlog2.pop %v4901
      %v4903 = vmul.f32 %v4902, 0.6931472
      %v4904 = vadd.f32 %v4900, %v4903
      %v4905 = vld [vmem:[#allocation10] sm:$0xff]
      %4907 = vset.pattern.permute.xlu0 0
      %4908 = vperm.xlu0 %4907, %v4904
      %v4909 = vpop.permute.xlu0 %4908
      %v4911 = vunpack.c.l.s4 269488144
      %v4912 = vunpack.c.0.s8 %v4911
      %v4913 = vlaneseq
      %v4914 = vshrl.u32 %v4913, 7
      %v4915 = vsub.s32 %v4912, %v4914
      %v4916 = vrot.slane %v4909, %v4915
      %v4918 = vsub.f32 %v4905, %v4916
      %4919 = vst [vmem:[#allocation10] sm:$0xff] %v4918
    $region53: #{tpu_custom_call.1} parent=1 // pred_fallthru
      _
    // Predicated region
    $region54: #{tpu_custom_call.1} parent=1 // pred_check
      _
    $region55: #{tpu_custom_call.1} parent=1 // pred_check_branch
      %4921 = sbr.rel (0) target = $region57
    $region56: #{tpu_custom_call.1} parent=1 // pred_region
      %s4923 = ssub.s32 128, 128
      %4924 = vsyncadd [#allocation7], %s4923
      %s4926 = sshll.u32 [#allocation10], 4
      %s4927 = int_to_ptr.vmem [resolvable:$true] %s4926
      %4929 = dma.vmem_to_hbm [thread:$0]  %s4927, 128, %s9, [#allocation7]
    $region57: #{tpu_custom_call.1} parent=1 // pred_fallthru
      _
    // Predicated region
    $region58: #{tpu_custom_call.1} parent=1 // pred_check
      _
    $region59: #{tpu_custom_call.1} parent=1 // pred_check_branch
      %4931 = sbr.rel (0) target = $region61
    $region60: #{tpu_custom_call.1} parent=1 // pred_region
      %s4933 = ssub.s32 64, 64
      %4934 = vsyncadd [#allocation12], %s4933
      %s4935 = sshll.u32 [#allocation11], 4
      %s4936 = int_to_ptr.vmem [resolvable:$true] %s4935
      %4941 = dma.vmem_to_hbm [thread:$0]  %s4936, 64, %s10, [#allocation12], 32, 32, 2
    $region61: #{tpu_custom_call.1} parent=1 // pred_fallthru
      _
    // Predicated region
    $region62: #{tpu_custom_call.1} parent=1 // pred_check
      _
    $region63: #{tpu_custom_call.1} parent=1 // pred_check_branch
      %4943 = sbr.rel (0) target = $region65
    $region64: #{tpu_custom_call.1} parent=1 // pred_region
      %s4945 = ssub.s32 32, 32
      %4946 = vsyncadd [#allocation12], %s4945
      %s4948 = sshll.u32 [#allocation13], 4
      %s4949 = int_to_ptr.vmem [resolvable:$true] %s4948
      %4951 = dma.vmem_to_hbm [thread:$0]  %s4949, 32, %s11, [#allocation12]
    $region65: #{tpu_custom_call.1} parent=1 // pred_fallthru
      _
    // Predicated region
    $region66: #{tpu_custom_call.1} parent=1 // pred_check
      _
    $region67: #{tpu_custom_call.1} parent=1 // pred_check_branch
      %4953 = sbr.rel (0) target = $region69
    $region68: #{tpu_custom_call.1} parent=1 // pred_region
      %4954 = dma.done [#allocation7], 128
    $region69: #{tpu_custom_call.1} parent=1 // pred_fallthru
      _
    // Predicated region
    $region70: #{tpu_custom_call.1} parent=1 // pred_check
      _
    $region71: #{tpu_custom_call.1} parent=1 // pred_check_branch
      %4956 = sbr.rel (0) target = $region73
    $region72: #{tpu_custom_call.1} parent=1 // pred_region
      %4957 = dma.done [#allocation12], 64
    $region73: #{tpu_custom_call.1} parent=1 // pred_fallthru
      _
    // Predicated region
    $region74: #{tpu_custom_call.1} parent=1 // pred_check
      _
    $region75: #{tpu_custom_call.1} parent=1 // pred_check_branch
      %4959 = sbr.rel (0) target = $region77
    $region76: #{tpu_custom_call.1} parent=1 // pred_region
      %4960 = dma.done [#allocation12], 32
    $region77: #{tpu_custom_call.1} parent=1 // pred_fallthru
      _
    %4961 = vsyncpa [#allocation6], 1
    %4962 = vsyncpa [#allocation9], 1
    %4963 = vsyncpa [#allocation7], 1
    %4964 = vsyncpa [#allocation12], 1

</llo_original>
